<compile_context>
chip_gen: v7x
topology: tpu7x:2x2x1
jax: 0.10.0
libtpu: 0.0.40
codegen_flags: <defaults>
</compile_context>

<pallas_src>
import functools
import math

import numpy as np

import jax
import jax.numpy as jnp
from jax.experimental import pallas as pl
from jax.experimental.pallas import tpu as pltpu

_LANE = 128
_BN_EPS = 1e-5


# ------------------------------ Pallas kernel -------------------------------

def _net_kernel(has_ds, l_f, c_f,
                x_ref, w_stem_ref, b_stem_ref, s_pool_ref,
                w_blk_ref, b_blk_ref, w_fc_ref, b_fc_ref, out_ref):
    """Whole CADResNet forward for one batch-chunk; activations are (TN, l*C)."""
    f32 = jnp.float32
    bf16 = jnp.bfloat16

    def affine(hb, w, b):
        # bf16 operands, f32 accumulate, f32 bias.
        return jnp.dot(hb, w, preferred_element_type=f32) + b

    # Stem Conv1d(7, s=2, p=3) + BN (folded) as one dense matmul, then ReLU.
    h = jnp.maximum(affine(x_ref[0], w_stem_ref[...], b_stem_ref[...]), 0.0)

    # MaxPool1d(3, s=2, p=1): three 0/1 gather matmuls + elementwise max.
    # Zero columns emulate the boundary padding; valid ONLY because h >= 0
    # post-ReLU (do not move the pool or drop the stem ReLU).
    hb = h.astype(bf16)
    h = jnp.maximum(
        jnp.maximum(jnp.dot(hb, s_pool_ref[0], preferred_element_type=f32),
                    jnp.dot(hb, s_pool_ref[1], preferred_element_type=f32)),
        jnp.dot(hb, s_pool_ref[2], preferred_element_type=f32))

    # BasicBlocks: conv+BN+ReLU, conv+BN, optional 1x1 downsample, add, ReLU.
    i = 0
    for ds in has_ds:
        hb = h.astype(bf16)
        t = jnp.maximum(affine(hb, w_blk_ref[i], b_blk_ref[i]), 0.0)
        t = affine(t.astype(bf16), w_blk_ref[i + 1], b_blk_ref[i + 1])
        if ds:
            identity = affine(hb, w_blk_ref[i + 2], b_blk_ref[i + 2])
            i += 3
        else:
            identity = h
            i += 2
        h = jnp.maximum(t + identity, 0.0)

    # AdaptiveMaxPool1d(1): max over the l_f positions (static 128-aligned lane slices).
    feat = h[:, :c_f]
    for j in range(1, l_f):
        feat = jnp.maximum(feat, h[:, j * c_f:(j + 1) * c_f])

    # fc (1x1 conv with bias), written as a dense 128-lane slab (unmasked stores).
    out_ref[0] = affine(feat.astype(bf16), w_fc_ref[...], b_fc_ref[...])


# ------------------------- host-side constant prep --------------------------
# All of this runs once at init (make_forward), never on the hot path.

def _fold_bn(w, bn):
    """Conv1d weight (C_out,C_in,K) + eval-mode BN -> scaled weight, per-channel bias."""
    gamma, beta, mean, var = [np.asarray(a, np.float32) for a in bn]
    scale = gamma / np.sqrt(var + _BN_EPS)
    w_f = np.asarray(w, np.float32) * scale[:, None, None]
    bias = beta - mean * scale
    return w_f, bias


def _dense_conv(w_f, bias, l_in, stride, pad):
    """Expand a (folded) conv into a block-Toeplitz (l_in*C_in, l_out*C_out) matrix."""
    c_out, c_in, k = w_f.shape
    l_out = (l_in + 2 * pad - k) // stride + 1
    m = np.zeros((l_in * c_in, l_out * c_out), np.float32)
    for l in range(l_out):
        for kk in range(k):
            j = stride * l + kk - pad
            if 0 <= j < l_in:
                m[j * c_in:(j + 1) * c_in, l * c_out:(l + 1) * c_out] = w_f[:, :, kk].T
    b = np.tile(bias.astype(np.float32), l_out)          # (l_out*c_out,)
    return m, b, l_out


def _pool_select(l_in, c, k, stride, pad):
    """0/1 gather matrices for MaxPool1d windows in the flattened (l*C) layout."""
    l_out = (l_in + 2 * pad - k) // stride + 1
    s = np.zeros((k, l_in * c, l_out * c), np.float32)
    eye = np.eye(c, dtype=np.float32)
    for l in range(l_out):
        for kk in range(k):
            j = stride * l + kk - pad
            if 0 <= j < l_in:
                s[kk, j * c:(j + 1) * c, l * c:(l + 1) * c] = eye
    return s, l_out


def _pack_constants(params, l_in, n_classes):
    """Fold BN, expand convs to dense matrices, coalesce into a few packed slabs."""
    # stem
    w_f, bias = _fold_bn(params["conv1_w"], params["bn1"])
    m_stem, b_stem, l = _dense_conv(w_f, bias, l_in, 2, 3)
    c = w_f.shape[0]
    # maxpool
    s_pool, l = _pool_select(l, c, 3, 2, 1)
    # residual blocks
    blk_w, blk_b, has_ds = [], [], []
    for p in params["layers"]:
        stride = int(p["stride"])
        w1, b1 = _fold_bn(p["conv1_w"], p["bn1"])
        m1, bb1, l1 = _dense_conv(w1, b1, l, stride, 1)
        w2, b2 = _fold_bn(p["conv2_w"], p["bn2"])
        m2, bb2, l2 = _dense_conv(w2, b2, l1, 1, 1)
        blk_w += [m1, m2]
        blk_b += [bb1, bb2]
        if "ds_w" in p:
            wd, bd = _fold_bn(p["ds_w"], p["ds_bn"])
            md, bbd, _ = _dense_conv(wd, bd, l, stride, 0)
            blk_w.append(md)
            blk_b.append(bbd)
            has_ds.append(True)
        else:
            has_ds.append(False)
        l = l2
        c = w2.shape[0]
    # All block matrices share one (l_in*C_in, l_out*C_out) shape in this config
    # (each stride-2 halves l and doubles C), which lets us stack them into a
    # single VMEM slab indexed statically inside the kernel.
    assert len({m.shape for m in blk_w}) == 1, "block matrices must share one shape to stack"
    w_blk = np.stack(blk_w)                               # (n_mats, D, D)
    b_blk = np.stack(blk_b)[:, None, :]                   # (n_mats, 1, D)
    # fc (Conv1d k=1 with bias); pad out-channels to a full 128-lane slab.
    l_f, c_f = int(l), int(c)
    out_pad = max(_LANE, ((n_classes + _LANE - 1) // _LANE) * _LANE)
    fw = np.zeros((c_f, out_pad), np.float32)
    fw[:, :n_classes] = np.asarray(params["fc_w"], np.float32)[:, :, 0].T
    fb = np.zeros((1, out_pad), np.float32)
    fb[0, :n_classes] = np.asarray(params["fc_b"], np.float32)

    arrays = (
        jnp.asarray(m_stem, jnp.bfloat16),                # w_stem
        jnp.asarray(b_stem[None, :], jnp.float32),        # b_stem
        jnp.asarray(s_pool, jnp.bfloat16),                # s_pool
        jnp.asarray(w_blk, jnp.bfloat16),                 # w_blk
        jnp.asarray(b_blk, jnp.float32),                  # b_blk
        jnp.asarray(fw, jnp.bfloat16),                    # w_fc
        jnp.asarray(fb, jnp.float32),                     # b_fc
    )
    static = dict(has_ds=tuple(has_ds), l_f=l_f, c_f=c_f, out_pad=int(out_pad))
    return arrays, static


# ------------------------------ parameters ----------------------------------

def kaiming_conv(key, c_out, c_in, k):
    fan_out = c_out * k
    std = math.sqrt(2.0 / fan_out)
    return std * jax.random.normal(key, (c_out, c_in, k), dtype=jnp.float32)


def bn_init(c):
    return (jnp.ones((c,), jnp.float32), jnp.zeros((c,), jnp.float32),
            jnp.zeros((c,), jnp.float32), jnp.ones((c,), jnp.float32))


def init_params(key, n_channels=4, conv_width=16, n_classes=5):
    W = conv_width
    keys = jax.random.split(key, 16)
    params = {"conv1_w": kaiming_conv(keys[0], W, n_channels, 7), "bn1": bn_init(W)}
    plan = [(W, W, 1), (W, 2 * W, 2), (2 * W, 4 * W, 2), (4 * W, 8 * W, 2)]
    layers = []
    ki = 1
    for inpl, planes, stride in plan:
        p = {"conv1_w": kaiming_conv(keys[ki], planes, inpl, 3),
             "bn1": bn_init(planes),
             "conv2_w": kaiming_conv(keys[ki + 1], planes, planes, 3),
             "bn2": bn_init(planes),
             "stride": stride}
        ki += 2
        if stride != 1 or inpl != planes:
            p["ds_w"] = kaiming_conv(keys[ki], planes, inpl, 1)
            p["ds_bn"] = bn_init(planes)
            ki += 1
        layers.append(p)
    params["layers"] = layers
    params["fc_w"] = kaiming_conv(keys[ki], n_classes, 8 * W, 1)
    params["fc_b"] = 0.01 * jax.random.normal(keys[ki + 1], (n_classes,), dtype=jnp.float32)
    return params


# -------------------------------- forward -----------------------------------

def make_forward(params, L, n_classes):
    """Build a jitted forward(x) with all constant prep hoisted out of the hot path."""
    consts, static = _pack_constants(params, L, n_classes)
    has_ds, l_f, c_f = static["has_ds"], static["l_f"], static["c_f"]
    out_pad = static["out_pad"]
    kern = functools.partial(_net_kernel, has_ds, l_f, c_f)
    const_specs = [pl.BlockSpec(a.shape, lambda n, _r=a.ndim: (0,) * _r) for a in consts]

    @jax.jit
    def forward(x):
        """x: (B, G, C, L) float32 — mirrors CADResNet._forward_impl."""
        B, G, C, Lx = x.shape
        N = B * G
        # 2 chunks so v7x's two TensorCores can split the batch; one extra grid
        # step (~0.35us) is negligible on single-TC v5e/v6e.
        n_steps = 2 if (N % 2 == 0 and N >= 2) else 1
        tn = N // n_steps
        flat_in = Lx * C
        # Flatten to channels-minor (batch, l*C) layout, matmul operands in bf16.
        h0 = jnp.transpose(x.reshape(N, C, Lx), (0, 2, 1)).reshape(n_steps, tn, flat_in)
        h0 = h0.astype(jnp.bfloat16)

        out = pl.pallas_call(
            kern,
            out_shape=jax.ShapeDtypeStruct((n_steps, tn, out_pad), jnp.float32),
            grid=(n_steps,),
            in_specs=[pl.BlockSpec((1, tn, flat_in), lambda n: (n, 0, 0))] + const_specs,
            out_specs=pl.BlockSpec((1, tn, out_pad), lambda n: (n, 0, 0)),
            compiler_params=pltpu.CompilerParams(dimension_semantics=("parallel",)),
        )(h0, *consts)

        logits = out.reshape(N, out_pad)[:, :n_classes].reshape(B, G, n_classes)
        idx = jnp.argmax(jnp.sum(logits, axis=2), axis=1)      # argmax of per-group class sum
        return logits[jnp.arange(B), idx, :]                    # gather -> transpose -> squeeze

    return forward


if __name__ == "__main__":
    key = jax.random.PRNGKey(0)
    pkey, xkey = jax.random.split(key)
    params = init_params(pkey, n_channels=4, conv_width=16, n_classes=5)
    forward = make_forward(params, L=64, n_classes=5)
    x = jax.random.normal(xkey, (2, 4, 4, 64), dtype=jnp.float32)   # (B, G, C, L)
    out = jax.block_until_ready(forward(x))
    assert out.shape == (2, 5), out.shape
    print("KERNEL_OK")
</pallas_src>

<mosaic_0001>
module attributes {stable_mosaic.version = 11 : i64} {
  func.func @_net_kernel(%arg0: i32, %arg1: memref<1x4x256xbf16, #tpu.memory_space<vmem>>, %arg2: memref<256x512xbf16, #tpu.memory_space<vmem>>, %arg3: memref<1x512xf32, #tpu.memory_space<vmem>>, %arg4: memref<3x512x256xbf16, #tpu.memory_space<vmem>>, %arg5: memref<11x256x256xbf16, #tpu.memory_space<vmem>>, %arg6: memref<11x1x256xf32, #tpu.memory_space<vmem>>, %arg7: memref<128x128xbf16, #tpu.memory_space<vmem>>, %arg8: memref<1x128xf32, #tpu.memory_space<vmem>>, %arg9: memref<1x4x128xf32, #tpu.memory_space<vmem>>) attributes {dimension_semantics = [#tpu.dimension_semantics<parallel>], iteration_bounds = array<i64: 2>, scalar_prefetch = 0 : i64, scratch_operands = 0 : i64, tpu.core_type = #tpu.core_type<tc>, window_params = [{transform_indices = @transform_0, window_bounds = array<i64: 1, 4, 256>}, {pipeline_mode = #tpu.pipeline_mode<synchronous>, transform_indices = @transform_1, window_bounds = array<i64: 256, 512>}, {pipeline_mode = #tpu.pipeline_mode<synchronous>, transform_indices = @transform_2, window_bounds = array<i64: 1, 512>}, {pipeline_mode = #tpu.pipeline_mode<synchronous>, transform_indices = @transform_3, window_bounds = array<i64: 3, 512, 256>}, {pipeline_mode = #tpu.pipeline_mode<synchronous>, transform_indices = @transform_4, window_bounds = array<i64: 11, 256, 256>}, {pipeline_mode = #tpu.pipeline_mode<synchronous>, transform_indices = @transform_5, window_bounds = array<i64: 11, 1, 256>}, {pipeline_mode = #tpu.pipeline_mode<synchronous>, transform_indices = @transform_6, window_bounds = array<i64: 128, 128>}, {pipeline_mode = #tpu.pipeline_mode<synchronous>, transform_indices = @transform_7, window_bounds = array<i64: 1, 128>}, {transform_indices = @transform_8, window_bounds = array<i64: 1, 4, 128>}]} {
    %c0 = arith.constant 0 : index
    %c0_0 = arith.constant 0 : index
    %c0_1 = arith.constant 0 : index
    %0 = vector.load %arg1[%c0, %c0_0, %c0_1] : memref<1x4x256xbf16, #tpu.memory_space<vmem>>, vector<1x4x256xbf16>
    %1 = vector.shape_cast %0 : vector<1x4x256xbf16> to vector<4x256xbf16>
    %c0_2 = arith.constant 0 : index
    %c0_3 = arith.constant 0 : index
    %2 = vector.load %arg2[%c0_2, %c0_3] : memref<256x512xbf16, #tpu.memory_space<vmem>>, vector<256x512xbf16>
    %c0_4 = arith.constant 0 : index
    %c0_5 = arith.constant 0 : index
    %3 = vector.load %arg3[%c0_4, %c0_5] : memref<1x512xf32, #tpu.memory_space<vmem>>, vector<1x512xf32>
    %cst = arith.constant dense<0.000000e+00> : vector<4x512xf32>
    %4 = tpu.matmul %1, %2, %cst {dimension_numbers = #tpu.dot_dimension_numbers<[1], [0], [0], [1], [0, 0, 1, 1], [], []>} : vector<4x256xbf16>, vector<256x512xbf16>, vector<4x512xf32> -> vector<4x512xf32>
    %5 = vector.broadcast %3 : vector<1x512xf32> to vector<4x512xf32>
    %6 = arith.addf %4, %5 : vector<4x512xf32>
    %cst_6 = arith.constant 0.000000e+00 : f32
    %7 = vector.broadcast %cst_6 : f32 to vector<4x512xf32>
    %8 = arith.maximumf %6, %7 : vector<4x512xf32>
    %9 = arith.truncf %8 : vector<4x512xf32> to vector<4x512xbf16>
    %c0_7 = arith.constant 0 : index
    %c0_8 = arith.constant 0 : index
    %c0_9 = arith.constant 0 : index
    %10 = vector.load %arg4[%c0_7, %c0_8, %c0_9] : memref<3x512x256xbf16, #tpu.memory_space<vmem>>, vector<1x512x256xbf16>
    %11 = vector.shape_cast %10 : vector<1x512x256xbf16> to vector<512x256xbf16>
    %cst_10 = arith.constant dense<0.000000e+00> : vector<4x256xf32>
    %12 = tpu.matmul %9, %11, %cst_10 {dimension_numbers = #tpu.dot_dimension_numbers<[1], [0], [0], [1], [0, 0, 1, 1], [], []>} : vector<4x512xbf16>, vector<512x256xbf16>, vector<4x256xf32> -> vector<4x256xf32>
    %c1 = arith.constant 1 : index
    %c0_11 = arith.constant 0 : index
    %c0_12 = arith.constant 0 : index
    %13 = vector.load %arg4[%c1, %c0_11, %c0_12] : memref<3x512x256xbf16, #tpu.memory_space<vmem>>, vector<1x512x256xbf16>
    %14 = vector.shape_cast %13 : vector<1x512x256xbf16> to vector<512x256xbf16>
    %cst_13 = arith.constant dense<0.000000e+00> : vector<4x256xf32>
    %15 = tpu.matmul %9, %14, %cst_13 {dimension_numbers = #tpu.dot_dimension_numbers<[1], [0], [0], [1], [0, 0, 1, 1], [], []>} : vector<4x512xbf16>, vector<512x256xbf16>, vector<4x256xf32> -> vector<4x256xf32>
    %16 = arith.maximumf %12, %15 : vector<4x256xf32>
    %c2 = arith.constant 2 : index
    %c0_14 = arith.constant 0 : index
    %c0_15 = arith.constant 0 : index
    %17 = vector.load %arg4[%c2, %c0_14, %c0_15] : memref<3x512x256xbf16, #tpu.memory_space<vmem>>, vector<1x512x256xbf16>
    %18 = vector.shape_cast %17 : vector<1x512x256xbf16> to vector<512x256xbf16>
    %cst_16 = arith.constant dense<0.000000e+00> : vector<4x256xf32>
    %19 = tpu.matmul %9, %18, %cst_16 {dimension_numbers = #tpu.dot_dimension_numbers<[1], [0], [0], [1], [0, 0, 1, 1], [], []>} : vector<4x512xbf16>, vector<512x256xbf16>, vector<4x256xf32> -> vector<4x256xf32>
    %20 = arith.maximumf %16, %19 : vector<4x256xf32>
    %21 = arith.truncf %20 : vector<4x256xf32> to vector<4x256xbf16>
    %c0_17 = arith.constant 0 : index
    %c0_18 = arith.constant 0 : index
    %c0_19 = arith.constant 0 : index
    %22 = vector.load %arg5[%c0_17, %c0_18, %c0_19] : memref<11x256x256xbf16, #tpu.memory_space<vmem>>, vector<1x256x256xbf16>
    %23 = vector.shape_cast %22 : vector<1x256x256xbf16> to vector<256x256xbf16>
    %c0_20 = arith.constant 0 : index
    %c0_21 = arith.constant 0 : index
    %c0_22 = arith.constant 0 : index
    %24 = vector.load %arg6[%c0_20, %c0_21, %c0_22] : memref<11x1x256xf32, #tpu.memory_space<vmem>>, vector<1x1x256xf32>
    %25 = vector.shape_cast %24 : vector<1x1x256xf32> to vector<1x256xf32>
    %cst_23 = arith.constant dense<0.000000e+00> : vector<4x256xf32>
    %26 = tpu.matmul %21, %23, %cst_23 {dimension_numbers = #tpu.dot_dimension_numbers<[1], [0], [0], [1], [0, 0, 1, 1], [], []>} : vector<4x256xbf16>, vector<256x256xbf16>, vector<4x256xf32> -> vector<4x256xf32>
    %27 = vector.broadcast %25 : vector<1x256xf32> to vector<4x256xf32>
    %28 = arith.addf %26, %27 : vector<4x256xf32>
    %cst_24 = arith.constant 0.000000e+00 : f32
    %29 = vector.broadcast %cst_24 : f32 to vector<4x256xf32>
    %30 = arith.maximumf %28, %29 : vector<4x256xf32>
    %31 = arith.truncf %30 : vector<4x256xf32> to vector<4x256xbf16>
    %c1_25 = arith.constant 1 : index
    %c0_26 = arith.constant 0 : index
    %c0_27 = arith.constant 0 : index
    %32 = vector.load %arg5[%c1_25, %c0_26, %c0_27] : memref<11x256x256xbf16, #tpu.memory_space<vmem>>, vector<1x256x256xbf16>
    %33 = vector.shape_cast %32 : vector<1x256x256xbf16> to vector<256x256xbf16>
    %c1_28 = arith.constant 1 : index
    %c0_29 = arith.constant 0 : index
    %c0_30 = arith.constant 0 : index
    %34 = vector.load %arg6[%c1_28, %c0_29, %c0_30] : memref<11x1x256xf32, #tpu.memory_space<vmem>>, vector<1x1x256xf32>
    %35 = vector.shape_cast %34 : vector<1x1x256xf32> to vector<1x256xf32>
    %cst_31 = arith.constant dense<0.000000e+00> : vector<4x256xf32>
    %36 = tpu.matmul %31, %33, %cst_31 {dimension_numbers = #tpu.dot_dimension_numbers<[1], [0], [0], [1], [0, 0, 1, 1], [], []>} : vector<4x256xbf16>, vector<256x256xbf16>, vector<4x256xf32> -> vector<4x256xf32>
    %37 = vector.broadcast %35 : vector<1x256xf32> to vector<4x256xf32>
    %38 = arith.addf %36, %37 : vector<4x256xf32>
    %39 = arith.addf %38, %20 : vector<4x256xf32>
    %cst_32 = arith.constant 0.000000e+00 : f32
    %40 = vector.broadcast %cst_32 : f32 to vector<4x256xf32>
    %41 = arith.maximumf %39, %40 : vector<4x256xf32>
    %42 = arith.truncf %41 : vector<4x256xf32> to vector<4x256xbf16>
    %c2_33 = arith.constant 2 : index
    %c0_34 = arith.constant 0 : index
    %c0_35 = arith.constant 0 : index
    %43 = vector.load %arg5[%c2_33, %c0_34, %c0_35] : memref<11x256x256xbf16, #tpu.memory_space<vmem>>, vector<1x256x256xbf16>
    %44 = vector.shape_cast %43 : vector<1x256x256xbf16> to vector<256x256xbf16>
    %c2_36 = arith.constant 2 : index
    %c0_37 = arith.constant 0 : index
    %c0_38 = arith.constant 0 : index
    %45 = vector.load %arg6[%c2_36, %c0_37, %c0_38] : memref<11x1x256xf32, #tpu.memory_space<vmem>>, vector<1x1x256xf32>
    %46 = vector.shape_cast %45 : vector<1x1x256xf32> to vector<1x256xf32>
    %cst_39 = arith.constant dense<0.000000e+00> : vector<4x256xf32>
    %47 = tpu.matmul %42, %44, %cst_39 {dimension_numbers = #tpu.dot_dimension_numbers<[1], [0], [0], [1], [0, 0, 1, 1], [], []>} : vector<4x256xbf16>, vector<256x256xbf16>, vector<4x256xf32> -> vector<4x256xf32>
    %48 = vector.broadcast %46 : vector<1x256xf32> to vector<4x256xf32>
    %49 = arith.addf %47, %48 : vector<4x256xf32>
    %cst_40 = arith.constant 0.000000e+00 : f32
    %50 = vector.broadcast %cst_40 : f32 to vector<4x256xf32>
    %51 = arith.maximumf %49, %50 : vector<4x256xf32>
    %52 = arith.truncf %51 : vector<4x256xf32> to vector<4x256xbf16>
    %c3 = arith.constant 3 : index
    %c0_41 = arith.constant 0 : index
    %c0_42 = arith.constant 0 : index
    %53 = vector.load %arg5[%c3, %c0_41, %c0_42] : memref<11x256x256xbf16, #tpu.memory_space<vmem>>, vector<1x256x256xbf16>
    %54 = vector.shape_cast %53 : vector<1x256x256xbf16> to vector<256x256xbf16>
    %c3_43 = arith.constant 3 : index
    %c0_44 = arith.constant 0 : index
    %c0_45 = arith.constant 0 : index
    %55 = vector.load %arg6[%c3_43, %c0_44, %c0_45] : memref<11x1x256xf32, #tpu.memory_space<vmem>>, vector<1x1x256xf32>
    %56 = vector.shape_cast %55 : vector<1x1x256xf32> to vector<1x256xf32>
    %cst_46 = arith.constant dense<0.000000e+00> : vector<4x256xf32>
    %57 = tpu.matmul %52, %54, %cst_46 {dimension_numbers = #tpu.dot_dimension_numbers<[1], [0], [0], [1], [0, 0, 1, 1], [], []>} : vector<4x256xbf16>, vector<256x256xbf16>, vector<4x256xf32> -> vector<4x256xf32>
    %58 = vector.broadcast %56 : vector<1x256xf32> to vector<4x256xf32>
    %59 = arith.addf %57, %58 : vector<4x256xf32>
    %c4 = arith.constant 4 : index
    %c0_47 = arith.constant 0 : index
    %c0_48 = arith.constant 0 : index
    %60 = vector.load %arg5[%c4, %c0_47, %c0_48] : memref<11x256x256xbf16, #tpu.memory_space<vmem>>, vector<1x256x256xbf16>
    %61 = vector.shape_cast %60 : vector<1x256x256xbf16> to vector<256x256xbf16>
    %c4_49 = arith.constant 4 : index
    %c0_50 = arith.constant 0 : index
    %c0_51 = arith.constant 0 : index
    %62 = vector.load %arg6[%c4_49, %c0_50, %c0_51] : memref<11x1x256xf32, #tpu.memory_space<vmem>>, vector<1x1x256xf32>
    %63 = vector.shape_cast %62 : vector<1x1x256xf32> to vector<1x256xf32>
    %cst_52 = arith.constant dense<0.000000e+00> : vector<4x256xf32>
    %64 = tpu.matmul %42, %61, %cst_52 {dimension_numbers = #tpu.dot_dimension_numbers<[1], [0], [0], [1], [0, 0, 1, 1], [], []>} : vector<4x256xbf16>, vector<256x256xbf16>, vector<4x256xf32> -> vector<4x256xf32>
    %65 = vector.broadcast %63 : vector<1x256xf32> to vector<4x256xf32>
    %66 = arith.addf %64, %65 : vector<4x256xf32>
    %67 = arith.addf %59, %66 : vector<4x256xf32>
    %cst_53 = arith.constant 0.000000e+00 : f32
    %68 = vector.broadcast %cst_53 : f32 to vector<4x256xf32>
    %69 = arith.maximumf %67, %68 : vector<4x256xf32>
    %70 = arith.truncf %69 : vector<4x256xf32> to vector<4x256xbf16>
    %c5 = arith.constant 5 : index
    %c0_54 = arith.constant 0 : index
    %c0_55 = arith.constant 0 : index
    %71 = vector.load %arg5[%c5, %c0_54, %c0_55] : memref<11x256x256xbf16, #tpu.memory_space<vmem>>, vector<1x256x256xbf16>
    %72 = vector.shape_cast %71 : vector<1x256x256xbf16> to vector<256x256xbf16>
    %c5_56 = arith.constant 5 : index
    %c0_57 = arith.constant 0 : index
    %c0_58 = arith.constant 0 : index
    %73 = vector.load %arg6[%c5_56, %c0_57, %c0_58] : memref<11x1x256xf32, #tpu.memory_space<vmem>>, vector<1x1x256xf32>
    %74 = vector.shape_cast %73 : vector<1x1x256xf32> to vector<1x256xf32>
    %cst_59 = arith.constant dense<0.000000e+00> : vector<4x256xf32>
    %75 = tpu.matmul %70, %72, %cst_59 {dimension_numbers = #tpu.dot_dimension_numbers<[1], [0], [0], [1], [0, 0, 1, 1], [], []>} : vector<4x256xbf16>, vector<256x256xbf16>, vector<4x256xf32> -> vector<4x256xf32>
    %76 = vector.broadcast %74 : vector<1x256xf32> to vector<4x256xf32>
    %77 = arith.addf %75, %76 : vector<4x256xf32>
    %cst_60 = arith.constant 0.000000e+00 : f32
    %78 = vector.broadcast %cst_60 : f32 to vector<4x256xf32>
    %79 = arith.maximumf %77, %78 : vector<4x256xf32>
    %80 = arith.truncf %79 : vector<4x256xf32> to vector<4x256xbf16>
    %c6 = arith.constant 6 : index
    %c0_61 = arith.constant 0 : index
    %c0_62 = arith.constant 0 : index
    %81 = vector.load %arg5[%c6, %c0_61, %c0_62] : memref<11x256x256xbf16, #tpu.memory_space<vmem>>, vector<1x256x256xbf16>
    %82 = vector.shape_cast %81 : vector<1x256x256xbf16> to vector<256x256xbf16>
    %c6_63 = arith.constant 6 : index
    %c0_64 = arith.constant 0 : index
    %c0_65 = arith.constant 0 : index
    %83 = vector.load %arg6[%c6_63, %c0_64, %c0_65] : memref<11x1x256xf32, #tpu.memory_space<vmem>>, vector<1x1x256xf32>
    %84 = vector.shape_cast %83 : vector<1x1x256xf32> to vector<1x256xf32>
    %cst_66 = arith.constant dense<0.000000e+00> : vector<4x256xf32>
    %85 = tpu.matmul %80, %82, %cst_66 {dimension_numbers = #tpu.dot_dimension_numbers<[1], [0], [0], [1], [0, 0, 1, 1], [], []>} : vector<4x256xbf16>, vector<256x256xbf16>, vector<4x256xf32> -> vector<4x256xf32>
    %86 = vector.broadcast %84 : vector<1x256xf32> to vector<4x256xf32>
    %87 = arith.addf %85, %86 : vector<4x256xf32>
    %c7 = arith.constant 7 : index
    %c0_67 = arith.constant 0 : index
    %c0_68 = arith.constant 0 : index
    %88 = vector.load %arg5[%c7, %c0_67, %c0_68] : memref<11x256x256xbf16, #tpu.memory_space<vmem>>, vector<1x256x256xbf16>
    %89 = vector.shape_cast %88 : vector<1x256x256xbf16> to vector<256x256xbf16>
    %c7_69 = arith.constant 7 : index
    %c0_70 = arith.constant 0 : index
    %c0_71 = arith.constant 0 : index
    %90 = vector.load %arg6[%c7_69, %c0_70, %c0_71] : memref<11x1x256xf32, #tpu.memory_space<vmem>>, vector<1x1x256xf32>
    %91 = vector.shape_cast %90 : vector<1x1x256xf32> to vector<1x256xf32>
    %cst_72 = arith.constant dense<0.000000e+00> : vector<4x256xf32>
    %92 = tpu.matmul %70, %89, %cst_72 {dimension_numbers = #tpu.dot_dimension_numbers<[1], [0], [0], [1], [0, 0, 1, 1], [], []>} : vector<4x256xbf16>, vector<256x256xbf16>, vector<4x256xf32> -> vector<4x256xf32>
    %93 = vector.broadcast %91 : vector<1x256xf32> to vector<4x256xf32>
    %94 = arith.addf %92, %93 : vector<4x256xf32>
    %95 = arith.addf %87, %94 : vector<4x256xf32>
    %cst_73 = arith.constant 0.000000e+00 : f32
    %96 = vector.broadcast %cst_73 : f32 to vector<4x256xf32>
    %97 = arith.maximumf %95, %96 : vector<4x256xf32>
    %98 = arith.truncf %97 : vector<4x256xf32> to vector<4x256xbf16>
    %c8 = arith.constant 8 : index
    %c0_74 = arith.constant 0 : index
    %c0_75 = arith.constant 0 : index
    %99 = vector.load %arg5[%c8, %c0_74, %c0_75] : memref<11x256x256xbf16, #tpu.memory_space<vmem>>, vector<1x256x256xbf16>
    %100 = vector.shape_cast %99 : vector<1x256x256xbf16> to vector<256x256xbf16>
    %c8_76 = arith.constant 8 : index
    %c0_77 = arith.constant 0 : index
    %c0_78 = arith.constant 0 : index
    %101 = vector.load %arg6[%c8_76, %c0_77, %c0_78] : memref<11x1x256xf32, #tpu.memory_space<vmem>>, vector<1x1x256xf32>
    %102 = vector.shape_cast %101 : vector<1x1x256xf32> to vector<1x256xf32>
    %cst_79 = arith.constant dense<0.000000e+00> : vector<4x256xf32>
    %103 = tpu.matmul %98, %100, %cst_79 {dimension_numbers = #tpu.dot_dimension_numbers<[1], [0], [0], [1], [0, 0, 1, 1], [], []>} : vector<4x256xbf16>, vector<256x256xbf16>, vector<4x256xf32> -> vector<4x256xf32>
    %104 = vector.broadcast %102 : vector<1x256xf32> to vector<4x256xf32>
    %105 = arith.addf %103, %104 : vector<4x256xf32>
    %cst_80 = arith.constant 0.000000e+00 : f32
    %106 = vector.broadcast %cst_80 : f32 to vector<4x256xf32>
    %107 = arith.maximumf %105, %106 : vector<4x256xf32>
    %108 = arith.truncf %107 : vector<4x256xf32> to vector<4x256xbf16>
    %c9 = arith.constant 9 : index
    %c0_81 = arith.constant 0 : index
    %c0_82 = arith.constant 0 : index
    %109 = vector.load %arg5[%c9, %c0_81, %c0_82] : memref<11x256x256xbf16, #tpu.memory_space<vmem>>, vector<1x256x256xbf16>
    %110 = vector.shape_cast %109 : vector<1x256x256xbf16> to vector<256x256xbf16>
    %c9_83 = arith.constant 9 : index
    %c0_84 = arith.constant 0 : index
    %c0_85 = arith.constant 0 : index
    %111 = vector.load %arg6[%c9_83, %c0_84, %c0_85] : memref<11x1x256xf32, #tpu.memory_space<vmem>>, vector<1x1x256xf32>
    %112 = vector.shape_cast %111 : vector<1x1x256xf32> to vector<1x256xf32>
    %cst_86 = arith.constant dense<0.000000e+00> : vector<4x256xf32>
    %113 = tpu.matmul %108, %110, %cst_86 {dimension_numbers = #tpu.dot_dimension_numbers<[1], [0], [0], [1], [0, 0, 1, 1], [], []>} : vector<4x256xbf16>, vector<256x256xbf16>, vector<4x256xf32> -> vector<4x256xf32>
    %114 = vector.broadcast %112 : vector<1x256xf32> to vector<4x256xf32>
    %115 = arith.addf %113, %114 : vector<4x256xf32>
    %c10 = arith.constant 10 : index
    %c0_87 = arith.constant 0 : index
    %c0_88 = arith.constant 0 : index
    %116 = vector.load %arg5[%c10, %c0_87, %c0_88] : memref<11x256x256xbf16, #tpu.memory_space<vmem>>, vector<1x256x256xbf16>
    %117 = vector.shape_cast %116 : vector<1x256x256xbf16> to vector<256x256xbf16>
    %c10_89 = arith.constant 10 : index
    %c0_90 = arith.constant 0 : index
    %c0_91 = arith.constant 0 : index
    %118 = vector.load %arg6[%c10_89, %c0_90, %c0_91] : memref<11x1x256xf32, #tpu.memory_space<vmem>>, vector<1x1x256xf32>
    %119 = vector.shape_cast %118 : vector<1x1x256xf32> to vector<1x256xf32>
    %cst_92 = arith.constant dense<0.000000e+00> : vector<4x256xf32>
    %120 = tpu.matmul %98, %117, %cst_92 {dimension_numbers = #tpu.dot_dimension_numbers<[1], [0], [0], [1], [0, 0, 1, 1], [], []>} : vector<4x256xbf16>, vector<256x256xbf16>, vector<4x256xf32> -> vector<4x256xf32>
    %121 = vector.broadcast %119 : vector<1x256xf32> to vector<4x256xf32>
    %122 = arith.addf %120, %121 : vector<4x256xf32>
    %123 = arith.addf %115, %122 : vector<4x256xf32>
    %cst_93 = arith.constant 0.000000e+00 : f32
    %124 = vector.broadcast %cst_93 : f32 to vector<4x256xf32>
    %125 = arith.maximumf %123, %124 : vector<4x256xf32>
    %126 = vector.extract_strided_slice %125 {offsets = [0, 0], sizes = [4, 128], strides = [1, 1]} : vector<4x256xf32> to vector<4x128xf32>
    %127 = vector.extract_strided_slice %125 {offsets = [0, 128], sizes = [4, 128], strides = [1, 1]} : vector<4x256xf32> to vector<4x128xf32>
    %128 = arith.maximumf %126, %127 : vector<4x128xf32>
    %129 = arith.truncf %128 : vector<4x128xf32> to vector<4x128xbf16>
    %c0_94 = arith.constant 0 : index
    %c0_95 = arith.constant 0 : index
    %130 = vector.load %arg7[%c0_94, %c0_95] : memref<128x128xbf16, #tpu.memory_space<vmem>>, vector<128x128xbf16>
    %c0_96 = arith.constant 0 : index
    %c0_97 = arith.constant 0 : index
    %131 = vector.load %arg8[%c0_96, %c0_97] : memref<1x128xf32, #tpu.memory_space<vmem>>, vector<1x128xf32>
    %cst_98 = arith.constant dense<0.000000e+00> : vector<4x128xf32>
    %132 = tpu.matmul %129, %130, %cst_98 {dimension_numbers = #tpu.dot_dimension_numbers<[1], [0], [0], [1], [0, 0, 1, 1], [], []>} : vector<4x128xbf16>, vector<128x128xbf16>, vector<4x128xf32> -> vector<4x128xf32>
    %133 = vector.broadcast %131 : vector<1x128xf32> to vector<4x128xf32>
    %134 = arith.addf %132, %133 : vector<4x128xf32>
    %c0_99 = arith.constant 0 : index
    %c0_100 = arith.constant 0 : index
    %c0_101 = arith.constant 0 : index
    %135 = vector.load %arg9[%c0_99, %c0_100, %c0_101] : memref<1x4x128xf32, #tpu.memory_space<vmem>>, vector<1x4x128xf32>
    %136 = vector.shape_cast %135 : vector<1x4x128xf32> to vector<4x128xf32>
    %137 = vector.shape_cast %134 : vector<4x128xf32> to vector<1x4x128xf32>
    tpu.vector_store %arg9[%c0_99, %c0_100, %c0_101], %137 {strides = array<i32>} : memref<1x4x128xf32, #tpu.memory_space<vmem>>, vector<1x4x128xf32>,
    return
  }
  func.func @transform_0(%arg0: i32) -> (i32, i32, i32) {
    %c0_i32 = arith.constant 0 : i32
    %c0_i32_0 = arith.constant 0 : i32
    %c0_i32_1 = arith.constant 0 : i32
    return %arg0, %c0_i32, %c0_i32_0 : i32, i32, i32
  }
  func.func @transform_1(%arg0: i32) -> (i32, i32) {
    %c0_i32 = arith.constant 0 : i32
    %c0_i32_0 = arith.constant 0 : i32
    %c0_i32_1 = arith.constant 0 : i32
    return %c0_i32, %c0_i32_0 : i32, i32
  }
  func.func @transform_2(%arg0: i32) -> (i32, i32) {
    %c0_i32 = arith.constant 0 : i32
    %c0_i32_0 = arith.constant 0 : i32
    %c0_i32_1 = arith.constant 0 : i32
    return %c0_i32, %c0_i32_0 : i32, i32
  }
  func.func @transform_3(%arg0: i32) -> (i32, i32, i32) {
    %c0_i32 = arith.constant 0 : i32
    %c0_i32_0 = arith.constant 0 : i32
    %c0_i32_1 = arith.constant 0 : i32
    %c0_i32_2 = arith.constant 0 : i32
    return %c0_i32, %c0_i32_0, %c0_i32_1 : i32, i32, i32
  }
  func.func @transform_4(%arg0: i32) -> (i32, i32, i32) {
    %c0_i32 = arith.constant 0 : i32
    %c0_i32_0 = arith.constant 0 : i32
    %c0_i32_1 = arith.constant 0 : i32
    %c0_i32_2 = arith.constant 0 : i32
    return %c0_i32, %c0_i32_0, %c0_i32_1 : i32, i32, i32
  }
  func.func @transform_5(%arg0: i32) -> (i32, i32, i32) {
    %c0_i32 = arith.constant 0 : i32
    %c0_i32_0 = arith.constant 0 : i32
    %c0_i32_1 = arith.constant 0 : i32
    %c0_i32_2 = arith.constant 0 : i32
    return %c0_i32, %c0_i32_0, %c0_i32_1 : i32, i32, i32
  }
  func.func @transform_6(%arg0: i32) -> (i32, i32) {
    %c0_i32 = arith.constant 0 : i32
    %c0_i32_0 = arith.constant 0 : i32
    %c0_i32_1 = arith.constant 0 : i32
    return %c0_i32, %c0_i32_0 : i32, i32
  }
  func.func @transform_7(%arg0: i32) -> (i32, i32) {
    %c0_i32 = arith.constant 0 : i32
    %c0_i32_0 = arith.constant 0 : i32
    %c0_i32_1 = arith.constant 0 : i32
    return %c0_i32, %c0_i32_0 : i32, i32
  }
  func.func @transform_8(%arg0: i32) -> (i32, i32, i32) {
    %c0_i32 = arith.constant 0 : i32
    %c0_i32_0 = arith.constant 0 : i32
    %c0_i32_1 = arith.constant 0 : i32
    return %arg0, %c0_i32, %c0_i32_0 : i32, i32, i32
  }
}

</mosaic_0001>

<llo_original>
// kernel: forward.1
$region0: #{forward.1}
  #allocation0 [shape = 'u32[]', space=smem, size = 0x4, offset = 0x4, fixed_abs, tag = 'smem constant byte address 0x4 - core index']
  #allocation1 [shape = 'u32[144,128]{1,0:T(1,128)}', space=vmem, size = 0x12000, scoped, tag = 'internal scratch']
  %s0 = inlined_call_operand.vmem [shape: bf16[2,4,256], index: 0, kind: input, shape index: {}]
  %s1 = inlined_call_operand.vmem [shape: bf16[256,512], index: 1, kind: input, shape index: {}]
  %s2 = inlined_call_operand.vmem [shape: f32[1,512], index: 2, kind: input, shape index: {}]
  %s3 = inlined_call_operand.vmem [shape: bf16[3,512,256], index: 3, kind: input, shape index: {}]
  %s4 = inlined_call_operand.vmem [shape: bf16[11,256,256], index: 4, kind: input, shape index: {}]
  %s5 = inlined_call_operand.vmem [shape: f32[11,1,256], index: 5, kind: input, shape index: {}]
  %s6 = inlined_call_operand.vmem [shape: bf16[128,128], index: 6, kind: input, shape index: {}]
  %s7 = inlined_call_operand.vmem [shape: f32[1,128], index: 7, kind: input, shape index: {}]
  %s8 = inlined_call_operand.vmem [shape: f32[2,4,128], index: 8, kind: output, shape index: {}]
  %s9 = sld [smem:[#allocation0]]
  $region65: #{forward.1} parent=0
    _
  %s11 = ssub.s32 1, %s9
  %s12 = scalar_select 0, %s11, %s9
  loop: start=0, step=1, limit=4
  $region2: #{forward.1} parent=0 // loop_pre_header
    _
  $region3: #{forward.1} parent=0 // loop_header
    %s14 = sphi 0, %s18
    %p15 = scmp.ge.s32.totalorder %s14, 4
    %s24 = sphi 0, %s26
    %s27 = sphi 0, %s24
    %s28 = sphi 0, %s27
    %s44 = sphi 0, %s28
    %s48 = sphi 0, %s48
    %s50 = sphi 0, %s48
    %s51 = sphi 0, %s50
    %s65 = sphi 0, %s51
    %s69 = sphi 0, %s69
    %s71 = sphi 0, %s69
    %s72 = sphi 0, %s71
    %s86 = sphi 0, %s72
    %s90 = sphi 0, %s90
    %s92 = sphi 0, %s90
    %s93 = sphi 0, %s92
    %s107 = sphi 0, %s93
    %s111 = sphi 0, %s111
    %s113 = sphi 0, %s111
    %s114 = sphi 0, %s113
    %s128 = sphi 0, %s114
    %s132 = sphi 0, %s132
    %s134 = sphi 0, %s132
    %s135 = sphi 0, %s134
    %s149 = sphi 0, %s135
    %s153 = sphi 0, %s153
    %s155 = sphi 0, %s153
    %s156 = sphi 0, %s155
    %s170 = sphi 0, %s156
    %s174 = sphi 0, %s174
    %s176 = sphi 0, %s174
    %s177 = sphi 0, %s176
    %s191 = sphi 0, %s177
    %s197 = sphi 0, %s199
    %s200 = sphi 0, %s197
    %s201 = sphi 0, %s200
    %s217 = sphi 0, %s201
  $region4: #{forward.1} parent=0 // loop_header_branch
    %17 = sbr.rel (%p15) target = $region8
  $region5: #{forward.1} parent=0 // loop_body
    %s19 = ssub.s32 %s14, 1
    %s20 = ssub.s32 %s14, 2
    %s21 = sadd.s32 %s14, 1
    %s22 = ssub.s32 %s14, %s21
    %p23 = scmp.eq.s32.totalorder %s22, 0
    %s25 = sadd.s32 %s24, 1
    %s26 = scalar_select %p23, %s24, %s25
    %p29 = pneg %p23
    %p30 = scmp.eq.s32.totalorder %s14, 1
    %p31 = por %p29, %p30
    %p32 = scmp.ne.s32.totalorder %s24, %s27
    %p33 = scmp.eq.s32.totalorder %s14, 0
    %p34 = por %p32, %p33
    %p35 = scmp.ne.s32.totalorder %s24, %s27
    %p36 = scmp.eq.s32.totalorder %s19, 1
    %p37 = por %p35, %p36
    %p38 = scmp.ne.s32.totalorder %s27, %s28
    %p39 = scmp.eq.s32.totalorder %s19, 0
    %p40 = por %p38, %p39
    %p41 = scmp.ne.s32.totalorder %s27, %s28
    %p42 = scmp.eq.s32.totalorder %s20, 1
    %p43 = por %p41, %p42
    %p45 = scmp.ne.s32.totalorder %s28, %s44
    %p46 = scmp.eq.s32.totalorder %s20, 0
    %p47 = por %p45, %p46
    %s49 = sadd.s32 %s48, 1
    %p52 = scmp.eq.s32.totalorder %s14, 1
    %p53 = scmp.ne.s32.totalorder %s48, %s50
    %p54 = scmp.eq.s32.totalorder %s14, 0
    %p55 = por %p53, %p54
    %p56 = scmp.ne.s32.totalorder %s48, %s50
    %p57 = scmp.eq.s32.totalorder %s19, 1
    %p58 = por %p56, %p57
    %p59 = scmp.ne.s32.totalorder %s50, %s51
    %p60 = scmp.eq.s32.totalorder %s19, 0
    %p61 = por %p59, %p60
    %p62 = scmp.ne.s32.totalorder %s50, %s51
    %p63 = scmp.eq.s32.totalorder %s20, 1
    %p64 = por %p62, %p63
    %p66 = scmp.ne.s32.totalorder %s51, %s65
    %p67 = scmp.eq.s32.totalorder %s20, 0
    %p68 = por %p66, %p67
    %s70 = sadd.s32 %s69, 1
    %p73 = scmp.eq.s32.totalorder %s14, 1
    %p74 = scmp.ne.s32.totalorder %s69, %s71
    %p75 = scmp.eq.s32.totalorder %s14, 0
    %p76 = por %p74, %p75
    %p77 = scmp.ne.s32.totalorder %s69, %s71
    %p78 = scmp.eq.s32.totalorder %s19, 1
    %p79 = por %p77, %p78
    %p80 = scmp.ne.s32.totalorder %s71, %s72
    %p81 = scmp.eq.s32.totalorder %s19, 0
    %p82 = por %p80, %p81
    %p83 = scmp.ne.s32.totalorder %s71, %s72
    %p84 = scmp.eq.s32.totalorder %s20, 1
    %p85 = por %p83, %p84
    %p87 = scmp.ne.s32.totalorder %s72, %s86
    %p88 = scmp.eq.s32.totalorder %s20, 0
    %p89 = por %p87, %p88
    %s91 = sadd.s32 %s90, 1
    %p94 = scmp.eq.s32.totalorder %s14, 1
    %p95 = scmp.ne.s32.totalorder %s90, %s92
    %p96 = scmp.eq.s32.totalorder %s14, 0
    %p97 = por %p95, %p96
    %p98 = scmp.ne.s32.totalorder %s90, %s92
    %p99 = scmp.eq.s32.totalorder %s19, 1
    %p100 = por %p98, %p99
    %p101 = scmp.ne.s32.totalorder %s92, %s93
    %p102 = scmp.eq.s32.totalorder %s19, 0
    %p103 = por %p101, %p102
    %p104 = scmp.ne.s32.totalorder %s92, %s93
    %p105 = scmp.eq.s32.totalorder %s20, 1
    %p106 = por %p104, %p105
    %p108 = scmp.ne.s32.totalorder %s93, %s107
    %p109 = scmp.eq.s32.totalorder %s20, 0
    %p110 = por %p108, %p109
    %s112 = sadd.s32 %s111, 1
    %p115 = scmp.eq.s32.totalorder %s14, 1
    %p116 = scmp.ne.s32.totalorder %s111, %s113
    %p117 = scmp.eq.s32.totalorder %s14, 0
    %p118 = por %p116, %p117
    %p119 = scmp.ne.s32.totalorder %s111, %s113
    %p120 = scmp.eq.s32.totalorder %s19, 1
    %p121 = por %p119, %p120
    %p122 = scmp.ne.s32.totalorder %s113, %s114
    %p123 = scmp.eq.s32.totalorder %s19, 0
    %p124 = por %p122, %p123
    %p125 = scmp.ne.s32.totalorder %s113, %s114
    %p126 = scmp.eq.s32.totalorder %s20, 1
    %p127 = por %p125, %p126
    %p129 = scmp.ne.s32.totalorder %s114, %s128
    %p130 = scmp.eq.s32.totalorder %s20, 0
    %p131 = por %p129, %p130
    %s133 = sadd.s32 %s132, 1
    %p136 = scmp.eq.s32.totalorder %s14, 1
    %p137 = scmp.ne.s32.totalorder %s132, %s134
    %p138 = scmp.eq.s32.totalorder %s14, 0
    %p139 = por %p137, %p138
    %p140 = scmp.ne.s32.totalorder %s132, %s134
    %p141 = scmp.eq.s32.totalorder %s19, 1
    %p142 = por %p140, %p141
    %p143 = scmp.ne.s32.totalorder %s134, %s135
    %p144 = scmp.eq.s32.totalorder %s19, 0
    %p145 = por %p143, %p144
    %p146 = scmp.ne.s32.totalorder %s134, %s135
    %p147 = scmp.eq.s32.totalorder %s20, 1
    %p148 = por %p146, %p147
    %p150 = scmp.ne.s32.totalorder %s135, %s149
    %p151 = scmp.eq.s32.totalorder %s20, 0
    %p152 = por %p150, %p151
    %s154 = sadd.s32 %s153, 1
    %p157 = scmp.eq.s32.totalorder %s14, 1
    %p158 = scmp.ne.s32.totalorder %s153, %s155
    %p159 = scmp.eq.s32.totalorder %s14, 0
    %p160 = por %p158, %p159
    %p161 = scmp.ne.s32.totalorder %s153, %s155
    %p162 = scmp.eq.s32.totalorder %s19, 1
    %p163 = por %p161, %p162
    %p164 = scmp.ne.s32.totalorder %s155, %s156
    %p165 = scmp.eq.s32.totalorder %s19, 0
    %p166 = por %p164, %p165
    %p167 = scmp.ne.s32.totalorder %s155, %s156
    %p168 = scmp.eq.s32.totalorder %s20, 1
    %p169 = por %p167, %p168
    %p171 = scmp.ne.s32.totalorder %s156, %s170
    %p172 = scmp.eq.s32.totalorder %s20, 0
    %p173 = por %p171, %p172
    %s175 = sadd.s32 %s174, 1
    %p178 = scmp.eq.s32.totalorder %s14, 1
    %p179 = scmp.ne.s32.totalorder %s174, %s176
    %p180 = scmp.eq.s32.totalorder %s14, 0
    %p181 = por %p179, %p180
    %p182 = scmp.ne.s32.totalorder %s174, %s176
    %p183 = scmp.eq.s32.totalorder %s19, 1
    %p184 = por %p182, %p183
    %p185 = scmp.ne.s32.totalorder %s176, %s177
    %p186 = scmp.eq.s32.totalorder %s19, 0
    %p187 = por %p185, %p186
    %p188 = scmp.ne.s32.totalorder %s176, %s177
    %p189 = scmp.eq.s32.totalorder %s20, 1
    %p190 = por %p188, %p189
    %p192 = scmp.ne.s32.totalorder %s177, %s191
    %p193 = scmp.eq.s32.totalorder %s20, 0
    %p194 = por %p192, %p193
    %s195 = ssub.s32 %s14, %s21
    %p196 = scmp.eq.s32.totalorder %s195, 0
    %s198 = sadd.s32 %s197, 1
    %s199 = scalar_select %p196, %s197, %s198
    %p202 = pneg %p196
    %p203 = scmp.eq.s32.totalorder %s14, 1
    %p204 = por %p202, %p203
    %p205 = scmp.ne.s32.totalorder %s197, %s200
    %p206 = scmp.eq.s32.totalorder %s14, 0
    %p207 = por %p205, %p206
    %p208 = scmp.ne.s32.totalorder %s197, %s200
    %p209 = scmp.eq.s32.totalorder %s19, 1
    %p210 = por %p208, %p209
    %p211 = scmp.ne.s32.totalorder %s200, %s201
    %p212 = scmp.eq.s32.totalorder %s19, 0
    %p213 = por %p211, %p212
    %p214 = scmp.ne.s32.totalorder %s200, %s201
    %p215 = scmp.eq.s32.totalorder %s20, 1
    %p216 = por %p214, %p215
    %p218 = scmp.ne.s32.totalorder %s201, %s217
    %p219 = scmp.eq.s32.totalorder %s20, 0
    %p220 = por %p218, %p219
    %p221 = scmp.le.s32.totalorder 1, %s14
    %p222 = scmp.lt.s32.totalorder %s14, 3
    %p223 = pnand %p221, %p222
    %p224 = pneg %p223
    // Predicated region
    $region9: #{forward.1} parent=5 // pred_check
      _
    $region10: #{forward.1} parent=5 // pred_check_branch
      %226 = sbr.rel (%p223) target = $region12
    $region11: #{forward.1} parent=5 // pred_region
      %s227 = ssub.s32 %s14, 1
      // Predicated region
      $region13: #{forward.1} parent=11 // pred_check
        %p228 = pneg %p61
      $region14: #{forward.1} parent=11 // pred_check_branch
        %230 = sbr.rel (%p228) target = $region16
      $region15: #{forward.1} parent=11 // pred_region
        _
      $region16: #{forward.1} parent=11 // pred_fallthru
        _
      // Predicated region
      $region17: #{forward.1} parent=11 // pred_check
        %p231 = pneg %p82
      $region18: #{forward.1} parent=11 // pred_check_branch
        %233 = sbr.rel (%p231) target = $region20
      $region19: #{forward.1} parent=11 // pred_region
        _
      $region20: #{forward.1} parent=11 // pred_fallthru
        _
      // Predicated region
      $region21: #{forward.1} parent=11 // pred_check
        %p234 = pneg %p103
      $region22: #{forward.1} parent=11 // pred_check_branch
        %236 = sbr.rel (%p234) target = $region24
      $region23: #{forward.1} parent=11 // pred_region
        _
      $region24: #{forward.1} parent=11 // pred_fallthru
        _
      // Predicated region
      $region25: #{forward.1} parent=11 // pred_check
        %p237 = pneg %p124
      $region26: #{forward.1} parent=11 // pred_check_branch
        %239 = sbr.rel (%p237) target = $region28
      $region27: #{forward.1} parent=11 // pred_region
        _
      $region28: #{forward.1} parent=11 // pred_fallthru
        _
      // Predicated region
      $region29: #{forward.1} parent=11 // pred_check
        %p240 = pneg %p145
      $region30: #{forward.1} parent=11 // pred_check_branch
        %242 = sbr.rel (%p240) target = $region32
      $region31: #{forward.1} parent=11 // pred_region
        _
      $region32: #{forward.1} parent=11 // pred_fallthru
        _
      // Predicated region
      $region33: #{forward.1} parent=11 // pred_check
        %p243 = pneg %p166
      $region34: #{forward.1} parent=11 // pred_check_branch
        %245 = sbr.rel (%p243) target = $region36
      $region35: #{forward.1} parent=11 // pred_region
        _
      $region36: #{forward.1} parent=11 // pred_fallthru
        _
      // Predicated region
      $region37: #{forward.1} parent=11 // pred_check
        %p246 = pneg %p187
      $region38: #{forward.1} parent=11 // pred_check_branch
        %248 = sbr.rel (%p246) target = $region40
      $region39: #{forward.1} parent=11 // pred_region
        _
      $region40: #{forward.1} parent=11 // pred_fallthru
        _
    $region12: #{forward.1} parent=5 // pred_fallthru
      _
    %p249 = scmp.lt.s32.totalorder %s14, 2
    // Predicated region
    $region41: #{forward.1} parent=5 // pred_check
      %p250 = pneg %p249
    $region42: #{forward.1} parent=5 // pred_check_branch
      %252 = sbr.rel (%p250) target = $region44
    $region43: #{forward.1} parent=5 // pred_region
      // Predicated region
      $region45: #{forward.1} parent=43 // pred_check
        %p253 = pneg %p34
      $region46: #{forward.1} parent=43 // pred_check_branch
        %255 = sbr.rel (%p253) target = $region48
      $region47: #{forward.1} parent=43 // pred_region
        %p256 = scmp.lt.s32.totalorder %s14, 1
        %s257 = scalar_select %p256, %s14, 1
        %s258 = smul.addr %s257, 2
        %s259 = smul.addr %s258, 2
        %s260 = scalar_lea.vmem %s0, %s259
      $region48: #{forward.1} parent=43 // pred_fallthru
        _
    $region44: #{forward.1} parent=5 // pred_fallthru
      _
    %p261 = scmp.le.s32.totalorder 1, %s14
    %p262 = scmp.lt.s32.totalorder %s14, 3
    %p263 = pnand %p261, %p262
    %p264 = pneg %p263
    // Predicated region
    $region49: #{forward.1} parent=5 // pred_check
      _
    $region50: #{forward.1} parent=5 // pred_check_branch
      %266 = sbr.rel (%p263) target = $region52
    $region51: #{forward.1} parent=5 // pred_region
      %s267 = ssub.s32 %s14, 1
      %p268 = scmp.lt.s32.totalorder %s19, 1
      %s269 = scalar_select %p268, %s19, 1
      %s270 = smul.addr %s269, 2
      %s271 = smul.addr %s270, 2
      %s272 = scalar_lea.vmem %s0, %s271
      %p273 = pneg %p40
      %p274 = pneg %p37
      %p275 = pneg %p61
      %p276 = pneg %p58
      %p277 = pneg %p82
      %p278 = pneg %p79
      %p279 = pneg %p103
      %p280 = pneg %p100
      %p281 = pneg %p124
      %p282 = pneg %p121
      %p283 = pneg %p145
      %p284 = pneg %p142
      %p285 = pneg %p166
      %p286 = pneg %p163
      %p287 = pneg %p187
      %p288 = pneg %p184
      %p289 = pneg %p213
      %p290 = pneg %p210
      %p291 = scmp.lt.s32.totalorder %s19, 1
      %s292 = scalar_select %p291, %s19, 1
      %s293 = smul.addr %s292, 4
      %s294 = scalar_lea.vmem %s8, %s293
      %p295 = scmp.lt.s32.totalorder %s19, 1
      %s296 = scalar_select %p295, %s19, 1
      %s297 = smul.addr %s296, 2
      %s298 = smul.addr %s297, 2
      %s299 = scalar_lea.vmem %s0, %s298
      %p300 = scmp.lt.s32.totalorder %s19, 1
      %s301 = scalar_select %p300, %s19, 1
      %s302 = smul.addr %s301, 4
      %s303 = scalar_lea.vmem %s8, %s302
      %v305 = vld [vmem:[%s299] sm:$0xf]
      %v306 = vld [vmem:[%s1] sm:$0xff]
      %v307 = vld [vmem:[%s1 + $0x8] sm:$0xff]
      %v308 = vld [vmem:[%s1 + $0x10] sm:$0xff]
      %v309 = vld [vmem:[%s1 + $0x18] sm:$0xff]
      %v310 = vld [vmem:[%s1 + $0x20] sm:$0xff]
      %v311 = vld [vmem:[%s1 + $0x28] sm:$0xff]
      %v312 = vld [vmem:[%s1 + $0x30] sm:$0xff]
      %v313 = vld [vmem:[%s1 + $0x38] sm:$0xff]
      %v314 = vld [vmem:[%s1 + $0x40] sm:$0xff]
      %v315 = vld [vmem:[%s1 + $0x48] sm:$0xff]
      %v316 = vld [vmem:[%s1 + $0x50] sm:$0xff]
      %v317 = vld [vmem:[%s1 + $0x58] sm:$0xff]
      %v318 = vld [vmem:[%s1 + $0x60] sm:$0xff]
      %v319 = vld [vmem:[%s1 + $0x68] sm:$0xff]
      %v320 = vld [vmem:[%s1 + $0x70] sm:$0xff]
      %v321 = vld [vmem:[%s1 + $0x78] sm:$0xff]
      %v322 = vld [vmem:[%s1 + $0x80] sm:$0xff]
      %v323 = vld [vmem:[%s1 + $0x88] sm:$0xff]
      %v324 = vld [vmem:[%s1 + $0x90] sm:$0xff]
      %v325 = vld [vmem:[%s1 + $0x98] sm:$0xff]
      %v326 = vld [vmem:[%s1 + $0xa0] sm:$0xff]
      %v327 = vld [vmem:[%s1 + $0xa8] sm:$0xff]
      %v328 = vld [vmem:[%s1 + $0xb0] sm:$0xff]
      %v329 = vld [vmem:[%s1 + $0xb8] sm:$0xff]
      %v330 = vld [vmem:[%s1 + $0xc0] sm:$0xff]
      %v331 = vld [vmem:[%s1 + $0xc8] sm:$0xff]
      %v332 = vld [vmem:[%s1 + $0xd0] sm:$0xff]
      %v333 = vld [vmem:[%s1 + $0xd8] sm:$0xff]
      %v334 = vld [vmem:[%s1 + $0xe0] sm:$0xff]
      %v335 = vld [vmem:[%s1 + $0xe8] sm:$0xff]
      %v336 = vld [vmem:[%s1 + $0xf0] sm:$0xff]
      %v337 = vld [vmem:[%s1 + $0xf8] sm:$0xff]
      %v338 = vld [vmem:[%s1 + $0x100] sm:$0xff]
      %v339 = vld [vmem:[%s1 + $0x108] sm:$0xff]
      %v340 = vld [vmem:[%s1 + $0x110] sm:$0xff]
      %v341 = vld [vmem:[%s1 + $0x118] sm:$0xff]
      %v342 = vld [vmem:[%s1 + $0x120] sm:$0xff]
      %v343 = vld [vmem:[%s1 + $0x128] sm:$0xff]
      %v344 = vld [vmem:[%s1 + $0x130] sm:$0xff]
      %v345 = vld [vmem:[%s1 + $0x138] sm:$0xff]
      %v346 = vld [vmem:[%s1 + $0x140] sm:$0xff]
      %v347 = vld [vmem:[%s1 + $0x148] sm:$0xff]
      %v348 = vld [vmem:[%s1 + $0x150] sm:$0xff]
      %v349 = vld [vmem:[%s1 + $0x158] sm:$0xff]
      %v350 = vld [vmem:[%s1 + $0x160] sm:$0xff]
      %v351 = vld [vmem:[%s1 + $0x168] sm:$0xff]
      %v352 = vld [vmem:[%s1 + $0x170] sm:$0xff]
      %v353 = vld [vmem:[%s1 + $0x178] sm:$0xff]
      %v354 = vld [vmem:[%s1 + $0x180] sm:$0xff]
      %v355 = vld [vmem:[%s1 + $0x188] sm:$0xff]
      %v356 = vld [vmem:[%s1 + $0x190] sm:$0xff]
      %v357 = vld [vmem:[%s1 + $0x198] sm:$0xff]
      %v358 = vld [vmem:[%s1 + $0x1a0] sm:$0xff]
      %v359 = vld [vmem:[%s1 + $0x1a8] sm:$0xff]
      %v360 = vld [vmem:[%s1 + $0x1b0] sm:$0xff]
      %v361 = vld [vmem:[%s1 + $0x1b8] sm:$0xff]
      %v362 = vld [vmem:[%s1 + $0x1c0] sm:$0xff]
      %v363 = vld [vmem:[%s1 + $0x1c8] sm:$0xff]
      %v364 = vld [vmem:[%s1 + $0x1d0] sm:$0xff]
      %v365 = vld [vmem:[%s1 + $0x1d8] sm:$0xff]
      %v366 = vld [vmem:[%s1 + $0x1e0] sm:$0xff]
      %v367 = vld [vmem:[%s1 + $0x1e8] sm:$0xff]
      %v368 = vld [vmem:[%s1 + $0x1f0] sm:$0xff]
      %v369 = vld [vmem:[%s1 + $0x1f8] sm:$0xff]
      %v370 = vld [vmem:[%s2] sm:$0xf]
      %v372 = vlaneseq
      %v373 = vshrl.u32 %v372, 7
      %v374 = vsub.s32 0, %v373
      %v375 = vrot.slane %v370, %v374
      %v376 = vlaneseq
      %v377 = vshrl.u32 %v376, 7
      %v378 = vsub.s32 1, %v377
      %v379 = vrot.slane %v370, %v378
      %v380 = vlaneseq
      %v381 = vshrl.u32 %v380, 7
      %v382 = vsub.s32 2, %v381
      %v383 = vrot.slane %v370, %v382
      %v384 = vlaneseq
      %v385 = vshrl.u32 %v384, 7
      %v386 = vsub.s32 3, %v385
      %v387 = vrot.slane %v370, %v386
      %v394 = vunpack.c.l.s4 1983009808
      %v395 = vunpack.c.0.s8 %v394
      %v396 = vlaneseq
      %v397 = vshrl.u32 %v396, 7
      %v398 = vsub.s32 %v395, %v397
      %v399 = vrot.slane %v305, %v398
      %v400 = vcombine.high %v399, %v399
      %v467 = vunpack.c.l.b16 %v306
      %v468 = vunpack.c.h.b16 %v306
      %v469 = vunpack.c.l.b16 %v307
      %v470 = vunpack.c.h.b16 %v307
      %v471 = vunpack.c.l.b16 %v308
      %v472 = vunpack.c.h.b16 %v308
      %v473 = vunpack.c.l.b16 %v309
      %v474 = vunpack.c.h.b16 %v309
      %v475 = vunpack.c.l.b16 %v310
      %v476 = vunpack.c.h.b16 %v310
      %v477 = vunpack.c.l.b16 %v311
      %v478 = vunpack.c.h.b16 %v311
      %v479 = vunpack.c.l.b16 %v312
      %v480 = vunpack.c.h.b16 %v312
      %v481 = vunpack.c.l.b16 %v313
      %v482 = vunpack.c.h.b16 %v313
      %v483 = vunpack.c.l.b16 %v314
      %v484 = vunpack.c.h.b16 %v314
      %v485 = vunpack.c.l.b16 %v315
      %v486 = vunpack.c.h.b16 %v315
      %v487 = vunpack.c.l.b16 %v316
      %v488 = vunpack.c.h.b16 %v316
      %v489 = vunpack.c.l.b16 %v317
      %v490 = vunpack.c.h.b16 %v317
      %v491 = vunpack.c.l.b16 %v318
      %v492 = vunpack.c.h.b16 %v318
      %v493 = vunpack.c.l.b16 %v319
      %v494 = vunpack.c.h.b16 %v319
      %v495 = vunpack.c.l.b16 %v320
      %v496 = vunpack.c.h.b16 %v320
      %v497 = vunpack.c.l.b16 %v321
      %v498 = vunpack.c.h.b16 %v321
      %v499 = vunpack.c.l.b16 %v322
      %v500 = vunpack.c.h.b16 %v322
      %v501 = vunpack.c.l.b16 %v323
      %v502 = vunpack.c.h.b16 %v323
      %v503 = vunpack.c.l.b16 %v324
      %v504 = vunpack.c.h.b16 %v324
      %v505 = vunpack.c.l.b16 %v325
      %v506 = vunpack.c.h.b16 %v325
      %v507 = vunpack.c.l.b16 %v326
      %v508 = vunpack.c.h.b16 %v326
      %v509 = vunpack.c.l.b16 %v327
      %v510 = vunpack.c.h.b16 %v327
      %v511 = vunpack.c.l.b16 %v328
      %v512 = vunpack.c.h.b16 %v328
      %v513 = vunpack.c.l.b16 %v329
      %v514 = vunpack.c.h.b16 %v329
      %v515 = vunpack.c.l.b16 %v330
      %v516 = vunpack.c.h.b16 %v330
      %v517 = vunpack.c.l.b16 %v331
      %v518 = vunpack.c.h.b16 %v331
      %v519 = vunpack.c.l.b16 %v332
      %v520 = vunpack.c.h.b16 %v332
      %v521 = vunpack.c.l.b16 %v333
      %v522 = vunpack.c.h.b16 %v333
      %v523 = vunpack.c.l.b16 %v334
      %v524 = vunpack.c.h.b16 %v334
      %v525 = vunpack.c.l.b16 %v335
      %v526 = vunpack.c.h.b16 %v335
      %v527 = vunpack.c.l.b16 %v336
      %v528 = vunpack.c.h.b16 %v336
      %v529 = vunpack.c.l.b16 %v337
      %v530 = vunpack.c.h.b16 %v337
      %v531 = vunpack.c.l.b16 %v338
      %v532 = vunpack.c.h.b16 %v338
      %v533 = vunpack.c.l.b16 %v339
      %v534 = vunpack.c.h.b16 %v339
      %v535 = vunpack.c.l.b16 %v340
      %v536 = vunpack.c.h.b16 %v340
      %v537 = vunpack.c.l.b16 %v341
      %v538 = vunpack.c.h.b16 %v341
      %v539 = vunpack.c.l.b16 %v342
      %v540 = vunpack.c.h.b16 %v342
      %v541 = vunpack.c.l.b16 %v343
      %v542 = vunpack.c.h.b16 %v343
      %v543 = vunpack.c.l.b16 %v344
      %v544 = vunpack.c.h.b16 %v344
      %v545 = vunpack.c.l.b16 %v345
      %v546 = vunpack.c.h.b16 %v345
      %v547 = vunpack.c.l.b16 %v346
      %v548 = vunpack.c.h.b16 %v346
      %v549 = vunpack.c.l.b16 %v347
      %v550 = vunpack.c.h.b16 %v347
      %v551 = vunpack.c.l.b16 %v348
      %v552 = vunpack.c.h.b16 %v348
      %v553 = vunpack.c.l.b16 %v349
      %v554 = vunpack.c.h.b16 %v349
      %v555 = vunpack.c.l.b16 %v350
      %v556 = vunpack.c.h.b16 %v350
      %v557 = vunpack.c.l.b16 %v351
      %v558 = vunpack.c.h.b16 %v351
      %v559 = vunpack.c.l.b16 %v352
      %v560 = vunpack.c.h.b16 %v352
      %v561 = vunpack.c.l.b16 %v353
      %v562 = vunpack.c.h.b16 %v353
      %v563 = vunpack.c.l.b16 %v354
      %v564 = vunpack.c.h.b16 %v354
      %v565 = vunpack.c.l.b16 %v355
      %v566 = vunpack.c.h.b16 %v355
      %v567 = vunpack.c.l.b16 %v356
      %v568 = vunpack.c.h.b16 %v356
      %v569 = vunpack.c.l.b16 %v357
      %v570 = vunpack.c.h.b16 %v357
      %v571 = vunpack.c.l.b16 %v358
      %v572 = vunpack.c.h.b16 %v358
      %v573 = vunpack.c.l.b16 %v359
      %v574 = vunpack.c.h.b16 %v359
      %v575 = vunpack.c.l.b16 %v360
      %v576 = vunpack.c.h.b16 %v360
      %v577 = vunpack.c.l.b16 %v361
      %v578 = vunpack.c.h.b16 %v361
      %v579 = vunpack.c.l.b16 %v362
      %v580 = vunpack.c.h.b16 %v362
      %v581 = vunpack.c.l.b16 %v363
      %v582 = vunpack.c.h.b16 %v363
      %v583 = vunpack.c.l.b16 %v364
      %v584 = vunpack.c.h.b16 %v364
      %v585 = vunpack.c.l.b16 %v365
      %v586 = vunpack.c.h.b16 %v365
      %v587 = vunpack.c.l.b16 %v366
      %v588 = vunpack.c.h.b16 %v366
      %v589 = vunpack.c.l.b16 %v367
      %v590 = vunpack.c.h.b16 %v367
      %v591 = vunpack.c.l.b16 %v368
      %v592 = vunpack.c.h.b16 %v368
      %v593 = vunpack.c.l.b16 %v369
      %v594 = vunpack.c.h.b16 %v369
      %v595 = vpack.c.b16 %v471, %v467
      %v596 = vpack.c.b16 %v472, %v468
      %v597 = vpack.c.b16 %v473, %v469
      %v598 = vpack.c.b16 %v474, %v470
      %v599 = vpack.c.b16 %v479, %v475
      %v600 = vpack.c.b16 %v480, %v476
      %v601 = vpack.c.b16 %v481, %v477
      %v602 = vpack.c.b16 %v482, %v478
      %v603 = vpack.c.b16 %v487, %v483
      %v604 = vpack.c.b16 %v488, %v484
      %v605 = vpack.c.b16 %v489, %v485
      %v606 = vpack.c.b16 %v490, %v486
      %v607 = vpack.c.b16 %v495, %v491
      %v608 = vpack.c.b16 %v496, %v492
      %v609 = vpack.c.b16 %v497, %v493
      %v610 = vpack.c.b16 %v498, %v494
      %v611 = vpack.c.b16 %v503, %v499
      %v612 = vpack.c.b16 %v504, %v500
      %v613 = vpack.c.b16 %v505, %v501
      %v614 = vpack.c.b16 %v506, %v502
      %v615 = vpack.c.b16 %v511, %v507
      %v616 = vpack.c.b16 %v512, %v508
      %v617 = vpack.c.b16 %v513, %v509
      %v618 = vpack.c.b16 %v514, %v510
      %v619 = vpack.c.b16 %v519, %v515
      %v620 = vpack.c.b16 %v520, %v516
      %v621 = vpack.c.b16 %v521, %v517
      %v622 = vpack.c.b16 %v522, %v518
      %v623 = vpack.c.b16 %v527, %v523
      %v624 = vpack.c.b16 %v528, %v524
      %v625 = vpack.c.b16 %v529, %v525
      %v626 = vpack.c.b16 %v530, %v526
      %v627 = vpack.c.b16 %v535, %v531
      %v628 = vpack.c.b16 %v536, %v532
      %v629 = vpack.c.b16 %v537, %v533
      %v630 = vpack.c.b16 %v538, %v534
      %v631 = vpack.c.b16 %v543, %v539
      %v632 = vpack.c.b16 %v544, %v540
      %v633 = vpack.c.b16 %v545, %v541
      %v634 = vpack.c.b16 %v546, %v542
      %v635 = vpack.c.b16 %v551, %v547
      %v636 = vpack.c.b16 %v552, %v548
      %v637 = vpack.c.b16 %v553, %v549
      %v638 = vpack.c.b16 %v554, %v550
      %v639 = vpack.c.b16 %v559, %v555
      %v640 = vpack.c.b16 %v560, %v556
      %v641 = vpack.c.b16 %v561, %v557
      %v642 = vpack.c.b16 %v562, %v558
      %v643 = vpack.c.b16 %v567, %v563
      %v644 = vpack.c.b16 %v568, %v564
      %v645 = vpack.c.b16 %v569, %v565
      %v646 = vpack.c.b16 %v570, %v566
      %v647 = vpack.c.b16 %v575, %v571
      %v648 = vpack.c.b16 %v576, %v572
      %v649 = vpack.c.b16 %v577, %v573
      %v650 = vpack.c.b16 %v578, %v574
      %v651 = vpack.c.b16 %v583, %v579
      %v652 = vpack.c.b16 %v584, %v580
      %v653 = vpack.c.b16 %v585, %v581
      %v654 = vpack.c.b16 %v586, %v582
      %v655 = vpack.c.b16 %v591, %v587
      %v656 = vpack.c.b16 %v592, %v588
      %v657 = vpack.c.b16 %v593, %v589
      %v658 = vpack.c.b16 %v594, %v590
      %723 = vmatprep.subr.bf16.mxu0 %v596
      %724 = vmatpush1.bf16.msra.mxu0 %v595
      %725 = vmatprep.subr.bf16.mxu0 %v600
      %726 = vmatpush1.bf16.msra.mxu0 %v599
      %727 = vmatprep.subr.bf16.mxu0 %v604
      %728 = vmatpush1.bf16.msra.mxu0 %v603
      %729 = vmatprep.subr.bf16.mxu0 %v608
      %730 = vmatpush1.bf16.msra.mxu0 %v607
      %731 = vmatprep.subr.bf16.mxu0 %v612
      %732 = vmatpush1.bf16.msra.mxu0 %v611
      %733 = vmatprep.subr.bf16.mxu0 %v616
      %734 = vmatpush1.bf16.msra.mxu0 %v615
      %735 = vmatprep.subr.bf16.mxu0 %v620
      %736 = vmatpush1.bf16.msra.mxu0 %v619
      %737 = vmatprep.subr.bf16.mxu0 %v624
      %738 = vmatpush1.bf16.msra.mxu0 %v623
      %739 = vmatprep.subr.bf16.mxu0 %v628
      %740 = vmatpush1.bf16.msra.mxu0 %v627
      %741 = vmatprep.subr.bf16.mxu0 %v632
      %742 = vmatpush1.bf16.msra.mxu0 %v631
      %743 = vmatprep.subr.bf16.mxu0 %v636
      %744 = vmatpush1.bf16.msra.mxu0 %v635
      %745 = vmatprep.subr.bf16.mxu0 %v640
      %746 = vmatpush1.bf16.msra.mxu0 %v639
      %747 = vmatprep.subr.bf16.mxu0 %v644
      %748 = vmatpush1.bf16.msra.mxu0 %v643
      %749 = vmatprep.subr.bf16.mxu0 %v648
      %750 = vmatpush1.bf16.msra.mxu0 %v647
      %751 = vmatprep.subr.bf16.mxu0 %v652
      %752 = vmatpush1.bf16.msra.mxu0 %v651
      %753 = vmatprep.subr.bf16.mxu0 %v656
      %754 = vmatpush1.bf16.msra.mxu0 %v655
      %755 = vmatprep.mubr.bf16.mxu0 %v400
      %756 = vmatmul.mubr.bf16.gmra.mrb[0].mxu0 %v399
      %v757 = vpop.f32.mrb[0].mxu0
      %v758 = vadd.f32 %v375, %v757
      %v759 = vpop.f32.mrb[0].mxu0
      %v760 = vadd.f32 %v379, %v759
      %v761 = vpop.f32.mrb[0].mxu0
      %v762 = vpop.f32.mrb[0].mxu0
      %763 = vdwg.mxu0
      %764 = vmatprep.subr.bf16.mxu0 %v598
      %765 = vmatpush1.bf16.msra.mxu0 %v597
      %766 = vmatprep.subr.bf16.mxu0 %v602
      %767 = vmatpush1.bf16.msra.mxu0 %v601
      %768 = vmatprep.subr.bf16.mxu0 %v606
      %769 = vmatpush1.bf16.msra.mxu0 %v605
      %770 = vmatprep.subr.bf16.mxu0 %v610
      %771 = vmatpush1.bf16.msra.mxu0 %v609
      %772 = vmatprep.subr.bf16.mxu0 %v614
      %773 = vmatpush1.bf16.msra.mxu0 %v613
      %774 = vmatprep.subr.bf16.mxu0 %v618
      %775 = vmatpush1.bf16.msra.mxu0 %v617
      %776 = vmatprep.subr.bf16.mxu0 %v622
      %777 = vmatpush1.bf16.msra.mxu0 %v621
      %778 = vmatprep.subr.bf16.mxu0 %v626
      %779 = vmatpush1.bf16.msra.mxu0 %v625
      %780 = vmatprep.subr.bf16.mxu0 %v630
      %781 = vmatpush1.bf16.msra.mxu0 %v629
      %782 = vmatprep.subr.bf16.mxu0 %v634
      %783 = vmatpush1.bf16.msra.mxu0 %v633
      %784 = vmatprep.subr.bf16.mxu0 %v638
      %785 = vmatpush1.bf16.msra.mxu0 %v637
      %786 = vmatprep.subr.bf16.mxu0 %v642
      %787 = vmatpush1.bf16.msra.mxu0 %v641
      %788 = vmatprep.subr.bf16.mxu0 %v646
      %789 = vmatpush1.bf16.msra.mxu0 %v645
      %790 = vmatprep.subr.bf16.mxu0 %v650
      %791 = vmatpush1.bf16.msra.mxu0 %v649
      %792 = vmatprep.subr.bf16.mxu0 %v654
      %793 = vmatpush1.bf16.msra.mxu0 %v653
      %794 = vmatprep.subr.bf16.mxu0 %v658
      %795 = vmatpush1.bf16.msra.mxu0 %v657
      %796 = vmatprep.mubr.bf16.mxu0 %v400
      %797 = vmatmul.mubr.bf16.gmra.mrb[0].mxu0 %v399
      %v798 = vpop.f32.mrb[0].mxu0
      %v799 = vadd.f32 %v383, %v798
      %v800 = vpop.f32.mrb[0].mxu0
      %v801 = vadd.f32 %v387, %v800
      %v802 = vpop.f32.mrb[0].mxu0
      %v803 = vpop.f32.mrb[0].mxu0
      %804 = vdwg.mxu0
      %v805 = vmax.f32 %v758, 0.0
      %v806 = vmax.f32 %v760, 0.0
      %v807 = vmax.f32 %v799, 0.0
      %v808 = vmax.f32 %v801, 0.0
      %v809 = vpack.c.bf16 %v805, %v805
      %v810 = vpack.c.bf16 %v806, %v806
      %v811 = vpack.c.bf16 %v807, %v807
      %v812 = vpack.c.bf16 %v808, %v808
      %v813 = vld [vmem:[%s3] sm:$0xff]
      %v814 = vld [vmem:[%s3 + $0x8] sm:$0xff]
      %v815 = vld [vmem:[%s3 + $0x10] sm:$0xff]
      %v816 = vld [vmem:[%s3 + $0x18] sm:$0xff]
      %v817 = vld [vmem:[%s3 + $0x20] sm:$0xff]
      %v818 = vld [vmem:[%s3 + $0x28] sm:$0xff]
      %v819 = vld [vmem:[%s3 + $0x30] sm:$0xff]
      %v820 = vld [vmem:[%s3 + $0x38] sm:$0xff]
      %v821 = vld [vmem:[%s3 + $0x40] sm:$0xff]
      %v822 = vld [vmem:[%s3 + $0x48] sm:$0xff]
      %v823 = vld [vmem:[%s3 + $0x50] sm:$0xff]
      %v824 = vld [vmem:[%s3 + $0x58] sm:$0xff]
      %v825 = vld [vmem:[%s3 + $0x60] sm:$0xff]
      %v826 = vld [vmem:[%s3 + $0x68] sm:$0xff]
      %v827 = vld [vmem:[%s3 + $0x70] sm:$0xff]
      %v828 = vld [vmem:[%s3 + $0x78] sm:$0xff]
      %v829 = vld [vmem:[%s3 + $0x80] sm:$0xff]
      %v830 = vld [vmem:[%s3 + $0x88] sm:$0xff]
      %v831 = vld [vmem:[%s3 + $0x90] sm:$0xff]
      %v832 = vld [vmem:[%s3 + $0x98] sm:$0xff]
      %v833 = vld [vmem:[%s3 + $0xa0] sm:$0xff]
      %v834 = vld [vmem:[%s3 + $0xa8] sm:$0xff]
      %v835 = vld [vmem:[%s3 + $0xb0] sm:$0xff]
      %v836 = vld [vmem:[%s3 + $0xb8] sm:$0xff]
      %v837 = vld [vmem:[%s3 + $0xc0] sm:$0xff]
      %v838 = vld [vmem:[%s3 + $0xc8] sm:$0xff]
      %v839 = vld [vmem:[%s3 + $0xd0] sm:$0xff]
      %v840 = vld [vmem:[%s3 + $0xd8] sm:$0xff]
      %v841 = vld [vmem:[%s3 + $0xe0] sm:$0xff]
      %v842 = vld [vmem:[%s3 + $0xe8] sm:$0xff]
      %v843 = vld [vmem:[%s3 + $0xf0] sm:$0xff]
      %v844 = vld [vmem:[%s3 + $0xf8] sm:$0xff]
      %v845 = vld [vmem:[%s3 + $0x100] sm:$0xff]
      %v846 = vld [vmem:[%s3 + $0x108] sm:$0xff]
      %v847 = vld [vmem:[%s3 + $0x110] sm:$0xff]
      %v848 = vld [vmem:[%s3 + $0x118] sm:$0xff]
      %v849 = vld [vmem:[%s3 + $0x120] sm:$0xff]
      %v850 = vld [vmem:[%s3 + $0x128] sm:$0xff]
      %v851 = vld [vmem:[%s3 + $0x130] sm:$0xff]
      %v852 = vld [vmem:[%s3 + $0x138] sm:$0xff]
      %v853 = vld [vmem:[%s3 + $0x140] sm:$0xff]
      %v854 = vld [vmem:[%s3 + $0x148] sm:$0xff]
      %v855 = vld [vmem:[%s3 + $0x150] sm:$0xff]
      %v856 = vld [vmem:[%s3 + $0x158] sm:$0xff]
      %v857 = vld [vmem:[%s3 + $0x160] sm:$0xff]
      %v858 = vld [vmem:[%s3 + $0x168] sm:$0xff]
      %v859 = vld [vmem:[%s3 + $0x170] sm:$0xff]
      %v860 = vld [vmem:[%s3 + $0x178] sm:$0xff]
      %v861 = vld [vmem:[%s3 + $0x180] sm:$0xff]
      %v862 = vld [vmem:[%s3 + $0x188] sm:$0xff]
      %v863 = vld [vmem:[%s3 + $0x190] sm:$0xff]
      %v864 = vld [vmem:[%s3 + $0x198] sm:$0xff]
      %v865 = vld [vmem:[%s3 + $0x1a0] sm:$0xff]
      %v866 = vld [vmem:[%s3 + $0x1a8] sm:$0xff]
      %v867 = vld [vmem:[%s3 + $0x1b0] sm:$0xff]
      %v868 = vld [vmem:[%s3 + $0x1b8] sm:$0xff]
      %v869 = vld [vmem:[%s3 + $0x1c0] sm:$0xff]
      %v870 = vld [vmem:[%s3 + $0x1c8] sm:$0xff]
      %v871 = vld [vmem:[%s3 + $0x1d0] sm:$0xff]
      %v872 = vld [vmem:[%s3 + $0x1d8] sm:$0xff]
      %v873 = vld [vmem:[%s3 + $0x1e0] sm:$0xff]
      %v874 = vld [vmem:[%s3 + $0x1e8] sm:$0xff]
      %v875 = vld [vmem:[%s3 + $0x1f0] sm:$0xff]
      %v876 = vld [vmem:[%s3 + $0x1f8] sm:$0xff]
      %v941 = vunpack.c.l.b16 %v813
      %v942 = vunpack.c.h.b16 %v813
      %v943 = vunpack.c.l.b16 %v814
      %v944 = vunpack.c.h.b16 %v814
      %v945 = vunpack.c.l.b16 %v815
      %v946 = vunpack.c.h.b16 %v815
      %v947 = vunpack.c.l.b16 %v816
      %v948 = vunpack.c.h.b16 %v816
      %v949 = vunpack.c.l.b16 %v817
      %v950 = vunpack.c.h.b16 %v817
      %v951 = vunpack.c.l.b16 %v818
      %v952 = vunpack.c.h.b16 %v818
      %v953 = vunpack.c.l.b16 %v819
      %v954 = vunpack.c.h.b16 %v819
      %v955 = vunpack.c.l.b16 %v820
      %v956 = vunpack.c.h.b16 %v820
      %v957 = vunpack.c.l.b16 %v821
      %v958 = vunpack.c.h.b16 %v821
      %v959 = vunpack.c.l.b16 %v822
      %v960 = vunpack.c.h.b16 %v822
      %v961 = vunpack.c.l.b16 %v823
      %v962 = vunpack.c.h.b16 %v823
      %v963 = vunpack.c.l.b16 %v824
      %v964 = vunpack.c.h.b16 %v824
      %v965 = vunpack.c.l.b16 %v825
      %v966 = vunpack.c.h.b16 %v825
      %v967 = vunpack.c.l.b16 %v826
      %v968 = vunpack.c.h.b16 %v826
      %v969 = vunpack.c.l.b16 %v827
      %v970 = vunpack.c.h.b16 %v827
      %v971 = vunpack.c.l.b16 %v828
      %v972 = vunpack.c.h.b16 %v828
      %v973 = vunpack.c.l.b16 %v829
      %v974 = vunpack.c.h.b16 %v829
      %v975 = vunpack.c.l.b16 %v830
      %v976 = vunpack.c.h.b16 %v830
      %v977 = vunpack.c.l.b16 %v831
      %v978 = vunpack.c.h.b16 %v831
      %v979 = vunpack.c.l.b16 %v832
      %v980 = vunpack.c.h.b16 %v832
      %v981 = vunpack.c.l.b16 %v833
      %v982 = vunpack.c.h.b16 %v833
      %v983 = vunpack.c.l.b16 %v834
      %v984 = vunpack.c.h.b16 %v834
      %v985 = vunpack.c.l.b16 %v835
      %v986 = vunpack.c.h.b16 %v835
      %v987 = vunpack.c.l.b16 %v836
      %v988 = vunpack.c.h.b16 %v836
      %v989 = vunpack.c.l.b16 %v837
      %v990 = vunpack.c.h.b16 %v837
      %v991 = vunpack.c.l.b16 %v838
      %v992 = vunpack.c.h.b16 %v838
      %v993 = vunpack.c.l.b16 %v839
      %v994 = vunpack.c.h.b16 %v839
      %v995 = vunpack.c.l.b16 %v840
      %v996 = vunpack.c.h.b16 %v840
      %v997 = vunpack.c.l.b16 %v841
      %v998 = vunpack.c.h.b16 %v841
      %v999 = vunpack.c.l.b16 %v842
      %v1000 = vunpack.c.h.b16 %v842
      %v1001 = vunpack.c.l.b16 %v843
      %v1002 = vunpack.c.h.b16 %v843
      %v1003 = vunpack.c.l.b16 %v844
      %v1004 = vunpack.c.h.b16 %v844
      %v1005 = vunpack.c.l.b16 %v845
      %v1006 = vunpack.c.h.b16 %v845
      %v1007 = vunpack.c.l.b16 %v846
      %v1008 = vunpack.c.h.b16 %v846
      %v1009 = vunpack.c.l.b16 %v847
      %v1010 = vunpack.c.h.b16 %v847
      %v1011 = vunpack.c.l.b16 %v848
      %v1012 = vunpack.c.h.b16 %v848
      %v1013 = vunpack.c.l.b16 %v849
      %v1014 = vunpack.c.h.b16 %v849
      %v1015 = vunpack.c.l.b16 %v850
      %v1016 = vunpack.c.h.b16 %v850
      %v1017 = vunpack.c.l.b16 %v851
      %v1018 = vunpack.c.h.b16 %v851
      %v1019 = vunpack.c.l.b16 %v852
      %v1020 = vunpack.c.h.b16 %v852
      %v1021 = vunpack.c.l.b16 %v853
      %v1022 = vunpack.c.h.b16 %v853
      %v1023 = vunpack.c.l.b16 %v854
      %v1024 = vunpack.c.h.b16 %v854
      %v1025 = vunpack.c.l.b16 %v855
      %v1026 = vunpack.c.h.b16 %v855
      %v1027 = vunpack.c.l.b16 %v856
      %v1028 = vunpack.c.h.b16 %v856
      %v1029 = vunpack.c.l.b16 %v857
      %v1030 = vunpack.c.h.b16 %v857
      %v1031 = vunpack.c.l.b16 %v858
      %v1032 = vunpack.c.h.b16 %v858
      %v1033 = vunpack.c.l.b16 %v859
      %v1034 = vunpack.c.h.b16 %v859
      %v1035 = vunpack.c.l.b16 %v860
      %v1036 = vunpack.c.h.b16 %v860
      %v1037 = vunpack.c.l.b16 %v861
      %v1038 = vunpack.c.h.b16 %v861
      %v1039 = vunpack.c.l.b16 %v862
      %v1040 = vunpack.c.h.b16 %v862
      %v1041 = vunpack.c.l.b16 %v863
      %v1042 = vunpack.c.h.b16 %v863
      %v1043 = vunpack.c.l.b16 %v864
      %v1044 = vunpack.c.h.b16 %v864
      %v1045 = vunpack.c.l.b16 %v865
      %v1046 = vunpack.c.h.b16 %v865
      %v1047 = vunpack.c.l.b16 %v866
      %v1048 = vunpack.c.h.b16 %v866
      %v1049 = vunpack.c.l.b16 %v867
      %v1050 = vunpack.c.h.b16 %v867
      %v1051 = vunpack.c.l.b16 %v868
      %v1052 = vunpack.c.h.b16 %v868
      %v1053 = vunpack.c.l.b16 %v869
      %v1054 = vunpack.c.h.b16 %v869
      %v1055 = vunpack.c.l.b16 %v870
      %v1056 = vunpack.c.h.b16 %v870
      %v1057 = vunpack.c.l.b16 %v871
      %v1058 = vunpack.c.h.b16 %v871
      %v1059 = vunpack.c.l.b16 %v872
      %v1060 = vunpack.c.h.b16 %v872
      %v1061 = vunpack.c.l.b16 %v873
      %v1062 = vunpack.c.h.b16 %v873
      %v1063 = vunpack.c.l.b16 %v874
      %v1064 = vunpack.c.h.b16 %v874
      %v1065 = vunpack.c.l.b16 %v875
      %v1066 = vunpack.c.h.b16 %v875
      %v1067 = vunpack.c.l.b16 %v876
      %v1068 = vunpack.c.h.b16 %v876
      %v1069 = vpack.c.b16 %v943, %v941
      %v1070 = vpack.c.b16 %v944, %v942
      %v1071 = vpack.c.b16 %v947, %v945
      %v1072 = vpack.c.b16 %v948, %v946
      %v1073 = vpack.c.b16 %v951, %v949
      %v1074 = vpack.c.b16 %v952, %v950
      %v1075 = vpack.c.b16 %v955, %v953
      %v1076 = vpack.c.b16 %v956, %v954
      %v1077 = vpack.c.b16 %v959, %v957
      %v1078 = vpack.c.b16 %v960, %v958
      %v1079 = vpack.c.b16 %v963, %v961
      %v1080 = vpack.c.b16 %v964, %v962
      %v1081 = vpack.c.b16 %v967, %v965
      %v1082 = vpack.c.b16 %v968, %v966
      %v1083 = vpack.c.b16 %v971, %v969
      %v1084 = vpack.c.b16 %v972, %v970
      %v1085 = vpack.c.b16 %v975, %v973
      %v1086 = vpack.c.b16 %v976, %v974
      %v1087 = vpack.c.b16 %v979, %v977
      %v1088 = vpack.c.b16 %v980, %v978
      %v1089 = vpack.c.b16 %v983, %v981
      %v1090 = vpack.c.b16 %v984, %v982
      %v1091 = vpack.c.b16 %v987, %v985
      %v1092 = vpack.c.b16 %v988, %v986
      %v1093 = vpack.c.b16 %v991, %v989
      %v1094 = vpack.c.b16 %v992, %v990
      %v1095 = vpack.c.b16 %v995, %v993
      %v1096 = vpack.c.b16 %v996, %v994
      %v1097 = vpack.c.b16 %v999, %v997
      %v1098 = vpack.c.b16 %v1000, %v998
      %v1099 = vpack.c.b16 %v1003, %v1001
      %v1100 = vpack.c.b16 %v1004, %v1002
      %v1101 = vpack.c.b16 %v1007, %v1005
      %v1102 = vpack.c.b16 %v1008, %v1006
      %v1103 = vpack.c.b16 %v1011, %v1009
      %v1104 = vpack.c.b16 %v1012, %v1010
      %v1105 = vpack.c.b16 %v1015, %v1013
      %v1106 = vpack.c.b16 %v1016, %v1014
      %v1107 = vpack.c.b16 %v1019, %v1017
      %v1108 = vpack.c.b16 %v1020, %v1018
      %v1109 = vpack.c.b16 %v1023, %v1021
      %v1110 = vpack.c.b16 %v1024, %v1022
      %v1111 = vpack.c.b16 %v1027, %v1025
      %v1112 = vpack.c.b16 %v1028, %v1026
      %v1113 = vpack.c.b16 %v1031, %v1029
      %v1114 = vpack.c.b16 %v1032, %v1030
      %v1115 = vpack.c.b16 %v1035, %v1033
      %v1116 = vpack.c.b16 %v1036, %v1034
      %v1117 = vpack.c.b16 %v1039, %v1037
      %v1118 = vpack.c.b16 %v1040, %v1038
      %v1119 = vpack.c.b16 %v1043, %v1041
      %v1120 = vpack.c.b16 %v1044, %v1042
      %v1121 = vpack.c.b16 %v1047, %v1045
      %v1122 = vpack.c.b16 %v1048, %v1046
      %v1123 = vpack.c.b16 %v1051, %v1049
      %v1124 = vpack.c.b16 %v1052, %v1050
      %v1125 = vpack.c.b16 %v1055, %v1053
      %v1126 = vpack.c.b16 %v1056, %v1054
      %v1127 = vpack.c.b16 %v1059, %v1057
      %v1128 = vpack.c.b16 %v1060, %v1058
      %v1129 = vpack.c.b16 %v1063, %v1061
      %v1130 = vpack.c.b16 %v1064, %v1062
      %v1131 = vpack.c.b16 %v1067, %v1065
      %v1132 = vpack.c.b16 %v1068, %v1066
      %1197 = vmatprep.subr.bf16.mxu0 %v1070
      %1198 = vmatpush1.bf16.msra.mxu0 %v1069
      %1199 = vmatprep.subr.bf16.mxu0 %v1072
      %1200 = vmatpush1.bf16.msra.mxu0 %v1071
      %1201 = vmatprep.subr.bf16.mxu0 %v1074
      %1202 = vmatpush1.bf16.msra.mxu0 %v1073
      %1203 = vmatprep.subr.bf16.mxu0 %v1076
      %1204 = vmatpush1.bf16.msra.mxu0 %v1075
      %1205 = vmatprep.subr.bf16.mxu0 %v1078
      %1206 = vmatpush1.bf16.msra.mxu0 %v1077
      %1207 = vmatprep.subr.bf16.mxu0 %v1080
      %1208 = vmatpush1.bf16.msra.mxu0 %v1079
      %1209 = vmatprep.subr.bf16.mxu0 %v1082
      %1210 = vmatpush1.bf16.msra.mxu0 %v1081
      %1211 = vmatprep.subr.bf16.mxu0 %v1084
      %1212 = vmatpush1.bf16.msra.mxu0 %v1083
      %1213 = vmatprep.subr.bf16.mxu0 %v1086
      %1214 = vmatpush1.bf16.msra.mxu0 %v1085
      %1215 = vmatprep.subr.bf16.mxu0 %v1088
      %1216 = vmatpush1.bf16.msra.mxu0 %v1087
      %1217 = vmatprep.subr.bf16.mxu0 %v1090
      %1218 = vmatpush1.bf16.msra.mxu0 %v1089
      %1219 = vmatprep.subr.bf16.mxu0 %v1092
      %1220 = vmatpush1.bf16.msra.mxu0 %v1091
      %1221 = vmatprep.subr.bf16.mxu0 %v1094
      %1222 = vmatpush1.bf16.msra.mxu0 %v1093
      %1223 = vmatprep.subr.bf16.mxu0 %v1096
      %1224 = vmatpush1.bf16.msra.mxu0 %v1095
      %1225 = vmatprep.subr.bf16.mxu0 %v1098
      %1226 = vmatpush1.bf16.msra.mxu0 %v1097
      %1227 = vmatprep.subr.bf16.mxu0 %v1100
      %1228 = vmatpush1.bf16.msra.mxu0 %v1099
      %1229 = vmatprep.mubr.bf16.mxu0 %v810
      %1230 = vmatmul.mubr.bf16.gmra.mrb[0].mxu0 %v809
      %v1231 = vpop.f32.mrb[0].mxu0
      %v1232 = vadd.f32 0.0, %v1231
      %v1233 = vpop.f32.mrb[0].mxu0
      %v1234 = vadd.f32 0.0, %v1233
      %v1235 = vpop.f32.mrb[0].mxu0
      %v1236 = vpop.f32.mrb[0].mxu0
      %1237 = vdwg.mxu0
      %1238 = vmatprep.subr.bf16.mxu0 %v1102
      %1239 = vmatpush1.bf16.msra.mxu0 %v1101
      %1240 = vmatprep.subr.bf16.mxu0 %v1104
      %1241 = vmatpush1.bf16.msra.mxu0 %v1103
      %1242 = vmatprep.subr.bf16.mxu0 %v1106
      %1243 = vmatpush1.bf16.msra.mxu0 %v1105
      %1244 = vmatprep.subr.bf16.mxu0 %v1108
      %1245 = vmatpush1.bf16.msra.mxu0 %v1107
      %1246 = vmatprep.subr.bf16.mxu0 %v1110
      %1247 = vmatpush1.bf16.msra.mxu0 %v1109
      %1248 = vmatprep.subr.bf16.mxu0 %v1112
      %1249 = vmatpush1.bf16.msra.mxu0 %v1111
      %1250 = vmatprep.subr.bf16.mxu0 %v1114
      %1251 = vmatpush1.bf16.msra.mxu0 %v1113
      %1252 = vmatprep.subr.bf16.mxu0 %v1116
      %1253 = vmatpush1.bf16.msra.mxu0 %v1115
      %1254 = vmatprep.subr.bf16.mxu0 %v1118
      %1255 = vmatpush1.bf16.msra.mxu0 %v1117
      %1256 = vmatprep.subr.bf16.mxu0 %v1120
      %1257 = vmatpush1.bf16.msra.mxu0 %v1119
      %1258 = vmatprep.subr.bf16.mxu0 %v1122
      %1259 = vmatpush1.bf16.msra.mxu0 %v1121
      %1260 = vmatprep.subr.bf16.mxu0 %v1124
      %1261 = vmatpush1.bf16.msra.mxu0 %v1123
      %1262 = vmatprep.subr.bf16.mxu0 %v1126
      %1263 = vmatpush1.bf16.msra.mxu0 %v1125
      %1264 = vmatprep.subr.bf16.mxu0 %v1128
      %1265 = vmatpush1.bf16.msra.mxu0 %v1127
      %1266 = vmatprep.subr.bf16.mxu0 %v1130
      %1267 = vmatpush1.bf16.msra.mxu0 %v1129
      %1268 = vmatprep.subr.bf16.mxu0 %v1132
      %1269 = vmatpush1.bf16.msra.mxu0 %v1131
      %1270 = vmatprep.mubr.bf16.mxu0 %v812
      %1271 = vmatmul.mubr.bf16.gmra.mrb[0].mxu0 %v811
      %v1272 = vpop.f32.mrb[0].mxu0
      %v1273 = vadd.f32 %v1232, %v1272
      %v1274 = vpop.f32.mrb[0].mxu0
      %v1275 = vadd.f32 %v1234, %v1274
      %v1276 = vpop.f32.mrb[0].mxu0
      %v1277 = vpop.f32.mrb[0].mxu0
      %1278 = vdwg.mxu0
      %s1279 = scalar_lea.vmem %s3, 512
      %v1280 = vld [vmem:[%s1279] sm:$0xff]
      %v1281 = vld [vmem:[%s1279 + $0x8] sm:$0xff]
      %v1282 = vld [vmem:[%s1279 + $0x10] sm:$0xff]
      %v1283 = vld [vmem:[%s1279 + $0x18] sm:$0xff]
      %v1284 = vld [vmem:[%s1279 + $0x20] sm:$0xff]
      %v1285 = vld [vmem:[%s1279 + $0x28] sm:$0xff]
      %v1286 = vld [vmem:[%s1279 + $0x30] sm:$0xff]
      %v1287 = vld [vmem:[%s1279 + $0x38] sm:$0xff]
      %v1288 = vld [vmem:[%s1279 + $0x40] sm:$0xff]
      %v1289 = vld [vmem:[%s1279 + $0x48] sm:$0xff]
      %v1290 = vld [vmem:[%s1279 + $0x50] sm:$0xff]
      %v1291 = vld [vmem:[%s1279 + $0x58] sm:$0xff]
      %v1292 = vld [vmem:[%s1279 + $0x60] sm:$0xff]
      %v1293 = vld [vmem:[%s1279 + $0x68] sm:$0xff]
      %v1294 = vld [vmem:[%s1279 + $0x70] sm:$0xff]
      %v1295 = vld [vmem:[%s1279 + $0x78] sm:$0xff]
      %v1296 = vld [vmem:[%s1279 + $0x80] sm:$0xff]
      %v1297 = vld [vmem:[%s1279 + $0x88] sm:$0xff]
      %v1298 = vld [vmem:[%s1279 + $0x90] sm:$0xff]
      %v1299 = vld [vmem:[%s1279 + $0x98] sm:$0xff]
      %v1300 = vld [vmem:[%s1279 + $0xa0] sm:$0xff]
      %v1301 = vld [vmem:[%s1279 + $0xa8] sm:$0xff]
      %v1302 = vld [vmem:[%s1279 + $0xb0] sm:$0xff]
      %v1303 = vld [vmem:[%s1279 + $0xb8] sm:$0xff]
      %v1304 = vld [vmem:[%s1279 + $0xc0] sm:$0xff]
      %v1305 = vld [vmem:[%s1279 + $0xc8] sm:$0xff]
      %v1306 = vld [vmem:[%s1279 + $0xd0] sm:$0xff]
      %v1307 = vld [vmem:[%s1279 + $0xd8] sm:$0xff]
      %v1308 = vld [vmem:[%s1279 + $0xe0] sm:$0xff]
      %v1309 = vld [vmem:[%s1279 + $0xe8] sm:$0xff]
      %v1310 = vld [vmem:[%s1279 + $0xf0] sm:$0xff]
      %v1311 = vld [vmem:[%s1279 + $0xf8] sm:$0xff]
      %v1312 = vld [vmem:[%s1279 + $0x100] sm:$0xff]
      %v1313 = vld [vmem:[%s1279 + $0x108] sm:$0xff]
      %v1314 = vld [vmem:[%s1279 + $0x110] sm:$0xff]
      %v1315 = vld [vmem:[%s1279 + $0x118] sm:$0xff]
      %v1316 = vld [vmem:[%s1279 + $0x120] sm:$0xff]
      %v1317 = vld [vmem:[%s1279 + $0x128] sm:$0xff]
      %v1318 = vld [vmem:[%s1279 + $0x130] sm:$0xff]
      %v1319 = vld [vmem:[%s1279 + $0x138] sm:$0xff]
      %v1320 = vld [vmem:[%s1279 + $0x140] sm:$0xff]
      %v1321 = vld [vmem:[%s1279 + $0x148] sm:$0xff]
      %v1322 = vld [vmem:[%s1279 + $0x150] sm:$0xff]
      %v1323 = vld [vmem:[%s1279 + $0x158] sm:$0xff]
      %v1324 = vld [vmem:[%s1279 + $0x160] sm:$0xff]
      %v1325 = vld [vmem:[%s1279 + $0x168] sm:$0xff]
      %v1326 = vld [vmem:[%s1279 + $0x170] sm:$0xff]
      %v1327 = vld [vmem:[%s1279 + $0x178] sm:$0xff]
      %v1328 = vld [vmem:[%s1279 + $0x180] sm:$0xff]
      %v1329 = vld [vmem:[%s1279 + $0x188] sm:$0xff]
      %v1330 = vld [vmem:[%s1279 + $0x190] sm:$0xff]
      %v1331 = vld [vmem:[%s1279 + $0x198] sm:$0xff]
      %v1332 = vld [vmem:[%s1279 + $0x1a0] sm:$0xff]
      %v1333 = vld [vmem:[%s1279 + $0x1a8] sm:$0xff]
      %v1334 = vld [vmem:[%s1279 + $0x1b0] sm:$0xff]
      %v1335 = vld [vmem:[%s1279 + $0x1b8] sm:$0xff]
      %v1336 = vld [vmem:[%s1279 + $0x1c0] sm:$0xff]
      %v1337 = vld [vmem:[%s1279 + $0x1c8] sm:$0xff]
      %v1338 = vld [vmem:[%s1279 + $0x1d0] sm:$0xff]
      %v1339 = vld [vmem:[%s1279 + $0x1d8] sm:$0xff]
      %v1340 = vld [vmem:[%s1279 + $0x1e0] sm:$0xff]
      %v1341 = vld [vmem:[%s1279 + $0x1e8] sm:$0xff]
      %v1342 = vld [vmem:[%s1279 + $0x1f0] sm:$0xff]
      %v1343 = vld [vmem:[%s1279 + $0x1f8] sm:$0xff]
      %v1408 = vunpack.c.l.b16 %v1280
      %v1409 = vunpack.c.h.b16 %v1280
      %v1410 = vunpack.c.l.b16 %v1281
      %v1411 = vunpack.c.h.b16 %v1281
      %v1412 = vunpack.c.l.b16 %v1282
      %v1413 = vunpack.c.h.b16 %v1282
      %v1414 = vunpack.c.l.b16 %v1283
      %v1415 = vunpack.c.h.b16 %v1283
      %v1416 = vunpack.c.l.b16 %v1284
      %v1417 = vunpack.c.h.b16 %v1284
      %v1418 = vunpack.c.l.b16 %v1285
      %v1419 = vunpack.c.h.b16 %v1285
      %v1420 = vunpack.c.l.b16 %v1286
      %v1421 = vunpack.c.h.b16 %v1286
      %v1422 = vunpack.c.l.b16 %v1287
      %v1423 = vunpack.c.h.b16 %v1287
      %v1424 = vunpack.c.l.b16 %v1288
      %v1425 = vunpack.c.h.b16 %v1288
      %v1426 = vunpack.c.l.b16 %v1289
      %v1427 = vunpack.c.h.b16 %v1289
      %v1428 = vunpack.c.l.b16 %v1290
      %v1429 = vunpack.c.h.b16 %v1290
      %v1430 = vunpack.c.l.b16 %v1291
      %v1431 = vunpack.c.h.b16 %v1291
      %v1432 = vunpack.c.l.b16 %v1292
      %v1433 = vunpack.c.h.b16 %v1292
      %v1434 = vunpack.c.l.b16 %v1293
      %v1435 = vunpack.c.h.b16 %v1293
      %v1436 = vunpack.c.l.b16 %v1294
      %v1437 = vunpack.c.h.b16 %v1294
      %v1438 = vunpack.c.l.b16 %v1295
      %v1439 = vunpack.c.h.b16 %v1295
      %v1440 = vunpack.c.l.b16 %v1296
      %v1441 = vunpack.c.h.b16 %v1296
      %v1442 = vunpack.c.l.b16 %v1297
      %v1443 = vunpack.c.h.b16 %v1297
      %v1444 = vunpack.c.l.b16 %v1298
      %v1445 = vunpack.c.h.b16 %v1298
      %v1446 = vunpack.c.l.b16 %v1299
      %v1447 = vunpack.c.h.b16 %v1299
      %v1448 = vunpack.c.l.b16 %v1300
      %v1449 = vunpack.c.h.b16 %v1300
      %v1450 = vunpack.c.l.b16 %v1301
      %v1451 = vunpack.c.h.b16 %v1301
      %v1452 = vunpack.c.l.b16 %v1302
      %v1453 = vunpack.c.h.b16 %v1302
      %v1454 = vunpack.c.l.b16 %v1303
      %v1455 = vunpack.c.h.b16 %v1303
      %v1456 = vunpack.c.l.b16 %v1304
      %v1457 = vunpack.c.h.b16 %v1304
      %v1458 = vunpack.c.l.b16 %v1305
      %v1459 = vunpack.c.h.b16 %v1305
      %v1460 = vunpack.c.l.b16 %v1306
      %v1461 = vunpack.c.h.b16 %v1306
      %v1462 = vunpack.c.l.b16 %v1307
      %v1463 = vunpack.c.h.b16 %v1307
      %v1464 = vunpack.c.l.b16 %v1308
      %v1465 = vunpack.c.h.b16 %v1308
      %v1466 = vunpack.c.l.b16 %v1309
      %v1467 = vunpack.c.h.b16 %v1309
      %v1468 = vunpack.c.l.b16 %v1310
      %v1469 = vunpack.c.h.b16 %v1310
      %v1470 = vunpack.c.l.b16 %v1311
      %v1471 = vunpack.c.h.b16 %v1311
      %v1472 = vunpack.c.l.b16 %v1312
      %v1473 = vunpack.c.h.b16 %v1312
      %v1474 = vunpack.c.l.b16 %v1313
      %v1475 = vunpack.c.h.b16 %v1313
      %v1476 = vunpack.c.l.b16 %v1314
      %v1477 = vunpack.c.h.b16 %v1314
      %v1478 = vunpack.c.l.b16 %v1315
      %v1479 = vunpack.c.h.b16 %v1315
      %v1480 = vunpack.c.l.b16 %v1316
      %v1481 = vunpack.c.h.b16 %v1316
      %v1482 = vunpack.c.l.b16 %v1317
      %v1483 = vunpack.c.h.b16 %v1317
      %v1484 = vunpack.c.l.b16 %v1318
      %v1485 = vunpack.c.h.b16 %v1318
      %v1486 = vunpack.c.l.b16 %v1319
      %v1487 = vunpack.c.h.b16 %v1319
      %v1488 = vunpack.c.l.b16 %v1320
      %v1489 = vunpack.c.h.b16 %v1320
      %v1490 = vunpack.c.l.b16 %v1321
      %v1491 = vunpack.c.h.b16 %v1321
      %v1492 = vunpack.c.l.b16 %v1322
      %v1493 = vunpack.c.h.b16 %v1322
      %v1494 = vunpack.c.l.b16 %v1323
      %v1495 = vunpack.c.h.b16 %v1323
      %v1496 = vunpack.c.l.b16 %v1324
      %v1497 = vunpack.c.h.b16 %v1324
      %v1498 = vunpack.c.l.b16 %v1325
      %v1499 = vunpack.c.h.b16 %v1325
      %v1500 = vunpack.c.l.b16 %v1326
      %v1501 = vunpack.c.h.b16 %v1326
      %v1502 = vunpack.c.l.b16 %v1327
      %v1503 = vunpack.c.h.b16 %v1327
      %v1504 = vunpack.c.l.b16 %v1328
      %v1505 = vunpack.c.h.b16 %v1328
      %v1506 = vunpack.c.l.b16 %v1329
      %v1507 = vunpack.c.h.b16 %v1329
      %v1508 = vunpack.c.l.b16 %v1330
      %v1509 = vunpack.c.h.b16 %v1330
      %v1510 = vunpack.c.l.b16 %v1331
      %v1511 = vunpack.c.h.b16 %v1331
      %v1512 = vunpack.c.l.b16 %v1332
      %v1513 = vunpack.c.h.b16 %v1332
      %v1514 = vunpack.c.l.b16 %v1333
      %v1515 = vunpack.c.h.b16 %v1333
      %v1516 = vunpack.c.l.b16 %v1334
      %v1517 = vunpack.c.h.b16 %v1334
      %v1518 = vunpack.c.l.b16 %v1335
      %v1519 = vunpack.c.h.b16 %v1335
      %v1520 = vunpack.c.l.b16 %v1336
      %v1521 = vunpack.c.h.b16 %v1336
      %v1522 = vunpack.c.l.b16 %v1337
      %v1523 = vunpack.c.h.b16 %v1337
      %v1524 = vunpack.c.l.b16 %v1338
      %v1525 = vunpack.c.h.b16 %v1338
      %v1526 = vunpack.c.l.b16 %v1339
      %v1527 = vunpack.c.h.b16 %v1339
      %v1528 = vunpack.c.l.b16 %v1340
      %v1529 = vunpack.c.h.b16 %v1340
      %v1530 = vunpack.c.l.b16 %v1341
      %v1531 = vunpack.c.h.b16 %v1341
      %v1532 = vunpack.c.l.b16 %v1342
      %v1533 = vunpack.c.h.b16 %v1342
      %v1534 = vunpack.c.l.b16 %v1343
      %v1535 = vunpack.c.h.b16 %v1343
      %v1536 = vpack.c.b16 %v1410, %v1408
      %v1537 = vpack.c.b16 %v1411, %v1409
      %v1538 = vpack.c.b16 %v1414, %v1412
      %v1539 = vpack.c.b16 %v1415, %v1413
      %v1540 = vpack.c.b16 %v1418, %v1416
      %v1541 = vpack.c.b16 %v1419, %v1417
      %v1542 = vpack.c.b16 %v1422, %v1420
      %v1543 = vpack.c.b16 %v1423, %v1421
      %v1544 = vpack.c.b16 %v1426, %v1424
      %v1545 = vpack.c.b16 %v1427, %v1425
      %v1546 = vpack.c.b16 %v1430, %v1428
      %v1547 = vpack.c.b16 %v1431, %v1429
      %v1548 = vpack.c.b16 %v1434, %v1432
      %v1549 = vpack.c.b16 %v1435, %v1433
      %v1550 = vpack.c.b16 %v1438, %v1436
      %v1551 = vpack.c.b16 %v1439, %v1437
      %v1552 = vpack.c.b16 %v1442, %v1440
      %v1553 = vpack.c.b16 %v1443, %v1441
      %v1554 = vpack.c.b16 %v1446, %v1444
      %v1555 = vpack.c.b16 %v1447, %v1445
      %v1556 = vpack.c.b16 %v1450, %v1448
      %v1557 = vpack.c.b16 %v1451, %v1449
      %v1558 = vpack.c.b16 %v1454, %v1452
      %v1559 = vpack.c.b16 %v1455, %v1453
      %v1560 = vpack.c.b16 %v1458, %v1456
      %v1561 = vpack.c.b16 %v1459, %v1457
      %v1562 = vpack.c.b16 %v1462, %v1460
      %v1563 = vpack.c.b16 %v1463, %v1461
      %v1564 = vpack.c.b16 %v1466, %v1464
      %v1565 = vpack.c.b16 %v1467, %v1465
      %v1566 = vpack.c.b16 %v1470, %v1468
      %v1567 = vpack.c.b16 %v1471, %v1469
      %v1568 = vpack.c.b16 %v1474, %v1472
      %v1569 = vpack.c.b16 %v1475, %v1473
      %v1570 = vpack.c.b16 %v1478, %v1476
      %v1571 = vpack.c.b16 %v1479, %v1477
      %v1572 = vpack.c.b16 %v1482, %v1480
      %v1573 = vpack.c.b16 %v1483, %v1481
      %v1574 = vpack.c.b16 %v1486, %v1484
      %v1575 = vpack.c.b16 %v1487, %v1485
      %v1576 = vpack.c.b16 %v1490, %v1488
      %v1577 = vpack.c.b16 %v1491, %v1489
      %v1578 = vpack.c.b16 %v1494, %v1492
      %v1579 = vpack.c.b16 %v1495, %v1493
      %v1580 = vpack.c.b16 %v1498, %v1496
      %v1581 = vpack.c.b16 %v1499, %v1497
      %v1582 = vpack.c.b16 %v1502, %v1500
      %v1583 = vpack.c.b16 %v1503, %v1501
      %v1584 = vpack.c.b16 %v1506, %v1504
      %v1585 = vpack.c.b16 %v1507, %v1505
      %v1586 = vpack.c.b16 %v1510, %v1508
      %v1587 = vpack.c.b16 %v1511, %v1509
      %v1588 = vpack.c.b16 %v1514, %v1512
      %v1589 = vpack.c.b16 %v1515, %v1513
      %v1590 = vpack.c.b16 %v1518, %v1516
      %v1591 = vpack.c.b16 %v1519, %v1517
      %v1592 = vpack.c.b16 %v1522, %v1520
      %v1593 = vpack.c.b16 %v1523, %v1521
      %v1594 = vpack.c.b16 %v1526, %v1524
      %v1595 = vpack.c.b16 %v1527, %v1525
      %v1596 = vpack.c.b16 %v1530, %v1528
      %v1597 = vpack.c.b16 %v1531, %v1529
      %v1598 = vpack.c.b16 %v1534, %v1532
      %v1599 = vpack.c.b16 %v1535, %v1533
      %1664 = vmatprep.subr.bf16.mxu0 %v1537
      %1665 = vmatpush1.bf16.msra.mxu0 %v1536
      %1666 = vmatprep.subr.bf16.mxu0 %v1539
      %1667 = vmatpush1.bf16.msra.mxu0 %v1538
      %1668 = vmatprep.subr.bf16.mxu0 %v1541
      %1669 = vmatpush1.bf16.msra.mxu0 %v1540
      %1670 = vmatprep.subr.bf16.mxu0 %v1543
      %1671 = vmatpush1.bf16.msra.mxu0 %v1542
      %1672 = vmatprep.subr.bf16.mxu0 %v1545
      %1673 = vmatpush1.bf16.msra.mxu0 %v1544
      %1674 = vmatprep.subr.bf16.mxu0 %v1547
      %1675 = vmatpush1.bf16.msra.mxu0 %v1546
      %1676 = vmatprep.subr.bf16.mxu0 %v1549
      %1677 = vmatpush1.bf16.msra.mxu0 %v1548
      %1678 = vmatprep.subr.bf16.mxu0 %v1551
      %1679 = vmatpush1.bf16.msra.mxu0 %v1550
      %1680 = vmatprep.subr.bf16.mxu0 %v1553
      %1681 = vmatpush1.bf16.msra.mxu0 %v1552
      %1682 = vmatprep.subr.bf16.mxu0 %v1555
      %1683 = vmatpush1.bf16.msra.mxu0 %v1554
      %1684 = vmatprep.subr.bf16.mxu0 %v1557
      %1685 = vmatpush1.bf16.msra.mxu0 %v1556
      %1686 = vmatprep.subr.bf16.mxu0 %v1559
      %1687 = vmatpush1.bf16.msra.mxu0 %v1558
      %1688 = vmatprep.subr.bf16.mxu0 %v1561
      %1689 = vmatpush1.bf16.msra.mxu0 %v1560
      %1690 = vmatprep.subr.bf16.mxu0 %v1563
      %1691 = vmatpush1.bf16.msra.mxu0 %v1562
      %1692 = vmatprep.subr.bf16.mxu0 %v1565
      %1693 = vmatpush1.bf16.msra.mxu0 %v1564
      %1694 = vmatprep.subr.bf16.mxu0 %v1567
      %1695 = vmatpush1.bf16.msra.mxu0 %v1566
      %1696 = vmatprep.mubr.bf16.mxu0 %v810
      %1697 = vmatmul.mubr.bf16.gmra.mrb[0].mxu0 %v809
      %v1698 = vpop.f32.mrb[0].mxu0
      %v1699 = vadd.f32 0.0, %v1698
      %v1700 = vpop.f32.mrb[0].mxu0
      %v1701 = vadd.f32 0.0, %v1700
      %v1702 = vpop.f32.mrb[0].mxu0
      %v1703 = vpop.f32.mrb[0].mxu0
      %1704 = vdwg.mxu0
      %1705 = vmatprep.subr.bf16.mxu0 %v1569
      %1706 = vmatpush1.bf16.msra.mxu0 %v1568
      %1707 = vmatprep.subr.bf16.mxu0 %v1571
      %1708 = vmatpush1.bf16.msra.mxu0 %v1570
      %1709 = vmatprep.subr.bf16.mxu0 %v1573
      %1710 = vmatpush1.bf16.msra.mxu0 %v1572
      %1711 = vmatprep.subr.bf16.mxu0 %v1575
      %1712 = vmatpush1.bf16.msra.mxu0 %v1574
      %1713 = vmatprep.subr.bf16.mxu0 %v1577
      %1714 = vmatpush1.bf16.msra.mxu0 %v1576
      %1715 = vmatprep.subr.bf16.mxu0 %v1579
      %1716 = vmatpush1.bf16.msra.mxu0 %v1578
      %1717 = vmatprep.subr.bf16.mxu0 %v1581
      %1718 = vmatpush1.bf16.msra.mxu0 %v1580
      %1719 = vmatprep.subr.bf16.mxu0 %v1583
      %1720 = vmatpush1.bf16.msra.mxu0 %v1582
      %1721 = vmatprep.subr.bf16.mxu0 %v1585
      %1722 = vmatpush1.bf16.msra.mxu0 %v1584
      %1723 = vmatprep.subr.bf16.mxu0 %v1587
      %1724 = vmatpush1.bf16.msra.mxu0 %v1586
      %1725 = vmatprep.subr.bf16.mxu0 %v1589
      %1726 = vmatpush1.bf16.msra.mxu0 %v1588
      %1727 = vmatprep.subr.bf16.mxu0 %v1591
      %1728 = vmatpush1.bf16.msra.mxu0 %v1590
      %1729 = vmatprep.subr.bf16.mxu0 %v1593
      %1730 = vmatpush1.bf16.msra.mxu0 %v1592
      %1731 = vmatprep.subr.bf16.mxu0 %v1595
      %1732 = vmatpush1.bf16.msra.mxu0 %v1594
      %1733 = vmatprep.subr.bf16.mxu0 %v1597
      %1734 = vmatpush1.bf16.msra.mxu0 %v1596
      %1735 = vmatprep.subr.bf16.mxu0 %v1599
      %1736 = vmatpush1.bf16.msra.mxu0 %v1598
      %1737 = vmatprep.mubr.bf16.mxu0 %v812
      %1738 = vmatmul.mubr.bf16.gmra.mrb[0].mxu0 %v811
      %v1739 = vpop.f32.mrb[0].mxu0
      %v1740 = vadd.f32 %v1699, %v1739
      %v1741 = vpop.f32.mrb[0].mxu0
      %v1742 = vadd.f32 %v1701, %v1741
      %v1743 = vpop.f32.mrb[0].mxu0
      %v1744 = vpop.f32.mrb[0].mxu0
      %1745 = vdwg.mxu0
      %v1746 = vmax.f32 %v1273, %v1740
      %v1747 = vmax.f32 %v1275, %v1742
      %s1748 = scalar_lea.vmem %s3, 1024
      %v1749 = vld [vmem:[%s1748] sm:$0xff]
      %v1750 = vld [vmem:[%s1748 + $0x8] sm:$0xff]
      %v1751 = vld [vmem:[%s1748 + $0x10] sm:$0xff]
      %v1752 = vld [vmem:[%s1748 + $0x18] sm:$0xff]
      %v1753 = vld [vmem:[%s1748 + $0x20] sm:$0xff]
      %v1754 = vld [vmem:[%s1748 + $0x28] sm:$0xff]
      %v1755 = vld [vmem:[%s1748 + $0x30] sm:$0xff]
      %v1756 = vld [vmem:[%s1748 + $0x38] sm:$0xff]
      %v1757 = vld [vmem:[%s1748 + $0x40] sm:$0xff]
      %v1758 = vld [vmem:[%s1748 + $0x48] sm:$0xff]
      %v1759 = vld [vmem:[%s1748 + $0x50] sm:$0xff]
      %v1760 = vld [vmem:[%s1748 + $0x58] sm:$0xff]
      %v1761 = vld [vmem:[%s1748 + $0x60] sm:$0xff]
      %v1762 = vld [vmem:[%s1748 + $0x68] sm:$0xff]
      %v1763 = vld [vmem:[%s1748 + $0x70] sm:$0xff]
      %v1764 = vld [vmem:[%s1748 + $0x78] sm:$0xff]
      %v1765 = vld [vmem:[%s1748 + $0x80] sm:$0xff]
      %v1766 = vld [vmem:[%s1748 + $0x88] sm:$0xff]
      %v1767 = vld [vmem:[%s1748 + $0x90] sm:$0xff]
      %v1768 = vld [vmem:[%s1748 + $0x98] sm:$0xff]
      %v1769 = vld [vmem:[%s1748 + $0xa0] sm:$0xff]
      %v1770 = vld [vmem:[%s1748 + $0xa8] sm:$0xff]
      %v1771 = vld [vmem:[%s1748 + $0xb0] sm:$0xff]
      %v1772 = vld [vmem:[%s1748 + $0xb8] sm:$0xff]
      %v1773 = vld [vmem:[%s1748 + $0xc0] sm:$0xff]
      %v1774 = vld [vmem:[%s1748 + $0xc8] sm:$0xff]
      %v1775 = vld [vmem:[%s1748 + $0xd0] sm:$0xff]
      %v1776 = vld [vmem:[%s1748 + $0xd8] sm:$0xff]
      %v1777 = vld [vmem:[%s1748 + $0xe0] sm:$0xff]
      %v1778 = vld [vmem:[%s1748 + $0xe8] sm:$0xff]
      %v1779 = vld [vmem:[%s1748 + $0xf0] sm:$0xff]
      %v1780 = vld [vmem:[%s1748 + $0xf8] sm:$0xff]
      %v1781 = vld [vmem:[%s1748 + $0x100] sm:$0xff]
      %v1782 = vld [vmem:[%s1748 + $0x108] sm:$0xff]
      %v1783 = vld [vmem:[%s1748 + $0x110] sm:$0xff]
      %v1784 = vld [vmem:[%s1748 + $0x118] sm:$0xff]
      %v1785 = vld [vmem:[%s1748 + $0x120] sm:$0xff]
      %v1786 = vld [vmem:[%s1748 + $0x128] sm:$0xff]
      %v1787 = vld [vmem:[%s1748 + $0x130] sm:$0xff]
      %v1788 = vld [vmem:[%s1748 + $0x138] sm:$0xff]
      %v1789 = vld [vmem:[%s1748 + $0x140] sm:$0xff]
      %v1790 = vld [vmem:[%s1748 + $0x148] sm:$0xff]
      %v1791 = vld [vmem:[%s1748 + $0x150] sm:$0xff]
      %v1792 = vld [vmem:[%s1748 + $0x158] sm:$0xff]
      %v1793 = vld [vmem:[%s1748 + $0x160] sm:$0xff]
      %v1794 = vld [vmem:[%s1748 + $0x168] sm:$0xff]
      %v1795 = vld [vmem:[%s1748 + $0x170] sm:$0xff]
      %v1796 = vld [vmem:[%s1748 + $0x178] sm:$0xff]
      %v1797 = vld [vmem:[%s1748 + $0x180] sm:$0xff]
      %v1798 = vld [vmem:[%s1748 + $0x188] sm:$0xff]
      %v1799 = vld [vmem:[%s1748 + $0x190] sm:$0xff]
      %v1800 = vld [vmem:[%s1748 + $0x198] sm:$0xff]
      %v1801 = vld [vmem:[%s1748 + $0x1a0] sm:$0xff]
      %v1802 = vld [vmem:[%s1748 + $0x1a8] sm:$0xff]
      %v1803 = vld [vmem:[%s1748 + $0x1b0] sm:$0xff]
      %v1804 = vld [vmem:[%s1748 + $0x1b8] sm:$0xff]
      %v1805 = vld [vmem:[%s1748 + $0x1c0] sm:$0xff]
      %v1806 = vld [vmem:[%s1748 + $0x1c8] sm:$0xff]
      %v1807 = vld [vmem:[%s1748 + $0x1d0] sm:$0xff]
      %v1808 = vld [vmem:[%s1748 + $0x1d8] sm:$0xff]
      %v1809 = vld [vmem:[%s1748 + $0x1e0] sm:$0xff]
      %v1810 = vld [vmem:[%s1748 + $0x1e8] sm:$0xff]
      %v1811 = vld [vmem:[%s1748 + $0x1f0] sm:$0xff]
      %v1812 = vld [vmem:[%s1748 + $0x1f8] sm:$0xff]
      %v1877 = vunpack.c.l.b16 %v1749
      %v1878 = vunpack.c.h.b16 %v1749
      %v1879 = vunpack.c.l.b16 %v1750
      %v1880 = vunpack.c.h.b16 %v1750
      %v1881 = vunpack.c.l.b16 %v1751
      %v1882 = vunpack.c.h.b16 %v1751
      %v1883 = vunpack.c.l.b16 %v1752
      %v1884 = vunpack.c.h.b16 %v1752
      %v1885 = vunpack.c.l.b16 %v1753
      %v1886 = vunpack.c.h.b16 %v1753
      %v1887 = vunpack.c.l.b16 %v1754
      %v1888 = vunpack.c.h.b16 %v1754
      %v1889 = vunpack.c.l.b16 %v1755
      %v1890 = vunpack.c.h.b16 %v1755
      %v1891 = vunpack.c.l.b16 %v1756
      %v1892 = vunpack.c.h.b16 %v1756
      %v1893 = vunpack.c.l.b16 %v1757
      %v1894 = vunpack.c.h.b16 %v1757
      %v1895 = vunpack.c.l.b16 %v1758
      %v1896 = vunpack.c.h.b16 %v1758
      %v1897 = vunpack.c.l.b16 %v1759
      %v1898 = vunpack.c.h.b16 %v1759
      %v1899 = vunpack.c.l.b16 %v1760
      %v1900 = vunpack.c.h.b16 %v1760
      %v1901 = vunpack.c.l.b16 %v1761
      %v1902 = vunpack.c.h.b16 %v1761
      %v1903 = vunpack.c.l.b16 %v1762
      %v1904 = vunpack.c.h.b16 %v1762
      %v1905 = vunpack.c.l.b16 %v1763
      %v1906 = vunpack.c.h.b16 %v1763
      %v1907 = vunpack.c.l.b16 %v1764
      %v1908 = vunpack.c.h.b16 %v1764
      %v1909 = vunpack.c.l.b16 %v1765
      %v1910 = vunpack.c.h.b16 %v1765
      %v1911 = vunpack.c.l.b16 %v1766
      %v1912 = vunpack.c.h.b16 %v1766
      %v1913 = vunpack.c.l.b16 %v1767
      %v1914 = vunpack.c.h.b16 %v1767
      %v1915 = vunpack.c.l.b16 %v1768
      %v1916 = vunpack.c.h.b16 %v1768
      %v1917 = vunpack.c.l.b16 %v1769
      %v1918 = vunpack.c.h.b16 %v1769
      %v1919 = vunpack.c.l.b16 %v1770
      %v1920 = vunpack.c.h.b16 %v1770
      %v1921 = vunpack.c.l.b16 %v1771
      %v1922 = vunpack.c.h.b16 %v1771
      %v1923 = vunpack.c.l.b16 %v1772
      %v1924 = vunpack.c.h.b16 %v1772
      %v1925 = vunpack.c.l.b16 %v1773
      %v1926 = vunpack.c.h.b16 %v1773
      %v1927 = vunpack.c.l.b16 %v1774
      %v1928 = vunpack.c.h.b16 %v1774
      %v1929 = vunpack.c.l.b16 %v1775
      %v1930 = vunpack.c.h.b16 %v1775
      %v1931 = vunpack.c.l.b16 %v1776
      %v1932 = vunpack.c.h.b16 %v1776
      %v1933 = vunpack.c.l.b16 %v1777
      %v1934 = vunpack.c.h.b16 %v1777
      %v1935 = vunpack.c.l.b16 %v1778
      %v1936 = vunpack.c.h.b16 %v1778
      %v1937 = vunpack.c.l.b16 %v1779
      %v1938 = vunpack.c.h.b16 %v1779
      %v1939 = vunpack.c.l.b16 %v1780
      %v1940 = vunpack.c.h.b16 %v1780
      %v1941 = vunpack.c.l.b16 %v1781
      %v1942 = vunpack.c.h.b16 %v1781
      %v1943 = vunpack.c.l.b16 %v1782
      %v1944 = vunpack.c.h.b16 %v1782
      %v1945 = vunpack.c.l.b16 %v1783
      %v1946 = vunpack.c.h.b16 %v1783
      %v1947 = vunpack.c.l.b16 %v1784
      %v1948 = vunpack.c.h.b16 %v1784
      %v1949 = vunpack.c.l.b16 %v1785
      %v1950 = vunpack.c.h.b16 %v1785
      %v1951 = vunpack.c.l.b16 %v1786
      %v1952 = vunpack.c.h.b16 %v1786
      %v1953 = vunpack.c.l.b16 %v1787
      %v1954 = vunpack.c.h.b16 %v1787
      %v1955 = vunpack.c.l.b16 %v1788
      %v1956 = vunpack.c.h.b16 %v1788
      %v1957 = vunpack.c.l.b16 %v1789
      %v1958 = vunpack.c.h.b16 %v1789
      %v1959 = vunpack.c.l.b16 %v1790
      %v1960 = vunpack.c.h.b16 %v1790
      %v1961 = vunpack.c.l.b16 %v1791
      %v1962 = vunpack.c.h.b16 %v1791
      %v1963 = vunpack.c.l.b16 %v1792
      %v1964 = vunpack.c.h.b16 %v1792
      %v1965 = vunpack.c.l.b16 %v1793
      %v1966 = vunpack.c.h.b16 %v1793
      %v1967 = vunpack.c.l.b16 %v1794
      %v1968 = vunpack.c.h.b16 %v1794
      %v1969 = vunpack.c.l.b16 %v1795
      %v1970 = vunpack.c.h.b16 %v1795
      %v1971 = vunpack.c.l.b16 %v1796
      %v1972 = vunpack.c.h.b16 %v1796
      %v1973 = vunpack.c.l.b16 %v1797
      %v1974 = vunpack.c.h.b16 %v1797
      %v1975 = vunpack.c.l.b16 %v1798
      %v1976 = vunpack.c.h.b16 %v1798
      %v1977 = vunpack.c.l.b16 %v1799
      %v1978 = vunpack.c.h.b16 %v1799
      %v1979 = vunpack.c.l.b16 %v1800
      %v1980 = vunpack.c.h.b16 %v1800
      %v1981 = vunpack.c.l.b16 %v1801
      %v1982 = vunpack.c.h.b16 %v1801
      %v1983 = vunpack.c.l.b16 %v1802
      %v1984 = vunpack.c.h.b16 %v1802
      %v1985 = vunpack.c.l.b16 %v1803
      %v1986 = vunpack.c.h.b16 %v1803
      %v1987 = vunpack.c.l.b16 %v1804
      %v1988 = vunpack.c.h.b16 %v1804
      %v1989 = vunpack.c.l.b16 %v1805
      %v1990 = vunpack.c.h.b16 %v1805
      %v1991 = vunpack.c.l.b16 %v1806
      %v1992 = vunpack.c.h.b16 %v1806
      %v1993 = vunpack.c.l.b16 %v1807
      %v1994 = vunpack.c.h.b16 %v1807
      %v1995 = vunpack.c.l.b16 %v1808
      %v1996 = vunpack.c.h.b16 %v1808
      %v1997 = vunpack.c.l.b16 %v1809
      %v1998 = vunpack.c.h.b16 %v1809
      %v1999 = vunpack.c.l.b16 %v1810
      %v2000 = vunpack.c.h.b16 %v1810
      %v2001 = vunpack.c.l.b16 %v1811
      %v2002 = vunpack.c.h.b16 %v1811
      %v2003 = vunpack.c.l.b16 %v1812
      %v2004 = vunpack.c.h.b16 %v1812
      %v2005 = vpack.c.b16 %v1879, %v1877
      %v2006 = vpack.c.b16 %v1880, %v1878
      %v2007 = vpack.c.b16 %v1883, %v1881
      %v2008 = vpack.c.b16 %v1884, %v1882
      %v2009 = vpack.c.b16 %v1887, %v1885
      %v2010 = vpack.c.b16 %v1888, %v1886
      %v2011 = vpack.c.b16 %v1891, %v1889
      %v2012 = vpack.c.b16 %v1892, %v1890
      %v2013 = vpack.c.b16 %v1895, %v1893
      %v2014 = vpack.c.b16 %v1896, %v1894
      %v2015 = vpack.c.b16 %v1899, %v1897
      %v2016 = vpack.c.b16 %v1900, %v1898
      %v2017 = vpack.c.b16 %v1903, %v1901
      %v2018 = vpack.c.b16 %v1904, %v1902
      %v2019 = vpack.c.b16 %v1907, %v1905
      %v2020 = vpack.c.b16 %v1908, %v1906
      %v2021 = vpack.c.b16 %v1911, %v1909
      %v2022 = vpack.c.b16 %v1912, %v1910
      %v2023 = vpack.c.b16 %v1915, %v1913
      %v2024 = vpack.c.b16 %v1916, %v1914
      %v2025 = vpack.c.b16 %v1919, %v1917
      %v2026 = vpack.c.b16 %v1920, %v1918
      %v2027 = vpack.c.b16 %v1923, %v1921
      %v2028 = vpack.c.b16 %v1924, %v1922
      %v2029 = vpack.c.b16 %v1927, %v1925
      %v2030 = vpack.c.b16 %v1928, %v1926
      %v2031 = vpack.c.b16 %v1931, %v1929
      %v2032 = vpack.c.b16 %v1932, %v1930
      %v2033 = vpack.c.b16 %v1935, %v1933
      %v2034 = vpack.c.b16 %v1936, %v1934
      %v2035 = vpack.c.b16 %v1939, %v1937
      %v2036 = vpack.c.b16 %v1940, %v1938
      %v2037 = vpack.c.b16 %v1943, %v1941
      %v2038 = vpack.c.b16 %v1944, %v1942
      %v2039 = vpack.c.b16 %v1947, %v1945
      %v2040 = vpack.c.b16 %v1948, %v1946
      %v2041 = vpack.c.b16 %v1951, %v1949
      %v2042 = vpack.c.b16 %v1952, %v1950
      %v2043 = vpack.c.b16 %v1955, %v1953
      %v2044 = vpack.c.b16 %v1956, %v1954
      %v2045 = vpack.c.b16 %v1959, %v1957
      %v2046 = vpack.c.b16 %v1960, %v1958
      %v2047 = vpack.c.b16 %v1963, %v1961
      %v2048 = vpack.c.b16 %v1964, %v1962
      %v2049 = vpack.c.b16 %v1967, %v1965
      %v2050 = vpack.c.b16 %v1968, %v1966
      %v2051 = vpack.c.b16 %v1971, %v1969
      %v2052 = vpack.c.b16 %v1972, %v1970
      %v2053 = vpack.c.b16 %v1975, %v1973
      %v2054 = vpack.c.b16 %v1976, %v1974
      %v2055 = vpack.c.b16 %v1979, %v1977
      %v2056 = vpack.c.b16 %v1980, %v1978
      %v2057 = vpack.c.b16 %v1983, %v1981
      %v2058 = vpack.c.b16 %v1984, %v1982
      %v2059 = vpack.c.b16 %v1987, %v1985
      %v2060 = vpack.c.b16 %v1988, %v1986
      %v2061 = vpack.c.b16 %v1991, %v1989
      %v2062 = vpack.c.b16 %v1992, %v1990
      %v2063 = vpack.c.b16 %v1995, %v1993
      %v2064 = vpack.c.b16 %v1996, %v1994
      %v2065 = vpack.c.b16 %v1999, %v1997
      %v2066 = vpack.c.b16 %v2000, %v1998
      %v2067 = vpack.c.b16 %v2003, %v2001
      %v2068 = vpack.c.b16 %v2004, %v2002
      %2133 = vmatprep.subr.bf16.mxu0 %v2006
      %2134 = vmatpush1.bf16.msra.mxu0 %v2005
      %2135 = vmatprep.subr.bf16.mxu0 %v2008
      %2136 = vmatpush1.bf16.msra.mxu0 %v2007
      %2137 = vmatprep.subr.bf16.mxu0 %v2010
      %2138 = vmatpush1.bf16.msra.mxu0 %v2009
      %2139 = vmatprep.subr.bf16.mxu0 %v2012
      %2140 = vmatpush1.bf16.msra.mxu0 %v2011
      %2141 = vmatprep.subr.bf16.mxu0 %v2014
      %2142 = vmatpush1.bf16.msra.mxu0 %v2013
      %2143 = vmatprep.subr.bf16.mxu0 %v2016
      %2144 = vmatpush1.bf16.msra.mxu0 %v2015
      %2145 = vmatprep.subr.bf16.mxu0 %v2018
      %2146 = vmatpush1.bf16.msra.mxu0 %v2017
      %2147 = vmatprep.subr.bf16.mxu0 %v2020
      %2148 = vmatpush1.bf16.msra.mxu0 %v2019
      %2149 = vmatprep.subr.bf16.mxu0 %v2022
      %2150 = vmatpush1.bf16.msra.mxu0 %v2021
      %2151 = vmatprep.subr.bf16.mxu0 %v2024
      %2152 = vmatpush1.bf16.msra.mxu0 %v2023
      %2153 = vmatprep.subr.bf16.mxu0 %v2026
      %2154 = vmatpush1.bf16.msra.mxu0 %v2025
      %2155 = vmatprep.subr.bf16.mxu0 %v2028
      %2156 = vmatpush1.bf16.msra.mxu0 %v2027
      %2157 = vmatprep.subr.bf16.mxu0 %v2030
      %2158 = vmatpush1.bf16.msra.mxu0 %v2029
      %2159 = vmatprep.subr.bf16.mxu0 %v2032
      %2160 = vmatpush1.bf16.msra.mxu0 %v2031
      %2161 = vmatprep.subr.bf16.mxu0 %v2034
      %2162 = vmatpush1.bf16.msra.mxu0 %v2033
      %2163 = vmatprep.subr.bf16.mxu0 %v2036
      %2164 = vmatpush1.bf16.msra.mxu0 %v2035
      %2165 = vmatprep.mubr.bf16.mxu0 %v810
      %2166 = vmatmul.mubr.bf16.gmra.mrb[0].mxu0 %v809
      %v2167 = vpop.f32.mrb[0].mxu0
      %v2168 = vadd.f32 0.0, %v2167
      %v2169 = vpop.f32.mrb[0].mxu0
      %v2170 = vadd.f32 0.0, %v2169
      %v2171 = vpop.f32.mrb[0].mxu0
      %v2172 = vpop.f32.mrb[0].mxu0
      %2173 = vdwg.mxu0
      %2174 = vmatprep.subr.bf16.mxu0 %v2038
      %2175 = vmatpush1.bf16.msra.mxu0 %v2037
      %2176 = vmatprep.subr.bf16.mxu0 %v2040
      %2177 = vmatpush1.bf16.msra.mxu0 %v2039
      %2178 = vmatprep.subr.bf16.mxu0 %v2042
      %2179 = vmatpush1.bf16.msra.mxu0 %v2041
      %2180 = vmatprep.subr.bf16.mxu0 %v2044
      %2181 = vmatpush1.bf16.msra.mxu0 %v2043
      %2182 = vmatprep.subr.bf16.mxu0 %v2046
      %2183 = vmatpush1.bf16.msra.mxu0 %v2045
      %2184 = vmatprep.subr.bf16.mxu0 %v2048
      %2185 = vmatpush1.bf16.msra.mxu0 %v2047
      %2186 = vmatprep.subr.bf16.mxu0 %v2050
      %2187 = vmatpush1.bf16.msra.mxu0 %v2049
      %2188 = vmatprep.subr.bf16.mxu0 %v2052
      %2189 = vmatpush1.bf16.msra.mxu0 %v2051
      %2190 = vmatprep.subr.bf16.mxu0 %v2054
      %2191 = vmatpush1.bf16.msra.mxu0 %v2053
      %2192 = vmatprep.subr.bf16.mxu0 %v2056
      %2193 = vmatpush1.bf16.msra.mxu0 %v2055
      %2194 = vmatprep.subr.bf16.mxu0 %v2058
      %2195 = vmatpush1.bf16.msra.mxu0 %v2057
      %2196 = vmatprep.subr.bf16.mxu0 %v2060
      %2197 = vmatpush1.bf16.msra.mxu0 %v2059
      %2198 = vmatprep.subr.bf16.mxu0 %v2062
      %2199 = vmatpush1.bf16.msra.mxu0 %v2061
      %2200 = vmatprep.subr.bf16.mxu0 %v2064
      %2201 = vmatpush1.bf16.msra.mxu0 %v2063
      %2202 = vmatprep.subr.bf16.mxu0 %v2066
      %2203 = vmatpush1.bf16.msra.mxu0 %v2065
      %2204 = vmatprep.subr.bf16.mxu0 %v2068
      %2205 = vmatpush1.bf16.msra.mxu0 %v2067
      %2206 = vmatprep.mubr.bf16.mxu0 %v812
      %2207 = vmatmul.mubr.bf16.gmra.mrb[0].mxu0 %v811
      %v2208 = vpop.f32.mrb[0].mxu0
      %v2209 = vadd.f32 %v2168, %v2208
      %v2210 = vpop.f32.mrb[0].mxu0
      %v2211 = vadd.f32 %v2170, %v2210
      %v2212 = vpop.f32.mrb[0].mxu0
      %v2213 = vpop.f32.mrb[0].mxu0
      %2214 = vdwg.mxu0
      %v2215 = vmax.f32 %v1746, %v2209
      %v2216 = vmax.f32 %v1747, %v2211
      %v2217 = vpack.c.bf16 %v2215, %v2215
      %v2218 = vpack.c.bf16 %v2216, %v2216
      %v2219 = vld [vmem:[%s4] sm:$0xff]
      %v2220 = vld [vmem:[%s4 + $0x8] sm:$0xff]
      %v2221 = vld [vmem:[%s4 + $0x10] sm:$0xff]
      %v2222 = vld [vmem:[%s4 + $0x18] sm:$0xff]
      %v2223 = vld [vmem:[%s4 + $0x20] sm:$0xff]
      %v2224 = vld [vmem:[%s4 + $0x28] sm:$0xff]
      %v2225 = vld [vmem:[%s4 + $0x30] sm:$0xff]
      %v2226 = vld [vmem:[%s4 + $0x38] sm:$0xff]
      %v2227 = vld [vmem:[%s4 + $0x40] sm:$0xff]
      %v2228 = vld [vmem:[%s4 + $0x48] sm:$0xff]
      %v2229 = vld [vmem:[%s4 + $0x50] sm:$0xff]
      %v2230 = vld [vmem:[%s4 + $0x58] sm:$0xff]
      %v2231 = vld [vmem:[%s4 + $0x60] sm:$0xff]
      %v2232 = vld [vmem:[%s4 + $0x68] sm:$0xff]
      %v2233 = vld [vmem:[%s4 + $0x70] sm:$0xff]
      %v2234 = vld [vmem:[%s4 + $0x78] sm:$0xff]
      %v2235 = vld [vmem:[%s4 + $0x80] sm:$0xff]
      %v2236 = vld [vmem:[%s4 + $0x88] sm:$0xff]
      %v2237 = vld [vmem:[%s4 + $0x90] sm:$0xff]
      %v2238 = vld [vmem:[%s4 + $0x98] sm:$0xff]
      %v2239 = vld [vmem:[%s4 + $0xa0] sm:$0xff]
      %v2240 = vld [vmem:[%s4 + $0xa8] sm:$0xff]
      %v2241 = vld [vmem:[%s4 + $0xb0] sm:$0xff]
      %v2242 = vld [vmem:[%s4 + $0xb8] sm:$0xff]
      %v2243 = vld [vmem:[%s4 + $0xc0] sm:$0xff]
      %v2244 = vld [vmem:[%s4 + $0xc8] sm:$0xff]
      %v2245 = vld [vmem:[%s4 + $0xd0] sm:$0xff]
      %v2246 = vld [vmem:[%s4 + $0xd8] sm:$0xff]
      %v2247 = vld [vmem:[%s4 + $0xe0] sm:$0xff]
      %v2248 = vld [vmem:[%s4 + $0xe8] sm:$0xff]
      %v2249 = vld [vmem:[%s4 + $0xf0] sm:$0xff]
      %v2250 = vld [vmem:[%s4 + $0xf8] sm:$0xff]
      %v2251 = vld [vmem:[%s5] sm:$0x3]
      %v2253 = vlaneseq
      %v2254 = vshrl.u32 %v2253, 7
      %v2255 = vsub.s32 0, %v2254
      %v2256 = vrot.slane %v2251, %v2255
      %v2257 = vlaneseq
      %v2258 = vshrl.u32 %v2257, 7
      %v2259 = vsub.s32 1, %v2258
      %v2260 = vrot.slane %v2251, %v2259
      %v2295 = vunpack.c.l.b16 %v2219
      %v2296 = vunpack.c.h.b16 %v2219
      %v2297 = vunpack.c.l.b16 %v2220
      %v2298 = vunpack.c.h.b16 %v2220
      %v2299 = vunpack.c.l.b16 %v2221
      %v2300 = vunpack.c.h.b16 %v2221
      %v2301 = vunpack.c.l.b16 %v2222
      %v2302 = vunpack.c.h.b16 %v2222
      %v2303 = vunpack.c.l.b16 %v2223
      %v2304 = vunpack.c.h.b16 %v2223
      %v2305 = vunpack.c.l.b16 %v2224
      %v2306 = vunpack.c.h.b16 %v2224
      %v2307 = vunpack.c.l.b16 %v2225
      %v2308 = vunpack.c.h.b16 %v2225
      %v2309 = vunpack.c.l.b16 %v2226
      %v2310 = vunpack.c.h.b16 %v2226
      %v2311 = vunpack.c.l.b16 %v2227
      %v2312 = vunpack.c.h.b16 %v2227
      %v2313 = vunpack.c.l.b16 %v2228
      %v2314 = vunpack.c.h.b16 %v2228
      %v2315 = vunpack.c.l.b16 %v2229
      %v2316 = vunpack.c.h.b16 %v2229
      %v2317 = vunpack.c.l.b16 %v2230
      %v2318 = vunpack.c.h.b16 %v2230
      %v2319 = vunpack.c.l.b16 %v2231
      %v2320 = vunpack.c.h.b16 %v2231
      %v2321 = vunpack.c.l.b16 %v2232
      %v2322 = vunpack.c.h.b16 %v2232
      %v2323 = vunpack.c.l.b16 %v2233
      %v2324 = vunpack.c.h.b16 %v2233
      %v2325 = vunpack.c.l.b16 %v2234
      %v2326 = vunpack.c.h.b16 %v2234
      %v2327 = vunpack.c.l.b16 %v2235
      %v2328 = vunpack.c.h.b16 %v2235
      %v2329 = vunpack.c.l.b16 %v2236
      %v2330 = vunpack.c.h.b16 %v2236
      %v2331 = vunpack.c.l.b16 %v2237
      %v2332 = vunpack.c.h.b16 %v2237
      %v2333 = vunpack.c.l.b16 %v2238
      %v2334 = vunpack.c.h.b16 %v2238
      %v2335 = vunpack.c.l.b16 %v2239
      %v2336 = vunpack.c.h.b16 %v2239
      %v2337 = vunpack.c.l.b16 %v2240
      %v2338 = vunpack.c.h.b16 %v2240
      %v2339 = vunpack.c.l.b16 %v2241
      %v2340 = vunpack.c.h.b16 %v2241
      %v2341 = vunpack.c.l.b16 %v2242
      %v2342 = vunpack.c.h.b16 %v2242
      %v2343 = vunpack.c.l.b16 %v2243
      %v2344 = vunpack.c.h.b16 %v2243
      %v2345 = vunpack.c.l.b16 %v2244
      %v2346 = vunpack.c.h.b16 %v2244
      %v2347 = vunpack.c.l.b16 %v2245
      %v2348 = vunpack.c.h.b16 %v2245
      %v2349 = vunpack.c.l.b16 %v2246
      %v2350 = vunpack.c.h.b16 %v2246
      %v2351 = vunpack.c.l.b16 %v2247
      %v2352 = vunpack.c.h.b16 %v2247
      %v2353 = vunpack.c.l.b16 %v2248
      %v2354 = vunpack.c.h.b16 %v2248
      %v2355 = vunpack.c.l.b16 %v2249
      %v2356 = vunpack.c.h.b16 %v2249
      %v2357 = vunpack.c.l.b16 %v2250
      %v2358 = vunpack.c.h.b16 %v2250
      %v2359 = vpack.c.b16 %v2297, %v2295
      %v2360 = vpack.c.b16 %v2298, %v2296
      %v2361 = vpack.c.b16 %v2301, %v2299
      %v2362 = vpack.c.b16 %v2302, %v2300
      %v2363 = vpack.c.b16 %v2305, %v2303
      %v2364 = vpack.c.b16 %v2306, %v2304
      %v2365 = vpack.c.b16 %v2309, %v2307
      %v2366 = vpack.c.b16 %v2310, %v2308
      %v2367 = vpack.c.b16 %v2313, %v2311
      %v2368 = vpack.c.b16 %v2314, %v2312
      %v2369 = vpack.c.b16 %v2317, %v2315
      %v2370 = vpack.c.b16 %v2318, %v2316
      %v2371 = vpack.c.b16 %v2321, %v2319
      %v2372 = vpack.c.b16 %v2322, %v2320
      %v2373 = vpack.c.b16 %v2325, %v2323
      %v2374 = vpack.c.b16 %v2326, %v2324
      %v2375 = vpack.c.b16 %v2329, %v2327
      %v2376 = vpack.c.b16 %v2330, %v2328
      %v2377 = vpack.c.b16 %v2333, %v2331
      %v2378 = vpack.c.b16 %v2334, %v2332
      %v2379 = vpack.c.b16 %v2337, %v2335
      %v2380 = vpack.c.b16 %v2338, %v2336
      %v2381 = vpack.c.b16 %v2341, %v2339
      %v2382 = vpack.c.b16 %v2342, %v2340
      %v2383 = vpack.c.b16 %v2345, %v2343
      %v2384 = vpack.c.b16 %v2346, %v2344
      %v2385 = vpack.c.b16 %v2349, %v2347
      %v2386 = vpack.c.b16 %v2350, %v2348
      %v2387 = vpack.c.b16 %v2353, %v2351
      %v2388 = vpack.c.b16 %v2354, %v2352
      %v2389 = vpack.c.b16 %v2357, %v2355
      %v2390 = vpack.c.b16 %v2358, %v2356
      %2423 = vmatprep.subr.bf16.mxu0 %v2360
      %2424 = vmatpush1.bf16.msra.mxu0 %v2359
      %2425 = vmatprep.subr.bf16.mxu0 %v2362
      %2426 = vmatpush1.bf16.msra.mxu0 %v2361
      %2427 = vmatprep.subr.bf16.mxu0 %v2364
      %2428 = vmatpush1.bf16.msra.mxu0 %v2363
      %2429 = vmatprep.subr.bf16.mxu0 %v2366
      %2430 = vmatpush1.bf16.msra.mxu0 %v2365
      %2431 = vmatprep.subr.bf16.mxu0 %v2368
      %2432 = vmatpush1.bf16.msra.mxu0 %v2367
      %2433 = vmatprep.subr.bf16.mxu0 %v2370
      %2434 = vmatpush1.bf16.msra.mxu0 %v2369
      %2435 = vmatprep.subr.bf16.mxu0 %v2372
      %2436 = vmatpush1.bf16.msra.mxu0 %v2371
      %2437 = vmatprep.subr.bf16.mxu0 %v2374
      %2438 = vmatpush1.bf16.msra.mxu0 %v2373
      %2439 = vmatprep.subr.bf16.mxu0 %v2376
      %2440 = vmatpush1.bf16.msra.mxu0 %v2375
      %2441 = vmatprep.subr.bf16.mxu0 %v2378
      %2442 = vmatpush1.bf16.msra.mxu0 %v2377
      %2443 = vmatprep.subr.bf16.mxu0 %v2380
      %2444 = vmatpush1.bf16.msra.mxu0 %v2379
      %2445 = vmatprep.subr.bf16.mxu0 %v2382
      %2446 = vmatpush1.bf16.msra.mxu0 %v2381
      %2447 = vmatprep.subr.bf16.mxu0 %v2384
      %2448 = vmatpush1.bf16.msra.mxu0 %v2383
      %2449 = vmatprep.subr.bf16.mxu0 %v2386
      %2450 = vmatpush1.bf16.msra.mxu0 %v2385
      %2451 = vmatprep.subr.bf16.mxu0 %v2388
      %2452 = vmatpush1.bf16.msra.mxu0 %v2387
      %2453 = vmatprep.subr.bf16.mxu0 %v2390
      %2454 = vmatpush1.bf16.msra.mxu0 %v2389
      %2455 = vmatprep.mubr.bf16.mxu0 %v2218
      %2456 = vmatmul.mubr.bf16.gmra.mrb[0].mxu0 %v2217
      %v2457 = vpop.f32.mrb[0].mxu0
      %v2458 = vadd.f32 %v2256, %v2457
      %v2459 = vpop.f32.mrb[0].mxu0
      %v2460 = vadd.f32 %v2260, %v2459
      %v2461 = vpop.f32.mrb[0].mxu0
      %v2462 = vpop.f32.mrb[0].mxu0
      %2463 = vdwg.mxu0
      %v2464 = vmax.f32 %v2458, 0.0
      %v2465 = vmax.f32 %v2460, 0.0
      %v2466 = vpack.c.bf16 %v2464, %v2464
      %v2467 = vpack.c.bf16 %v2465, %v2465
      %s2468 = scalar_lea.vmem %s4, 256
      %v2469 = vld [vmem:[%s2468] sm:$0xff]
      %v2470 = vld [vmem:[%s2468 + $0x8] sm:$0xff]
      %v2471 = vld [vmem:[%s2468 + $0x10] sm:$0xff]
      %v2472 = vld [vmem:[%s2468 + $0x18] sm:$0xff]
      %v2473 = vld [vmem:[%s2468 + $0x20] sm:$0xff]
      %v2474 = vld [vmem:[%s2468 + $0x28] sm:$0xff]
      %v2475 = vld [vmem:[%s2468 + $0x30] sm:$0xff]
      %v2476 = vld [vmem:[%s2468 + $0x38] sm:$0xff]
      %v2477 = vld [vmem:[%s2468 + $0x40] sm:$0xff]
      %v2478 = vld [vmem:[%s2468 + $0x48] sm:$0xff]
      %v2479 = vld [vmem:[%s2468 + $0x50] sm:$0xff]
      %v2480 = vld [vmem:[%s2468 + $0x58] sm:$0xff]
      %v2481 = vld [vmem:[%s2468 + $0x60] sm:$0xff]
      %v2482 = vld [vmem:[%s2468 + $0x68] sm:$0xff]
      %v2483 = vld [vmem:[%s2468 + $0x70] sm:$0xff]
      %v2484 = vld [vmem:[%s2468 + $0x78] sm:$0xff]
      %v2485 = vld [vmem:[%s2468 + $0x80] sm:$0xff]
      %v2486 = vld [vmem:[%s2468 + $0x88] sm:$0xff]
      %v2487 = vld [vmem:[%s2468 + $0x90] sm:$0xff]
      %v2488 = vld [vmem:[%s2468 + $0x98] sm:$0xff]
      %v2489 = vld [vmem:[%s2468 + $0xa0] sm:$0xff]
      %v2490 = vld [vmem:[%s2468 + $0xa8] sm:$0xff]
      %v2491 = vld [vmem:[%s2468 + $0xb0] sm:$0xff]
      %v2492 = vld [vmem:[%s2468 + $0xb8] sm:$0xff]
      %v2493 = vld [vmem:[%s2468 + $0xc0] sm:$0xff]
      %v2494 = vld [vmem:[%s2468 + $0xc8] sm:$0xff]
      %v2495 = vld [vmem:[%s2468 + $0xd0] sm:$0xff]
      %v2496 = vld [vmem:[%s2468 + $0xd8] sm:$0xff]
      %v2497 = vld [vmem:[%s2468 + $0xe0] sm:$0xff]
      %v2498 = vld [vmem:[%s2468 + $0xe8] sm:$0xff]
      %v2499 = vld [vmem:[%s2468 + $0xf0] sm:$0xff]
      %v2500 = vld [vmem:[%s2468 + $0xf8] sm:$0xff]
      %s2501 = scalar_lea.vmem %s5, 2
      %v2502 = vld [vmem:[%s2501] sm:$0x3]
      %v2504 = vlaneseq
      %v2505 = vshrl.u32 %v2504, 7
      %v2506 = vsub.s32 0, %v2505
      %v2507 = vrot.slane %v2502, %v2506
      %v2508 = vlaneseq
      %v2509 = vshrl.u32 %v2508, 7
      %v2510 = vsub.s32 1, %v2509
      %v2511 = vrot.slane %v2502, %v2510
      %v2546 = vunpack.c.l.b16 %v2469
      %v2547 = vunpack.c.h.b16 %v2469
      %v2548 = vunpack.c.l.b16 %v2470
      %v2549 = vunpack.c.h.b16 %v2470
      %v2550 = vunpack.c.l.b16 %v2471
      %v2551 = vunpack.c.h.b16 %v2471
      %v2552 = vunpack.c.l.b16 %v2472
      %v2553 = vunpack.c.h.b16 %v2472
      %v2554 = vunpack.c.l.b16 %v2473
      %v2555 = vunpack.c.h.b16 %v2473
      %v2556 = vunpack.c.l.b16 %v2474
      %v2557 = vunpack.c.h.b16 %v2474
      %v2558 = vunpack.c.l.b16 %v2475
      %v2559 = vunpack.c.h.b16 %v2475
      %v2560 = vunpack.c.l.b16 %v2476
      %v2561 = vunpack.c.h.b16 %v2476
      %v2562 = vunpack.c.l.b16 %v2477
      %v2563 = vunpack.c.h.b16 %v2477
      %v2564 = vunpack.c.l.b16 %v2478
      %v2565 = vunpack.c.h.b16 %v2478
      %v2566 = vunpack.c.l.b16 %v2479
      %v2567 = vunpack.c.h.b16 %v2479
      %v2568 = vunpack.c.l.b16 %v2480
      %v2569 = vunpack.c.h.b16 %v2480
      %v2570 = vunpack.c.l.b16 %v2481
      %v2571 = vunpack.c.h.b16 %v2481
      %v2572 = vunpack.c.l.b16 %v2482
      %v2573 = vunpack.c.h.b16 %v2482
      %v2574 = vunpack.c.l.b16 %v2483
      %v2575 = vunpack.c.h.b16 %v2483
      %v2576 = vunpack.c.l.b16 %v2484
      %v2577 = vunpack.c.h.b16 %v2484
      %v2578 = vunpack.c.l.b16 %v2485
      %v2579 = vunpack.c.h.b16 %v2485
      %v2580 = vunpack.c.l.b16 %v2486
      %v2581 = vunpack.c.h.b16 %v2486
      %v2582 = vunpack.c.l.b16 %v2487
      %v2583 = vunpack.c.h.b16 %v2487
      %v2584 = vunpack.c.l.b16 %v2488
      %v2585 = vunpack.c.h.b16 %v2488
      %v2586 = vunpack.c.l.b16 %v2489
      %v2587 = vunpack.c.h.b16 %v2489
      %v2588 = vunpack.c.l.b16 %v2490
      %v2589 = vunpack.c.h.b16 %v2490
      %v2590 = vunpack.c.l.b16 %v2491
      %v2591 = vunpack.c.h.b16 %v2491
      %v2592 = vunpack.c.l.b16 %v2492
      %v2593 = vunpack.c.h.b16 %v2492
      %v2594 = vunpack.c.l.b16 %v2493
      %v2595 = vunpack.c.h.b16 %v2493
      %v2596 = vunpack.c.l.b16 %v2494
      %v2597 = vunpack.c.h.b16 %v2494
      %v2598 = vunpack.c.l.b16 %v2495
      %v2599 = vunpack.c.h.b16 %v2495
      %v2600 = vunpack.c.l.b16 %v2496
      %v2601 = vunpack.c.h.b16 %v2496
      %v2602 = vunpack.c.l.b16 %v2497
      %v2603 = vunpack.c.h.b16 %v2497
      %v2604 = vunpack.c.l.b16 %v2498
      %v2605 = vunpack.c.h.b16 %v2498
      %v2606 = vunpack.c.l.b16 %v2499
      %v2607 = vunpack.c.h.b16 %v2499
      %v2608 = vunpack.c.l.b16 %v2500
      %v2609 = vunpack.c.h.b16 %v2500
      %v2610 = vpack.c.b16 %v2548, %v2546
      %v2611 = vpack.c.b16 %v2549, %v2547
      %v2612 = vpack.c.b16 %v2552, %v2550
      %v2613 = vpack.c.b16 %v2553, %v2551
      %v2614 = vpack.c.b16 %v2556, %v2554
      %v2615 = vpack.c.b16 %v2557, %v2555
      %v2616 = vpack.c.b16 %v2560, %v2558
      %v2617 = vpack.c.b16 %v2561, %v2559
      %v2618 = vpack.c.b16 %v2564, %v2562
      %v2619 = vpack.c.b16 %v2565, %v2563
      %v2620 = vpack.c.b16 %v2568, %v2566
      %v2621 = vpack.c.b16 %v2569, %v2567
      %v2622 = vpack.c.b16 %v2572, %v2570
      %v2623 = vpack.c.b16 %v2573, %v2571
      %v2624 = vpack.c.b16 %v2576, %v2574
      %v2625 = vpack.c.b16 %v2577, %v2575
      %v2626 = vpack.c.b16 %v2580, %v2578
      %v2627 = vpack.c.b16 %v2581, %v2579
      %v2628 = vpack.c.b16 %v2584, %v2582
      %v2629 = vpack.c.b16 %v2585, %v2583
      %v2630 = vpack.c.b16 %v2588, %v2586
      %v2631 = vpack.c.b16 %v2589, %v2587
      %v2632 = vpack.c.b16 %v2592, %v2590
      %v2633 = vpack.c.b16 %v2593, %v2591
      %v2634 = vpack.c.b16 %v2596, %v2594
      %v2635 = vpack.c.b16 %v2597, %v2595
      %v2636 = vpack.c.b16 %v2600, %v2598
      %v2637 = vpack.c.b16 %v2601, %v2599
      %v2638 = vpack.c.b16 %v2604, %v2602
      %v2639 = vpack.c.b16 %v2605, %v2603
      %v2640 = vpack.c.b16 %v2608, %v2606
      %v2641 = vpack.c.b16 %v2609, %v2607
      %2674 = vmatprep.subr.bf16.mxu0 %v2611
      %2675 = vmatpush1.bf16.msra.mxu0 %v2610
      %2676 = vmatprep.subr.bf16.mxu0 %v2613
      %2677 = vmatpush1.bf16.msra.mxu0 %v2612
      %2678 = vmatprep.subr.bf16.mxu0 %v2615
      %2679 = vmatpush1.bf16.msra.mxu0 %v2614
      %2680 = vmatprep.subr.bf16.mxu0 %v2617
      %2681 = vmatpush1.bf16.msra.mxu0 %v2616
      %2682 = vmatprep.subr.bf16.mxu0 %v2619
      %2683 = vmatpush1.bf16.msra.mxu0 %v2618
      %2684 = vmatprep.subr.bf16.mxu0 %v2621
      %2685 = vmatpush1.bf16.msra.mxu0 %v2620
      %2686 = vmatprep.subr.bf16.mxu0 %v2623
      %2687 = vmatpush1.bf16.msra.mxu0 %v2622
      %2688 = vmatprep.subr.bf16.mxu0 %v2625
      %2689 = vmatpush1.bf16.msra.mxu0 %v2624
      %2690 = vmatprep.subr.bf16.mxu0 %v2627
      %2691 = vmatpush1.bf16.msra.mxu0 %v2626
      %2692 = vmatprep.subr.bf16.mxu0 %v2629
      %2693 = vmatpush1.bf16.msra.mxu0 %v2628
      %2694 = vmatprep.subr.bf16.mxu0 %v2631
      %2695 = vmatpush1.bf16.msra.mxu0 %v2630
      %2696 = vmatprep.subr.bf16.mxu0 %v2633
      %2697 = vmatpush1.bf16.msra.mxu0 %v2632
      %2698 = vmatprep.subr.bf16.mxu0 %v2635
      %2699 = vmatpush1.bf16.msra.mxu0 %v2634
      %2700 = vmatprep.subr.bf16.mxu0 %v2637
      %2701 = vmatpush1.bf16.msra.mxu0 %v2636
      %2702 = vmatprep.subr.bf16.mxu0 %v2639
      %2703 = vmatpush1.bf16.msra.mxu0 %v2638
      %2704 = vmatprep.subr.bf16.mxu0 %v2641
      %2705 = vmatpush1.bf16.msra.mxu0 %v2640
      %2706 = vmatprep.mubr.bf16.mxu0 %v2467
      %2707 = vmatmul.mubr.bf16.gmra.mrb[0].mxu0 %v2466
      %v2708 = vpop.f32.mrb[0].mxu0
      %v2709 = vadd.f32 %v2507, %v2708
      %v2710 = vpop.f32.mrb[0].mxu0
      %v2711 = vadd.f32 %v2511, %v2710
      %v2712 = vpop.f32.mrb[0].mxu0
      %v2713 = vpop.f32.mrb[0].mxu0
      %2714 = vdwg.mxu0
      %v2715 = vadd.f32 %v2709, %v2215
      %v2716 = vadd.f32 %v2711, %v2216
      %v2717 = vmax.f32 %v2715, 0.0
      %v2718 = vmax.f32 %v2716, 0.0
      %v2719 = vpack.c.bf16 %v2717, %v2717
      %v2720 = vpack.c.bf16 %v2718, %v2718
      %s2721 = scalar_lea.vmem %s4, 512
      %v2722 = vld [vmem:[%s2721] sm:$0xff]
      %v2723 = vld [vmem:[%s2721 + $0x8] sm:$0xff]
      %v2724 = vld [vmem:[%s2721 + $0x10] sm:$0xff]
      %v2725 = vld [vmem:[%s2721 + $0x18] sm:$0xff]
      %v2726 = vld [vmem:[%s2721 + $0x20] sm:$0xff]
      %v2727 = vld [vmem:[%s2721 + $0x28] sm:$0xff]
      %v2728 = vld [vmem:[%s2721 + $0x30] sm:$0xff]
      %v2729 = vld [vmem:[%s2721 + $0x38] sm:$0xff]
      %v2730 = vld [vmem:[%s2721 + $0x40] sm:$0xff]
      %v2731 = vld [vmem:[%s2721 + $0x48] sm:$0xff]
      %v2732 = vld [vmem:[%s2721 + $0x50] sm:$0xff]
      %v2733 = vld [vmem:[%s2721 + $0x58] sm:$0xff]
      %v2734 = vld [vmem:[%s2721 + $0x60] sm:$0xff]
      %v2735 = vld [vmem:[%s2721 + $0x68] sm:$0xff]
      %v2736 = vld [vmem:[%s2721 + $0x70] sm:$0xff]
      %v2737 = vld [vmem:[%s2721 + $0x78] sm:$0xff]
      %v2738 = vld [vmem:[%s2721 + $0x80] sm:$0xff]
      %v2739 = vld [vmem:[%s2721 + $0x88] sm:$0xff]
      %v2740 = vld [vmem:[%s2721 + $0x90] sm:$0xff]
      %v2741 = vld [vmem:[%s2721 + $0x98] sm:$0xff]
      %v2742 = vld [vmem:[%s2721 + $0xa0] sm:$0xff]
      %v2743 = vld [vmem:[%s2721 + $0xa8] sm:$0xff]
      %v2744 = vld [vmem:[%s2721 + $0xb0] sm:$0xff]
      %v2745 = vld [vmem:[%s2721 + $0xb8] sm:$0xff]
      %v2746 = vld [vmem:[%s2721 + $0xc0] sm:$0xff]
      %v2747 = vld [vmem:[%s2721 + $0xc8] sm:$0xff]
      %v2748 = vld [vmem:[%s2721 + $0xd0] sm:$0xff]
      %v2749 = vld [vmem:[%s2721 + $0xd8] sm:$0xff]
      %v2750 = vld [vmem:[%s2721 + $0xe0] sm:$0xff]
      %v2751 = vld [vmem:[%s2721 + $0xe8] sm:$0xff]
      %v2752 = vld [vmem:[%s2721 + $0xf0] sm:$0xff]
      %v2753 = vld [vmem:[%s2721 + $0xf8] sm:$0xff]
      %s2754 = scalar_lea.vmem %s5, 4
      %v2755 = vld [vmem:[%s2754] sm:$0x3]
      %v2757 = vlaneseq
      %v2758 = vshrl.u32 %v2757, 7
      %v2759 = vsub.s32 0, %v2758
      %v2760 = vrot.slane %v2755, %v2759
      %v2761 = vlaneseq
      %v2762 = vshrl.u32 %v2761, 7
      %v2763 = vsub.s32 1, %v2762
      %v2764 = vrot.slane %v2755, %v2763
      %v2799 = vunpack.c.l.b16 %v2722
      %v2800 = vunpack.c.h.b16 %v2722
      %v2801 = vunpack.c.l.b16 %v2723
      %v2802 = vunpack.c.h.b16 %v2723
      %v2803 = vunpack.c.l.b16 %v2724
      %v2804 = vunpack.c.h.b16 %v2724
      %v2805 = vunpack.c.l.b16 %v2725
      %v2806 = vunpack.c.h.b16 %v2725
      %v2807 = vunpack.c.l.b16 %v2726
      %v2808 = vunpack.c.h.b16 %v2726
      %v2809 = vunpack.c.l.b16 %v2727
      %v2810 = vunpack.c.h.b16 %v2727
      %v2811 = vunpack.c.l.b16 %v2728
      %v2812 = vunpack.c.h.b16 %v2728
      %v2813 = vunpack.c.l.b16 %v2729
      %v2814 = vunpack.c.h.b16 %v2729
      %v2815 = vunpack.c.l.b16 %v2730
      %v2816 = vunpack.c.h.b16 %v2730
      %v2817 = vunpack.c.l.b16 %v2731
      %v2818 = vunpack.c.h.b16 %v2731
      %v2819 = vunpack.c.l.b16 %v2732
      %v2820 = vunpack.c.h.b16 %v2732
      %v2821 = vunpack.c.l.b16 %v2733
      %v2822 = vunpack.c.h.b16 %v2733
      %v2823 = vunpack.c.l.b16 %v2734
      %v2824 = vunpack.c.h.b16 %v2734
      %v2825 = vunpack.c.l.b16 %v2735
      %v2826 = vunpack.c.h.b16 %v2735
      %v2827 = vunpack.c.l.b16 %v2736
      %v2828 = vunpack.c.h.b16 %v2736
      %v2829 = vunpack.c.l.b16 %v2737
      %v2830 = vunpack.c.h.b16 %v2737
      %v2831 = vunpack.c.l.b16 %v2738
      %v2832 = vunpack.c.h.b16 %v2738
      %v2833 = vunpack.c.l.b16 %v2739
      %v2834 = vunpack.c.h.b16 %v2739
      %v2835 = vunpack.c.l.b16 %v2740
      %v2836 = vunpack.c.h.b16 %v2740
      %v2837 = vunpack.c.l.b16 %v2741
      %v2838 = vunpack.c.h.b16 %v2741
      %v2839 = vunpack.c.l.b16 %v2742
      %v2840 = vunpack.c.h.b16 %v2742
      %v2841 = vunpack.c.l.b16 %v2743
      %v2842 = vunpack.c.h.b16 %v2743
      %v2843 = vunpack.c.l.b16 %v2744
      %v2844 = vunpack.c.h.b16 %v2744
      %v2845 = vunpack.c.l.b16 %v2745
      %v2846 = vunpack.c.h.b16 %v2745
      %v2847 = vunpack.c.l.b16 %v2746
      %v2848 = vunpack.c.h.b16 %v2746
      %v2849 = vunpack.c.l.b16 %v2747
      %v2850 = vunpack.c.h.b16 %v2747
      %v2851 = vunpack.c.l.b16 %v2748
      %v2852 = vunpack.c.h.b16 %v2748
      %v2853 = vunpack.c.l.b16 %v2749
      %v2854 = vunpack.c.h.b16 %v2749
      %v2855 = vunpack.c.l.b16 %v2750
      %v2856 = vunpack.c.h.b16 %v2750
      %v2857 = vunpack.c.l.b16 %v2751
      %v2858 = vunpack.c.h.b16 %v2751
      %v2859 = vunpack.c.l.b16 %v2752
      %v2860 = vunpack.c.h.b16 %v2752
      %v2861 = vunpack.c.l.b16 %v2753
      %v2862 = vunpack.c.h.b16 %v2753
      %v2863 = vpack.c.b16 %v2801, %v2799
      %v2864 = vpack.c.b16 %v2802, %v2800
      %v2865 = vpack.c.b16 %v2805, %v2803
      %v2866 = vpack.c.b16 %v2806, %v2804
      %v2867 = vpack.c.b16 %v2809, %v2807
      %v2868 = vpack.c.b16 %v2810, %v2808
      %v2869 = vpack.c.b16 %v2813, %v2811
      %v2870 = vpack.c.b16 %v2814, %v2812
      %v2871 = vpack.c.b16 %v2817, %v2815
      %v2872 = vpack.c.b16 %v2818, %v2816
      %v2873 = vpack.c.b16 %v2821, %v2819
      %v2874 = vpack.c.b16 %v2822, %v2820
      %v2875 = vpack.c.b16 %v2825, %v2823
      %v2876 = vpack.c.b16 %v2826, %v2824
      %v2877 = vpack.c.b16 %v2829, %v2827
      %v2878 = vpack.c.b16 %v2830, %v2828
      %v2879 = vpack.c.b16 %v2833, %v2831
      %v2880 = vpack.c.b16 %v2834, %v2832
      %v2881 = vpack.c.b16 %v2837, %v2835
      %v2882 = vpack.c.b16 %v2838, %v2836
      %v2883 = vpack.c.b16 %v2841, %v2839
      %v2884 = vpack.c.b16 %v2842, %v2840
      %v2885 = vpack.c.b16 %v2845, %v2843
      %v2886 = vpack.c.b16 %v2846, %v2844
      %v2887 = vpack.c.b16 %v2849, %v2847
      %v2888 = vpack.c.b16 %v2850, %v2848
      %v2889 = vpack.c.b16 %v2853, %v2851
      %v2890 = vpack.c.b16 %v2854, %v2852
      %v2891 = vpack.c.b16 %v2857, %v2855
      %v2892 = vpack.c.b16 %v2858, %v2856
      %v2893 = vpack.c.b16 %v2861, %v2859
      %v2894 = vpack.c.b16 %v2862, %v2860
      %2927 = vmatprep.subr.bf16.mxu0 %v2864
      %2928 = vmatpush1.bf16.msra.mxu0 %v2863
      %2929 = vmatprep.subr.bf16.mxu0 %v2866
      %2930 = vmatpush1.bf16.msra.mxu0 %v2865
      %2931 = vmatprep.subr.bf16.mxu0 %v2868
      %2932 = vmatpush1.bf16.msra.mxu0 %v2867
      %2933 = vmatprep.subr.bf16.mxu0 %v2870
      %2934 = vmatpush1.bf16.msra.mxu0 %v2869
      %2935 = vmatprep.subr.bf16.mxu0 %v2872
      %2936 = vmatpush1.bf16.msra.mxu0 %v2871
      %2937 = vmatprep.subr.bf16.mxu0 %v2874
      %2938 = vmatpush1.bf16.msra.mxu0 %v2873
      %2939 = vmatprep.subr.bf16.mxu0 %v2876
      %2940 = vmatpush1.bf16.msra.mxu0 %v2875
      %2941 = vmatprep.subr.bf16.mxu0 %v2878
      %2942 = vmatpush1.bf16.msra.mxu0 %v2877
      %2943 = vmatprep.subr.bf16.mxu0 %v2880
      %2944 = vmatpush1.bf16.msra.mxu0 %v2879
      %2945 = vmatprep.subr.bf16.mxu0 %v2882
      %2946 = vmatpush1.bf16.msra.mxu0 %v2881
      %2947 = vmatprep.subr.bf16.mxu0 %v2884
      %2948 = vmatpush1.bf16.msra.mxu0 %v2883
      %2949 = vmatprep.subr.bf16.mxu0 %v2886
      %2950 = vmatpush1.bf16.msra.mxu0 %v2885
      %2951 = vmatprep.subr.bf16.mxu0 %v2888
      %2952 = vmatpush1.bf16.msra.mxu0 %v2887
      %2953 = vmatprep.subr.bf16.mxu0 %v2890
      %2954 = vmatpush1.bf16.msra.mxu0 %v2889
      %2955 = vmatprep.subr.bf16.mxu0 %v2892
      %2956 = vmatpush1.bf16.msra.mxu0 %v2891
      %2957 = vmatprep.subr.bf16.mxu0 %v2894
      %2958 = vmatpush1.bf16.msra.mxu0 %v2893
      %2959 = vmatprep.mubr.bf16.mxu0 %v2720
      %2960 = vmatmul.mubr.bf16.gmra.mrb[0].mxu0 %v2719
      %v2961 = vpop.f32.mrb[0].mxu0
      %v2962 = vadd.f32 %v2760, %v2961
      %v2963 = vpop.f32.mrb[0].mxu0
      %v2964 = vadd.f32 %v2764, %v2963
      %v2965 = vpop.f32.mrb[0].mxu0
      %v2966 = vpop.f32.mrb[0].mxu0
      %2967 = vdwg.mxu0
      %v2968 = vmax.f32 %v2962, 0.0
      %v2969 = vmax.f32 %v2964, 0.0
      %v2970 = vpack.c.bf16 %v2968, %v2968
      %v2971 = vpack.c.bf16 %v2969, %v2969
      %s2972 = scalar_lea.vmem %s4, 768
      %v2973 = vld [vmem:[%s2972] sm:$0xff]
      %v2974 = vld [vmem:[%s2972 + $0x8] sm:$0xff]
      %v2975 = vld [vmem:[%s2972 + $0x10] sm:$0xff]
      %v2976 = vld [vmem:[%s2972 + $0x18] sm:$0xff]
      %v2977 = vld [vmem:[%s2972 + $0x20] sm:$0xff]
      %v2978 = vld [vmem:[%s2972 + $0x28] sm:$0xff]
      %v2979 = vld [vmem:[%s2972 + $0x30] sm:$0xff]
      %v2980 = vld [vmem:[%s2972 + $0x38] sm:$0xff]
      %v2981 = vld [vmem:[%s2972 + $0x40] sm:$0xff]
      %v2982 = vld [vmem:[%s2972 + $0x48] sm:$0xff]
      %v2983 = vld [vmem:[%s2972 + $0x50] sm:$0xff]
      %v2984 = vld [vmem:[%s2972 + $0x58] sm:$0xff]
      %v2985 = vld [vmem:[%s2972 + $0x60] sm:$0xff]
      %v2986 = vld [vmem:[%s2972 + $0x68] sm:$0xff]
      %v2987 = vld [vmem:[%s2972 + $0x70] sm:$0xff]
      %v2988 = vld [vmem:[%s2972 + $0x78] sm:$0xff]
      %v2989 = vld [vmem:[%s2972 + $0x80] sm:$0xff]
      %v2990 = vld [vmem:[%s2972 + $0x88] sm:$0xff]
      %v2991 = vld [vmem:[%s2972 + $0x90] sm:$0xff]
      %v2992 = vld [vmem:[%s2972 + $0x98] sm:$0xff]
      %v2993 = vld [vmem:[%s2972 + $0xa0] sm:$0xff]
      %v2994 = vld [vmem:[%s2972 + $0xa8] sm:$0xff]
      %v2995 = vld [vmem:[%s2972 + $0xb0] sm:$0xff]
      %v2996 = vld [vmem:[%s2972 + $0xb8] sm:$0xff]
      %v2997 = vld [vmem:[%s2972 + $0xc0] sm:$0xff]
      %v2998 = vld [vmem:[%s2972 + $0xc8] sm:$0xff]
      %v2999 = vld [vmem:[%s2972 + $0xd0] sm:$0xff]
      %v3000 = vld [vmem:[%s2972 + $0xd8] sm:$0xff]
      %v3001 = vld [vmem:[%s2972 + $0xe0] sm:$0xff]
      %v3002 = vld [vmem:[%s2972 + $0xe8] sm:$0xff]
      %v3003 = vld [vmem:[%s2972 + $0xf0] sm:$0xff]
      %v3004 = vld [vmem:[%s2972 + $0xf8] sm:$0xff]
      %s3005 = scalar_lea.vmem %s5, 6
      %v3006 = vld [vmem:[%s3005] sm:$0x3]
      %v3008 = vlaneseq
      %v3009 = vshrl.u32 %v3008, 7
      %v3010 = vsub.s32 0, %v3009
      %v3011 = vrot.slane %v3006, %v3010
      %v3012 = vlaneseq
      %v3013 = vshrl.u32 %v3012, 7
      %v3014 = vsub.s32 1, %v3013
      %v3015 = vrot.slane %v3006, %v3014
      %v3050 = vunpack.c.l.b16 %v2973
      %v3051 = vunpack.c.h.b16 %v2973
      %v3052 = vunpack.c.l.b16 %v2974
      %v3053 = vunpack.c.h.b16 %v2974
      %v3054 = vunpack.c.l.b16 %v2975
      %v3055 = vunpack.c.h.b16 %v2975
      %v3056 = vunpack.c.l.b16 %v2976
      %v3057 = vunpack.c.h.b16 %v2976
      %v3058 = vunpack.c.l.b16 %v2977
      %v3059 = vunpack.c.h.b16 %v2977
      %v3060 = vunpack.c.l.b16 %v2978
      %v3061 = vunpack.c.h.b16 %v2978
      %v3062 = vunpack.c.l.b16 %v2979
      %v3063 = vunpack.c.h.b16 %v2979
      %v3064 = vunpack.c.l.b16 %v2980
      %v3065 = vunpack.c.h.b16 %v2980
      %v3066 = vunpack.c.l.b16 %v2981
      %v3067 = vunpack.c.h.b16 %v2981
      %v3068 = vunpack.c.l.b16 %v2982
      %v3069 = vunpack.c.h.b16 %v2982
      %v3070 = vunpack.c.l.b16 %v2983
      %v3071 = vunpack.c.h.b16 %v2983
      %v3072 = vunpack.c.l.b16 %v2984
      %v3073 = vunpack.c.h.b16 %v2984
      %v3074 = vunpack.c.l.b16 %v2985
      %v3075 = vunpack.c.h.b16 %v2985
      %v3076 = vunpack.c.l.b16 %v2986
      %v3077 = vunpack.c.h.b16 %v2986
      %v3078 = vunpack.c.l.b16 %v2987
      %v3079 = vunpack.c.h.b16 %v2987
      %v3080 = vunpack.c.l.b16 %v2988
      %v3081 = vunpack.c.h.b16 %v2988
      %v3082 = vunpack.c.l.b16 %v2989
      %v3083 = vunpack.c.h.b16 %v2989
      %v3084 = vunpack.c.l.b16 %v2990
      %v3085 = vunpack.c.h.b16 %v2990
      %v3086 = vunpack.c.l.b16 %v2991
      %v3087 = vunpack.c.h.b16 %v2991
      %v3088 = vunpack.c.l.b16 %v2992
      %v3089 = vunpack.c.h.b16 %v2992
      %v3090 = vunpack.c.l.b16 %v2993
      %v3091 = vunpack.c.h.b16 %v2993
      %v3092 = vunpack.c.l.b16 %v2994
      %v3093 = vunpack.c.h.b16 %v2994
      %v3094 = vunpack.c.l.b16 %v2995
      %v3095 = vunpack.c.h.b16 %v2995
      %v3096 = vunpack.c.l.b16 %v2996
      %v3097 = vunpack.c.h.b16 %v2996
      %v3098 = vunpack.c.l.b16 %v2997
      %v3099 = vunpack.c.h.b16 %v2997
      %v3100 = vunpack.c.l.b16 %v2998
      %v3101 = vunpack.c.h.b16 %v2998
      %v3102 = vunpack.c.l.b16 %v2999
      %v3103 = vunpack.c.h.b16 %v2999
      %v3104 = vunpack.c.l.b16 %v3000
      %v3105 = vunpack.c.h.b16 %v3000
      %v3106 = vunpack.c.l.b16 %v3001
      %v3107 = vunpack.c.h.b16 %v3001
      %v3108 = vunpack.c.l.b16 %v3002
      %v3109 = vunpack.c.h.b16 %v3002
      %v3110 = vunpack.c.l.b16 %v3003
      %v3111 = vunpack.c.h.b16 %v3003
      %v3112 = vunpack.c.l.b16 %v3004
      %v3113 = vunpack.c.h.b16 %v3004
      %v3114 = vpack.c.b16 %v3052, %v3050
      %v3115 = vpack.c.b16 %v3053, %v3051
      %v3116 = vpack.c.b16 %v3056, %v3054
      %v3117 = vpack.c.b16 %v3057, %v3055
      %v3118 = vpack.c.b16 %v3060, %v3058
      %v3119 = vpack.c.b16 %v3061, %v3059
      %v3120 = vpack.c.b16 %v3064, %v3062
      %v3121 = vpack.c.b16 %v3065, %v3063
      %v3122 = vpack.c.b16 %v3068, %v3066
      %v3123 = vpack.c.b16 %v3069, %v3067
      %v3124 = vpack.c.b16 %v3072, %v3070
      %v3125 = vpack.c.b16 %v3073, %v3071
      %v3126 = vpack.c.b16 %v3076, %v3074
      %v3127 = vpack.c.b16 %v3077, %v3075
      %v3128 = vpack.c.b16 %v3080, %v3078
      %v3129 = vpack.c.b16 %v3081, %v3079
      %v3130 = vpack.c.b16 %v3084, %v3082
      %v3131 = vpack.c.b16 %v3085, %v3083
      %v3132 = vpack.c.b16 %v3088, %v3086
      %v3133 = vpack.c.b16 %v3089, %v3087
      %v3134 = vpack.c.b16 %v3092, %v3090
      %v3135 = vpack.c.b16 %v3093, %v3091
      %v3136 = vpack.c.b16 %v3096, %v3094
      %v3137 = vpack.c.b16 %v3097, %v3095
      %v3138 = vpack.c.b16 %v3100, %v3098
      %v3139 = vpack.c.b16 %v3101, %v3099
      %v3140 = vpack.c.b16 %v3104, %v3102
      %v3141 = vpack.c.b16 %v3105, %v3103
      %v3142 = vpack.c.b16 %v3108, %v3106
      %v3143 = vpack.c.b16 %v3109, %v3107
      %v3144 = vpack.c.b16 %v3112, %v3110
      %v3145 = vpack.c.b16 %v3113, %v3111
      %3178 = vmatprep.subr.bf16.mxu0 %v3115
      %3179 = vmatpush1.bf16.msra.mxu0 %v3114
      %3180 = vmatprep.subr.bf16.mxu0 %v3117
      %3181 = vmatpush1.bf16.msra.mxu0 %v3116
      %3182 = vmatprep.subr.bf16.mxu0 %v3119
      %3183 = vmatpush1.bf16.msra.mxu0 %v3118
      %3184 = vmatprep.subr.bf16.mxu0 %v3121
      %3185 = vmatpush1.bf16.msra.mxu0 %v3120
      %3186 = vmatprep.subr.bf16.mxu0 %v3123
      %3187 = vmatpush1.bf16.msra.mxu0 %v3122
      %3188 = vmatprep.subr.bf16.mxu0 %v3125
      %3189 = vmatpush1.bf16.msra.mxu0 %v3124
      %3190 = vmatprep.subr.bf16.mxu0 %v3127
      %3191 = vmatpush1.bf16.msra.mxu0 %v3126
      %3192 = vmatprep.subr.bf16.mxu0 %v3129
      %3193 = vmatpush1.bf16.msra.mxu0 %v3128
      %3194 = vmatprep.subr.bf16.mxu0 %v3131
      %3195 = vmatpush1.bf16.msra.mxu0 %v3130
      %3196 = vmatprep.subr.bf16.mxu0 %v3133
      %3197 = vmatpush1.bf16.msra.mxu0 %v3132
      %3198 = vmatprep.subr.bf16.mxu0 %v3135
      %3199 = vmatpush1.bf16.msra.mxu0 %v3134
      %3200 = vmatprep.subr.bf16.mxu0 %v3137
      %3201 = vmatpush1.bf16.msra.mxu0 %v3136
      %3202 = vmatprep.subr.bf16.mxu0 %v3139
      %3203 = vmatpush1.bf16.msra.mxu0 %v3138
      %3204 = vmatprep.subr.bf16.mxu0 %v3141
      %3205 = vmatpush1.bf16.msra.mxu0 %v3140
      %3206 = vmatprep.subr.bf16.mxu0 %v3143
      %3207 = vmatpush1.bf16.msra.mxu0 %v3142
      %3208 = vmatprep.subr.bf16.mxu0 %v3145
      %3209 = vmatpush1.bf16.msra.mxu0 %v3144
      %3210 = vmatprep.mubr.bf16.mxu0 %v2971
      %3211 = vmatmul.mubr.bf16.gmra.mrb[0].mxu0 %v2970
      %v3212 = vpop.f32.mrb[0].mxu0
      %v3213 = vadd.f32 %v3011, %v3212
      %v3214 = vpop.f32.mrb[0].mxu0
      %v3215 = vadd.f32 %v3015, %v3214
      %v3216 = vpop.f32.mrb[0].mxu0
      %v3217 = vpop.f32.mrb[0].mxu0
      %3218 = vdwg.mxu0
      %s3219 = scalar_lea.vmem %s4, 1024
      %v3220 = vld [vmem:[%s3219] sm:$0xff]
      %v3221 = vld [vmem:[%s3219 + $0x8] sm:$0xff]
      %v3222 = vld [vmem:[%s3219 + $0x10] sm:$0xff]
      %v3223 = vld [vmem:[%s3219 + $0x18] sm:$0xff]
      %v3224 = vld [vmem:[%s3219 + $0x20] sm:$0xff]
      %v3225 = vld [vmem:[%s3219 + $0x28] sm:$0xff]
      %v3226 = vld [vmem:[%s3219 + $0x30] sm:$0xff]
      %v3227 = vld [vmem:[%s3219 + $0x38] sm:$0xff]
      %v3228 = vld [vmem:[%s3219 + $0x40] sm:$0xff]
      %v3229 = vld [vmem:[%s3219 + $0x48] sm:$0xff]
      %v3230 = vld [vmem:[%s3219 + $0x50] sm:$0xff]
      %v3231 = vld [vmem:[%s3219 + $0x58] sm:$0xff]
      %v3232 = vld [vmem:[%s3219 + $0x60] sm:$0xff]
      %v3233 = vld [vmem:[%s3219 + $0x68] sm:$0xff]
      %v3234 = vld [vmem:[%s3219 + $0x70] sm:$0xff]
      %v3235 = vld [vmem:[%s3219 + $0x78] sm:$0xff]
      %v3236 = vld [vmem:[%s3219 + $0x80] sm:$0xff]
      %v3237 = vld [vmem:[%s3219 + $0x88] sm:$0xff]
      %v3238 = vld [vmem:[%s3219 + $0x90] sm:$0xff]
      %v3239 = vld [vmem:[%s3219 + $0x98] sm:$0xff]
      %v3240 = vld [vmem:[%s3219 + $0xa0] sm:$0xff]
      %v3241 = vld [vmem:[%s3219 + $0xa8] sm:$0xff]
      %v3242 = vld [vmem:[%s3219 + $0xb0] sm:$0xff]
      %v3243 = vld [vmem:[%s3219 + $0xb8] sm:$0xff]
      %v3244 = vld [vmem:[%s3219 + $0xc0] sm:$0xff]
      %v3245 = vld [vmem:[%s3219 + $0xc8] sm:$0xff]
      %v3246 = vld [vmem:[%s3219 + $0xd0] sm:$0xff]
      %v3247 = vld [vmem:[%s3219 + $0xd8] sm:$0xff]
      %v3248 = vld [vmem:[%s3219 + $0xe0] sm:$0xff]
      %v3249 = vld [vmem:[%s3219 + $0xe8] sm:$0xff]
      %v3250 = vld [vmem:[%s3219 + $0xf0] sm:$0xff]
      %v3251 = vld [vmem:[%s3219 + $0xf8] sm:$0xff]
      %s3252 = scalar_lea.vmem %s5, 8
      %v3253 = vld [vmem:[%s3252] sm:$0x3]
      %v3255 = vlaneseq
      %v3256 = vshrl.u32 %v3255, 7
      %v3257 = vsub.s32 0, %v3256
      %v3258 = vrot.slane %v3253, %v3257
      %v3259 = vlaneseq
      %v3260 = vshrl.u32 %v3259, 7
      %v3261 = vsub.s32 1, %v3260
      %v3262 = vrot.slane %v3253, %v3261
      %v3297 = vunpack.c.l.b16 %v3220
      %v3298 = vunpack.c.h.b16 %v3220
      %v3299 = vunpack.c.l.b16 %v3221
      %v3300 = vunpack.c.h.b16 %v3221
      %v3301 = vunpack.c.l.b16 %v3222
      %v3302 = vunpack.c.h.b16 %v3222
      %v3303 = vunpack.c.l.b16 %v3223
      %v3304 = vunpack.c.h.b16 %v3223
      %v3305 = vunpack.c.l.b16 %v3224
      %v3306 = vunpack.c.h.b16 %v3224
      %v3307 = vunpack.c.l.b16 %v3225
      %v3308 = vunpack.c.h.b16 %v3225
      %v3309 = vunpack.c.l.b16 %v3226
      %v3310 = vunpack.c.h.b16 %v3226
      %v3311 = vunpack.c.l.b16 %v3227
      %v3312 = vunpack.c.h.b16 %v3227
      %v3313 = vunpack.c.l.b16 %v3228
      %v3314 = vunpack.c.h.b16 %v3228
      %v3315 = vunpack.c.l.b16 %v3229
      %v3316 = vunpack.c.h.b16 %v3229
      %v3317 = vunpack.c.l.b16 %v3230
      %v3318 = vunpack.c.h.b16 %v3230
      %v3319 = vunpack.c.l.b16 %v3231
      %v3320 = vunpack.c.h.b16 %v3231
      %v3321 = vunpack.c.l.b16 %v3232
      %v3322 = vunpack.c.h.b16 %v3232
      %v3323 = vunpack.c.l.b16 %v3233
      %v3324 = vunpack.c.h.b16 %v3233
      %v3325 = vunpack.c.l.b16 %v3234
      %v3326 = vunpack.c.h.b16 %v3234
      %v3327 = vunpack.c.l.b16 %v3235
      %v3328 = vunpack.c.h.b16 %v3235
      %v3329 = vunpack.c.l.b16 %v3236
      %v3330 = vunpack.c.h.b16 %v3236
      %v3331 = vunpack.c.l.b16 %v3237
      %v3332 = vunpack.c.h.b16 %v3237
      %v3333 = vunpack.c.l.b16 %v3238
      %v3334 = vunpack.c.h.b16 %v3238
      %v3335 = vunpack.c.l.b16 %v3239
      %v3336 = vunpack.c.h.b16 %v3239
      %v3337 = vunpack.c.l.b16 %v3240
      %v3338 = vunpack.c.h.b16 %v3240
      %v3339 = vunpack.c.l.b16 %v3241
      %v3340 = vunpack.c.h.b16 %v3241
      %v3341 = vunpack.c.l.b16 %v3242
      %v3342 = vunpack.c.h.b16 %v3242
      %v3343 = vunpack.c.l.b16 %v3243
      %v3344 = vunpack.c.h.b16 %v3243
      %v3345 = vunpack.c.l.b16 %v3244
      %v3346 = vunpack.c.h.b16 %v3244
      %v3347 = vunpack.c.l.b16 %v3245
      %v3348 = vunpack.c.h.b16 %v3245
      %v3349 = vunpack.c.l.b16 %v3246
      %v3350 = vunpack.c.h.b16 %v3246
      %v3351 = vunpack.c.l.b16 %v3247
      %v3352 = vunpack.c.h.b16 %v3247
      %v3353 = vunpack.c.l.b16 %v3248
      %v3354 = vunpack.c.h.b16 %v3248
      %v3355 = vunpack.c.l.b16 %v3249
      %v3356 = vunpack.c.h.b16 %v3249
      %v3357 = vunpack.c.l.b16 %v3250
      %v3358 = vunpack.c.h.b16 %v3250
      %v3359 = vunpack.c.l.b16 %v3251
      %v3360 = vunpack.c.h.b16 %v3251
      %v3361 = vpack.c.b16 %v3299, %v3297
      %v3362 = vpack.c.b16 %v3300, %v3298
      %v3363 = vpack.c.b16 %v3303, %v3301
      %v3364 = vpack.c.b16 %v3304, %v3302
      %v3365 = vpack.c.b16 %v3307, %v3305
      %v3366 = vpack.c.b16 %v3308, %v3306
      %v3367 = vpack.c.b16 %v3311, %v3309
      %v3368 = vpack.c.b16 %v3312, %v3310
      %v3369 = vpack.c.b16 %v3315, %v3313
      %v3370 = vpack.c.b16 %v3316, %v3314
      %v3371 = vpack.c.b16 %v3319, %v3317
      %v3372 = vpack.c.b16 %v3320, %v3318
      %v3373 = vpack.c.b16 %v3323, %v3321
      %v3374 = vpack.c.b16 %v3324, %v3322
      %v3375 = vpack.c.b16 %v3327, %v3325
      %v3376 = vpack.c.b16 %v3328, %v3326
      %v3377 = vpack.c.b16 %v3331, %v3329
      %v3378 = vpack.c.b16 %v3332, %v3330
      %v3379 = vpack.c.b16 %v3335, %v3333
      %v3380 = vpack.c.b16 %v3336, %v3334
      %v3381 = vpack.c.b16 %v3339, %v3337
      %v3382 = vpack.c.b16 %v3340, %v3338
      %v3383 = vpack.c.b16 %v3343, %v3341
      %v3384 = vpack.c.b16 %v3344, %v3342
      %v3385 = vpack.c.b16 %v3347, %v3345
      %v3386 = vpack.c.b16 %v3348, %v3346
      %v3387 = vpack.c.b16 %v3351, %v3349
      %v3388 = vpack.c.b16 %v3352, %v3350
      %v3389 = vpack.c.b16 %v3355, %v3353
      %v3390 = vpack.c.b16 %v3356, %v3354
      %v3391 = vpack.c.b16 %v3359, %v3357
      %v3392 = vpack.c.b16 %v3360, %v3358
      %3425 = vmatprep.subr.bf16.mxu0 %v3362
      %3426 = vmatpush1.bf16.msra.mxu0 %v3361
      %3427 = vmatprep.subr.bf16.mxu0 %v3364
      %3428 = vmatpush1.bf16.msra.mxu0 %v3363
      %3429 = vmatprep.subr.bf16.mxu0 %v3366
      %3430 = vmatpush1.bf16.msra.mxu0 %v3365
      %3431 = vmatprep.subr.bf16.mxu0 %v3368
      %3432 = vmatpush1.bf16.msra.mxu0 %v3367
      %3433 = vmatprep.subr.bf16.mxu0 %v3370
      %3434 = vmatpush1.bf16.msra.mxu0 %v3369
      %3435 = vmatprep.subr.bf16.mxu0 %v3372
      %3436 = vmatpush1.bf16.msra.mxu0 %v3371
      %3437 = vmatprep.subr.bf16.mxu0 %v3374
      %3438 = vmatpush1.bf16.msra.mxu0 %v3373
      %3439 = vmatprep.subr.bf16.mxu0 %v3376
      %3440 = vmatpush1.bf16.msra.mxu0 %v3375
      %3441 = vmatprep.subr.bf16.mxu0 %v3378
      %3442 = vmatpush1.bf16.msra.mxu0 %v3377
      %3443 = vmatprep.subr.bf16.mxu0 %v3380
      %3444 = vmatpush1.bf16.msra.mxu0 %v3379
      %3445 = vmatprep.subr.bf16.mxu0 %v3382
      %3446 = vmatpush1.bf16.msra.mxu0 %v3381
      %3447 = vmatprep.subr.bf16.mxu0 %v3384
      %3448 = vmatpush1.bf16.msra.mxu0 %v3383
      %3449 = vmatprep.subr.bf16.mxu0 %v3386
      %3450 = vmatpush1.bf16.msra.mxu0 %v3385
      %3451 = vmatprep.subr.bf16.mxu0 %v3388
      %3452 = vmatpush1.bf16.msra.mxu0 %v3387
      %3453 = vmatprep.subr.bf16.mxu0 %v3390
      %3454 = vmatpush1.bf16.msra.mxu0 %v3389
      %3455 = vmatprep.subr.bf16.mxu0 %v3392
      %3456 = vmatpush1.bf16.msra.mxu0 %v3391
      %3457 = vmatprep.mubr.bf16.mxu0 %v2720
      %3458 = vmatmul.mubr.bf16.gmra.mrb[0].mxu0 %v2719
      %v3459 = vpop.f32.mrb[0].mxu0
      %v3460 = vadd.f32 %v3258, %v3459
      %v3461 = vpop.f32.mrb[0].mxu0
      %v3462 = vadd.f32 %v3262, %v3461
      %v3463 = vpop.f32.mrb[0].mxu0
      %v3464 = vpop.f32.mrb[0].mxu0
      %3465 = vdwg.mxu0
      %v3466 = vadd.f32 %v3213, %v3460
      %v3467 = vadd.f32 %v3215, %v3462
      %v3468 = vmax.f32 %v3466, 0.0
      %v3469 = vmax.f32 %v3467, 0.0
      %v3470 = vpack.c.bf16 %v3468, %v3468
      %v3471 = vpack.c.bf16 %v3469, %v3469
      %s3472 = scalar_lea.vmem %s4, 1280
      %v3473 = vld [vmem:[%s3472] sm:$0xff]
      %v3474 = vld [vmem:[%s3472 + $0x8] sm:$0xff]
      %v3475 = vld [vmem:[%s3472 + $0x10] sm:$0xff]
      %v3476 = vld [vmem:[%s3472 + $0x18] sm:$0xff]
      %v3477 = vld [vmem:[%s3472 + $0x20] sm:$0xff]
      %v3478 = vld [vmem:[%s3472 + $0x28] sm:$0xff]
      %v3479 = vld [vmem:[%s3472 + $0x30] sm:$0xff]
      %v3480 = vld [vmem:[%s3472 + $0x38] sm:$0xff]
      %v3481 = vld [vmem:[%s3472 + $0x40] sm:$0xff]
      %v3482 = vld [vmem:[%s3472 + $0x48] sm:$0xff]
      %v3483 = vld [vmem:[%s3472 + $0x50] sm:$0xff]
      %v3484 = vld [vmem:[%s3472 + $0x58] sm:$0xff]
      %v3485 = vld [vmem:[%s3472 + $0x60] sm:$0xff]
      %v3486 = vld [vmem:[%s3472 + $0x68] sm:$0xff]
      %v3487 = vld [vmem:[%s3472 + $0x70] sm:$0xff]
      %v3488 = vld [vmem:[%s3472 + $0x78] sm:$0xff]
      %v3489 = vld [vmem:[%s3472 + $0x80] sm:$0xff]
      %v3490 = vld [vmem:[%s3472 + $0x88] sm:$0xff]
      %v3491 = vld [vmem:[%s3472 + $0x90] sm:$0xff]
      %v3492 = vld [vmem:[%s3472 + $0x98] sm:$0xff]
      %v3493 = vld [vmem:[%s3472 + $0xa0] sm:$0xff]
      %v3494 = vld [vmem:[%s3472 + $0xa8] sm:$0xff]
      %v3495 = vld [vmem:[%s3472 + $0xb0] sm:$0xff]
      %v3496 = vld [vmem:[%s3472 + $0xb8] sm:$0xff]
      %v3497 = vld [vmem:[%s3472 + $0xc0] sm:$0xff]
      %v3498 = vld [vmem:[%s3472 + $0xc8] sm:$0xff]
      %v3499 = vld [vmem:[%s3472 + $0xd0] sm:$0xff]
      %v3500 = vld [vmem:[%s3472 + $0xd8] sm:$0xff]
      %v3501 = vld [vmem:[%s3472 + $0xe0] sm:$0xff]
      %v3502 = vld [vmem:[%s3472 + $0xe8] sm:$0xff]
      %v3503 = vld [vmem:[%s3472 + $0xf0] sm:$0xff]
      %v3504 = vld [vmem:[%s3472 + $0xf8] sm:$0xff]
      %s3505 = scalar_lea.vmem %s5, 10
      %v3506 = vld [vmem:[%s3505] sm:$0x3]
      %v3508 = vlaneseq
      %v3509 = vshrl.u32 %v3508, 7
      %v3510 = vsub.s32 0, %v3509
      %v3511 = vrot.slane %v3506, %v3510
      %v3512 = vlaneseq
      %v3513 = vshrl.u32 %v3512, 7
      %v3514 = vsub.s32 1, %v3513
      %v3515 = vrot.slane %v3506, %v3514
      %v3550 = vunpack.c.l.b16 %v3473
      %v3551 = vunpack.c.h.b16 %v3473
      %v3552 = vunpack.c.l.b16 %v3474
      %v3553 = vunpack.c.h.b16 %v3474
      %v3554 = vunpack.c.l.b16 %v3475
      %v3555 = vunpack.c.h.b16 %v3475
      %v3556 = vunpack.c.l.b16 %v3476
      %v3557 = vunpack.c.h.b16 %v3476
      %v3558 = vunpack.c.l.b16 %v3477
      %v3559 = vunpack.c.h.b16 %v3477
      %v3560 = vunpack.c.l.b16 %v3478
      %v3561 = vunpack.c.h.b16 %v3478
      %v3562 = vunpack.c.l.b16 %v3479
      %v3563 = vunpack.c.h.b16 %v3479
      %v3564 = vunpack.c.l.b16 %v3480
      %v3565 = vunpack.c.h.b16 %v3480
      %v3566 = vunpack.c.l.b16 %v3481
      %v3567 = vunpack.c.h.b16 %v3481
      %v3568 = vunpack.c.l.b16 %v3482
      %v3569 = vunpack.c.h.b16 %v3482
      %v3570 = vunpack.c.l.b16 %v3483
      %v3571 = vunpack.c.h.b16 %v3483
      %v3572 = vunpack.c.l.b16 %v3484
      %v3573 = vunpack.c.h.b16 %v3484
      %v3574 = vunpack.c.l.b16 %v3485
      %v3575 = vunpack.c.h.b16 %v3485
      %v3576 = vunpack.c.l.b16 %v3486
      %v3577 = vunpack.c.h.b16 %v3486
      %v3578 = vunpack.c.l.b16 %v3487
      %v3579 = vunpack.c.h.b16 %v3487
      %v3580 = vunpack.c.l.b16 %v3488
      %v3581 = vunpack.c.h.b16 %v3488
      %v3582 = vunpack.c.l.b16 %v3489
      %v3583 = vunpack.c.h.b16 %v3489
      %v3584 = vunpack.c.l.b16 %v3490
      %v3585 = vunpack.c.h.b16 %v3490
      %v3586 = vunpack.c.l.b16 %v3491
      %v3587 = vunpack.c.h.b16 %v3491
      %v3588 = vunpack.c.l.b16 %v3492
      %v3589 = vunpack.c.h.b16 %v3492
      %v3590 = vunpack.c.l.b16 %v3493
      %v3591 = vunpack.c.h.b16 %v3493
      %v3592 = vunpack.c.l.b16 %v3494
      %v3593 = vunpack.c.h.b16 %v3494
      %v3594 = vunpack.c.l.b16 %v3495
      %v3595 = vunpack.c.h.b16 %v3495
      %v3596 = vunpack.c.l.b16 %v3496
      %v3597 = vunpack.c.h.b16 %v3496
      %v3598 = vunpack.c.l.b16 %v3497
      %v3599 = vunpack.c.h.b16 %v3497
      %v3600 = vunpack.c.l.b16 %v3498
      %v3601 = vunpack.c.h.b16 %v3498
      %v3602 = vunpack.c.l.b16 %v3499
      %v3603 = vunpack.c.h.b16 %v3499
      %v3604 = vunpack.c.l.b16 %v3500
      %v3605 = vunpack.c.h.b16 %v3500
      %v3606 = vunpack.c.l.b16 %v3501
      %v3607 = vunpack.c.h.b16 %v3501
      %v3608 = vunpack.c.l.b16 %v3502
      %v3609 = vunpack.c.h.b16 %v3502
      %v3610 = vunpack.c.l.b16 %v3503
      %v3611 = vunpack.c.h.b16 %v3503
      %v3612 = vunpack.c.l.b16 %v3504
      %v3613 = vunpack.c.h.b16 %v3504
      %v3614 = vpack.c.b16 %v3552, %v3550
      %v3615 = vpack.c.b16 %v3553, %v3551
      %v3616 = vpack.c.b16 %v3556, %v3554
      %v3617 = vpack.c.b16 %v3557, %v3555
      %v3618 = vpack.c.b16 %v3560, %v3558
      %v3619 = vpack.c.b16 %v3561, %v3559
      %v3620 = vpack.c.b16 %v3564, %v3562
      %v3621 = vpack.c.b16 %v3565, %v3563
      %v3622 = vpack.c.b16 %v3568, %v3566
      %v3623 = vpack.c.b16 %v3569, %v3567
      %v3624 = vpack.c.b16 %v3572, %v3570
      %v3625 = vpack.c.b16 %v3573, %v3571
      %v3626 = vpack.c.b16 %v3576, %v3574
      %v3627 = vpack.c.b16 %v3577, %v3575
      %v3628 = vpack.c.b16 %v3580, %v3578
      %v3629 = vpack.c.b16 %v3581, %v3579
      %v3630 = vpack.c.b16 %v3584, %v3582
      %v3631 = vpack.c.b16 %v3585, %v3583
      %v3632 = vpack.c.b16 %v3588, %v3586
      %v3633 = vpack.c.b16 %v3589, %v3587
      %v3634 = vpack.c.b16 %v3592, %v3590
      %v3635 = vpack.c.b16 %v3593, %v3591
      %v3636 = vpack.c.b16 %v3596, %v3594
      %v3637 = vpack.c.b16 %v3597, %v3595
      %v3638 = vpack.c.b16 %v3600, %v3598
      %v3639 = vpack.c.b16 %v3601, %v3599
      %v3640 = vpack.c.b16 %v3604, %v3602
      %v3641 = vpack.c.b16 %v3605, %v3603
      %v3642 = vpack.c.b16 %v3608, %v3606
      %v3643 = vpack.c.b16 %v3609, %v3607
      %v3644 = vpack.c.b16 %v3612, %v3610
      %v3645 = vpack.c.b16 %v3613, %v3611
      %3678 = vmatprep.subr.bf16.mxu0 %v3615
      %3679 = vmatpush1.bf16.msra.mxu0 %v3614
      %3680 = vmatprep.subr.bf16.mxu0 %v3617
      %3681 = vmatpush1.bf16.msra.mxu0 %v3616
      %3682 = vmatprep.subr.bf16.mxu0 %v3619
      %3683 = vmatpush1.bf16.msra.mxu0 %v3618
      %3684 = vmatprep.subr.bf16.mxu0 %v3621
      %3685 = vmatpush1.bf16.msra.mxu0 %v3620
      %3686 = vmatprep.subr.bf16.mxu0 %v3623
      %3687 = vmatpush1.bf16.msra.mxu0 %v3622
      %3688 = vmatprep.subr.bf16.mxu0 %v3625
      %3689 = vmatpush1.bf16.msra.mxu0 %v3624
      %3690 = vmatprep.subr.bf16.mxu0 %v3627
      %3691 = vmatpush1.bf16.msra.mxu0 %v3626
      %3692 = vmatprep.subr.bf16.mxu0 %v3629
      %3693 = vmatpush1.bf16.msra.mxu0 %v3628
      %3694 = vmatprep.subr.bf16.mxu0 %v3631
      %3695 = vmatpush1.bf16.msra.mxu0 %v3630
      %3696 = vmatprep.subr.bf16.mxu0 %v3633
      %3697 = vmatpush1.bf16.msra.mxu0 %v3632
      %3698 = vmatprep.subr.bf16.mxu0 %v3635
      %3699 = vmatpush1.bf16.msra.mxu0 %v3634
      %3700 = vmatprep.subr.bf16.mxu0 %v3637
      %3701 = vmatpush1.bf16.msra.mxu0 %v3636
      %3702 = vmatprep.subr.bf16.mxu0 %v3639
      %3703 = vmatpush1.bf16.msra.mxu0 %v3638
      %3704 = vmatprep.subr.bf16.mxu0 %v3641
      %3705 = vmatpush1.bf16.msra.mxu0 %v3640
      %3706 = vmatprep.subr.bf16.mxu0 %v3643
      %3707 = vmatpush1.bf16.msra.mxu0 %v3642
      %3708 = vmatprep.subr.bf16.mxu0 %v3645
      %3709 = vmatpush1.bf16.msra.mxu0 %v3644
      %3710 = vmatprep.mubr.bf16.mxu0 %v3471
      %3711 = vmatmul.mubr.bf16.gmra.mrb[0].mxu0 %v3470
      %v3712 = vpop.f32.mrb[0].mxu0
      %v3713 = vadd.f32 %v3511, %v3712
      %v3714 = vpop.f32.mrb[0].mxu0
      %v3715 = vadd.f32 %v3515, %v3714
      %v3716 = vpop.f32.mrb[0].mxu0
      %v3717 = vpop.f32.mrb[0].mxu0
      %3718 = vdwg.mxu0
      %v3719 = vmax.f32 %v3713, 0.0
      %v3720 = vmax.f32 %v3715, 0.0
      %v3721 = vpack.c.bf16 %v3719, %v3719
      %v3722 = vpack.c.bf16 %v3720, %v3720
      %s3723 = scalar_lea.vmem %s4, 1536
      %v3724 = vld [vmem:[%s3723] sm:$0xff]
      %v3725 = vld [vmem:[%s3723 + $0x8] sm:$0xff]
      %v3726 = vld [vmem:[%s3723 + $0x10] sm:$0xff]
      %v3727 = vld [vmem:[%s3723 + $0x18] sm:$0xff]
      %v3728 = vld [vmem:[%s3723 + $0x20] sm:$0xff]
      %v3729 = vld [vmem:[%s3723 + $0x28] sm:$0xff]
      %v3730 = vld [vmem:[%s3723 + $0x30] sm:$0xff]
      %v3731 = vld [vmem:[%s3723 + $0x38] sm:$0xff]
      %v3732 = vld [vmem:[%s3723 + $0x40] sm:$0xff]
      %v3733 = vld [vmem:[%s3723 + $0x48] sm:$0xff]
      %v3734 = vld [vmem:[%s3723 + $0x50] sm:$0xff]
      %v3735 = vld [vmem:[%s3723 + $0x58] sm:$0xff]
      %v3736 = vld [vmem:[%s3723 + $0x60] sm:$0xff]
      %v3737 = vld [vmem:[%s3723 + $0x68] sm:$0xff]
      %v3738 = vld [vmem:[%s3723 + $0x70] sm:$0xff]
      %v3739 = vld [vmem:[%s3723 + $0x78] sm:$0xff]
      %v3740 = vld [vmem:[%s3723 + $0x80] sm:$0xff]
      %v3741 = vld [vmem:[%s3723 + $0x88] sm:$0xff]
      %v3742 = vld [vmem:[%s3723 + $0x90] sm:$0xff]
      %v3743 = vld [vmem:[%s3723 + $0x98] sm:$0xff]
      %v3744 = vld [vmem:[%s3723 + $0xa0] sm:$0xff]
      %v3745 = vld [vmem:[%s3723 + $0xa8] sm:$0xff]
      %v3746 = vld [vmem:[%s3723 + $0xb0] sm:$0xff]
      %v3747 = vld [vmem:[%s3723 + $0xb8] sm:$0xff]
      %v3748 = vld [vmem:[%s3723 + $0xc0] sm:$0xff]
      %v3749 = vld [vmem:[%s3723 + $0xc8] sm:$0xff]
      %v3750 = vld [vmem:[%s3723 + $0xd0] sm:$0xff]
      %v3751 = vld [vmem:[%s3723 + $0xd8] sm:$0xff]
      %v3752 = vld [vmem:[%s3723 + $0xe0] sm:$0xff]
      %v3753 = vld [vmem:[%s3723 + $0xe8] sm:$0xff]
      %v3754 = vld [vmem:[%s3723 + $0xf0] sm:$0xff]
      %v3755 = vld [vmem:[%s3723 + $0xf8] sm:$0xff]
      %s3756 = scalar_lea.vmem %s5, 12
      %v3757 = vld [vmem:[%s3756] sm:$0x3]
      %v3759 = vlaneseq
      %v3760 = vshrl.u32 %v3759, 7
      %v3761 = vsub.s32 0, %v3760
      %v3762 = vrot.slane %v3757, %v3761
      %v3763 = vlaneseq
      %v3764 = vshrl.u32 %v3763, 7
      %v3765 = vsub.s32 1, %v3764
      %v3766 = vrot.slane %v3757, %v3765
      %v3801 = vunpack.c.l.b16 %v3724
      %v3802 = vunpack.c.h.b16 %v3724
      %v3803 = vunpack.c.l.b16 %v3725
      %v3804 = vunpack.c.h.b16 %v3725
      %v3805 = vunpack.c.l.b16 %v3726
      %v3806 = vunpack.c.h.b16 %v3726
      %v3807 = vunpack.c.l.b16 %v3727
      %v3808 = vunpack.c.h.b16 %v3727
      %v3809 = vunpack.c.l.b16 %v3728
      %v3810 = vunpack.c.h.b16 %v3728
      %v3811 = vunpack.c.l.b16 %v3729
      %v3812 = vunpack.c.h.b16 %v3729
      %v3813 = vunpack.c.l.b16 %v3730
      %v3814 = vunpack.c.h.b16 %v3730
      %v3815 = vunpack.c.l.b16 %v3731
      %v3816 = vunpack.c.h.b16 %v3731
      %v3817 = vunpack.c.l.b16 %v3732
      %v3818 = vunpack.c.h.b16 %v3732
      %v3819 = vunpack.c.l.b16 %v3733
      %v3820 = vunpack.c.h.b16 %v3733
      %v3821 = vunpack.c.l.b16 %v3734
      %v3822 = vunpack.c.h.b16 %v3734
      %v3823 = vunpack.c.l.b16 %v3735
      %v3824 = vunpack.c.h.b16 %v3735
      %v3825 = vunpack.c.l.b16 %v3736
      %v3826 = vunpack.c.h.b16 %v3736
      %v3827 = vunpack.c.l.b16 %v3737
      %v3828 = vunpack.c.h.b16 %v3737
      %v3829 = vunpack.c.l.b16 %v3738
      %v3830 = vunpack.c.h.b16 %v3738
      %v3831 = vunpack.c.l.b16 %v3739
      %v3832 = vunpack.c.h.b16 %v3739
      %v3833 = vunpack.c.l.b16 %v3740
      %v3834 = vunpack.c.h.b16 %v3740
      %v3835 = vunpack.c.l.b16 %v3741
      %v3836 = vunpack.c.h.b16 %v3741
      %v3837 = vunpack.c.l.b16 %v3742
      %v3838 = vunpack.c.h.b16 %v3742
      %v3839 = vunpack.c.l.b16 %v3743
      %v3840 = vunpack.c.h.b16 %v3743
      %v3841 = vunpack.c.l.b16 %v3744
      %v3842 = vunpack.c.h.b16 %v3744
      %v3843 = vunpack.c.l.b16 %v3745
      %v3844 = vunpack.c.h.b16 %v3745
      %v3845 = vunpack.c.l.b16 %v3746
      %v3846 = vunpack.c.h.b16 %v3746
      %v3847 = vunpack.c.l.b16 %v3747
      %v3848 = vunpack.c.h.b16 %v3747
      %v3849 = vunpack.c.l.b16 %v3748
      %v3850 = vunpack.c.h.b16 %v3748
      %v3851 = vunpack.c.l.b16 %v3749
      %v3852 = vunpack.c.h.b16 %v3749
      %v3853 = vunpack.c.l.b16 %v3750
      %v3854 = vunpack.c.h.b16 %v3750
      %v3855 = vunpack.c.l.b16 %v3751
      %v3856 = vunpack.c.h.b16 %v3751
      %v3857 = vunpack.c.l.b16 %v3752
      %v3858 = vunpack.c.h.b16 %v3752
      %v3859 = vunpack.c.l.b16 %v3753
      %v3860 = vunpack.c.h.b16 %v3753
      %v3861 = vunpack.c.l.b16 %v3754
      %v3862 = vunpack.c.h.b16 %v3754
      %v3863 = vunpack.c.l.b16 %v3755
      %v3864 = vunpack.c.h.b16 %v3755
      %v3865 = vpack.c.b16 %v3803, %v3801
      %v3866 = vpack.c.b16 %v3804, %v3802
      %v3867 = vpack.c.b16 %v3807, %v3805
      %v3868 = vpack.c.b16 %v3808, %v3806
      %v3869 = vpack.c.b16 %v3811, %v3809
      %v3870 = vpack.c.b16 %v3812, %v3810
      %v3871 = vpack.c.b16 %v3815, %v3813
      %v3872 = vpack.c.b16 %v3816, %v3814
      %v3873 = vpack.c.b16 %v3819, %v3817
      %v3874 = vpack.c.b16 %v3820, %v3818
      %v3875 = vpack.c.b16 %v3823, %v3821
      %v3876 = vpack.c.b16 %v3824, %v3822
      %v3877 = vpack.c.b16 %v3827, %v3825
      %v3878 = vpack.c.b16 %v3828, %v3826
      %v3879 = vpack.c.b16 %v3831, %v3829
      %v3880 = vpack.c.b16 %v3832, %v3830
      %v3881 = vpack.c.b16 %v3835, %v3833
      %v3882 = vpack.c.b16 %v3836, %v3834
      %v3883 = vpack.c.b16 %v3839, %v3837
      %v3884 = vpack.c.b16 %v3840, %v3838
      %v3885 = vpack.c.b16 %v3843, %v3841
      %v3886 = vpack.c.b16 %v3844, %v3842
      %v3887 = vpack.c.b16 %v3847, %v3845
      %v3888 = vpack.c.b16 %v3848, %v3846
      %v3889 = vpack.c.b16 %v3851, %v3849
      %v3890 = vpack.c.b16 %v3852, %v3850
      %v3891 = vpack.c.b16 %v3855, %v3853
      %v3892 = vpack.c.b16 %v3856, %v3854
      %v3893 = vpack.c.b16 %v3859, %v3857
      %v3894 = vpack.c.b16 %v3860, %v3858
      %v3895 = vpack.c.b16 %v3863, %v3861
      %v3896 = vpack.c.b16 %v3864, %v3862
      %3929 = vmatprep.subr.bf16.mxu0 %v3866
      %3930 = vmatpush1.bf16.msra.mxu0 %v3865
      %3931 = vmatprep.subr.bf16.mxu0 %v3868
      %3932 = vmatpush1.bf16.msra.mxu0 %v3867
      %3933 = vmatprep.subr.bf16.mxu0 %v3870
      %3934 = vmatpush1.bf16.msra.mxu0 %v3869
      %3935 = vmatprep.subr.bf16.mxu0 %v3872
      %3936 = vmatpush1.bf16.msra.mxu0 %v3871
      %3937 = vmatprep.subr.bf16.mxu0 %v3874
      %3938 = vmatpush1.bf16.msra.mxu0 %v3873
      %3939 = vmatprep.subr.bf16.mxu0 %v3876
      %3940 = vmatpush1.bf16.msra.mxu0 %v3875
      %3941 = vmatprep.subr.bf16.mxu0 %v3878
      %3942 = vmatpush1.bf16.msra.mxu0 %v3877
      %3943 = vmatprep.subr.bf16.mxu0 %v3880
      %3944 = vmatpush1.bf16.msra.mxu0 %v3879
      %3945 = vmatprep.subr.bf16.mxu0 %v3882
      %3946 = vmatpush1.bf16.msra.mxu0 %v3881
      %3947 = vmatprep.subr.bf16.mxu0 %v3884
      %3948 = vmatpush1.bf16.msra.mxu0 %v3883
      %3949 = vmatprep.subr.bf16.mxu0 %v3886
      %3950 = vmatpush1.bf16.msra.mxu0 %v3885
      %3951 = vmatprep.subr.bf16.mxu0 %v3888
      %3952 = vmatpush1.bf16.msra.mxu0 %v3887
      %3953 = vmatprep.subr.bf16.mxu0 %v3890
      %3954 = vmatpush1.bf16.msra.mxu0 %v3889
      %3955 = vmatprep.subr.bf16.mxu0 %v3892
      %3956 = vmatpush1.bf16.msra.mxu0 %v3891
      %3957 = vmatprep.subr.bf16.mxu0 %v3894
      %3958 = vmatpush1.bf16.msra.mxu0 %v3893
      %3959 = vmatprep.subr.bf16.mxu0 %v3896
      %3960 = vmatpush1.bf16.msra.mxu0 %v3895
      %3961 = vmatprep.mubr.bf16.mxu0 %v3722
      %3962 = vmatmul.mubr.bf16.gmra.mrb[0].mxu0 %v3721
      %v3963 = vpop.f32.mrb[0].mxu0
      %v3964 = vadd.f32 %v3762, %v3963
      %v3965 = vpop.f32.mrb[0].mxu0
      %v3966 = vadd.f32 %v3766, %v3965
      %v3967 = vpop.f32.mrb[0].mxu0
      %v3968 = vpop.f32.mrb[0].mxu0
      %3969 = vdwg.mxu0
      %s3970 = scalar_lea.vmem %s4, 1792
      %v3971 = vld [vmem:[%s3970] sm:$0xff]
      %v3972 = vld [vmem:[%s3970 + $0x8] sm:$0xff]
      %v3973 = vld [vmem:[%s3970 + $0x10] sm:$0xff]
      %v3974 = vld [vmem:[%s3970 + $0x18] sm:$0xff]
      %v3975 = vld [vmem:[%s3970 + $0x20] sm:$0xff]
      %v3976 = vld [vmem:[%s3970 + $0x28] sm:$0xff]
      %v3977 = vld [vmem:[%s3970 + $0x30] sm:$0xff]
      %v3978 = vld [vmem:[%s3970 + $0x38] sm:$0xff]
      %v3979 = vld [vmem:[%s3970 + $0x40] sm:$0xff]
      %v3980 = vld [vmem:[%s3970 + $0x48] sm:$0xff]
      %v3981 = vld [vmem:[%s3970 + $0x50] sm:$0xff]
      %v3982 = vld [vmem:[%s3970 + $0x58] sm:$0xff]
      %v3983 = vld [vmem:[%s3970 + $0x60] sm:$0xff]
      %v3984 = vld [vmem:[%s3970 + $0x68] sm:$0xff]
      %v3985 = vld [vmem:[%s3970 + $0x70] sm:$0xff]
      %v3986 = vld [vmem:[%s3970 + $0x78] sm:$0xff]
      %v3987 = vld [vmem:[%s3970 + $0x80] sm:$0xff]
      %v3988 = vld [vmem:[%s3970 + $0x88] sm:$0xff]
      %v3989 = vld [vmem:[%s3970 + $0x90] sm:$0xff]
      %v3990 = vld [vmem:[%s3970 + $0x98] sm:$0xff]
      %v3991 = vld [vmem:[%s3970 + $0xa0] sm:$0xff]
      %v3992 = vld [vmem:[%s3970 + $0xa8] sm:$0xff]
      %v3993 = vld [vmem:[%s3970 + $0xb0] sm:$0xff]
      %v3994 = vld [vmem:[%s3970 + $0xb8] sm:$0xff]
      %v3995 = vld [vmem:[%s3970 + $0xc0] sm:$0xff]
      %v3996 = vld [vmem:[%s3970 + $0xc8] sm:$0xff]
      %v3997 = vld [vmem:[%s3970 + $0xd0] sm:$0xff]
      %v3998 = vld [vmem:[%s3970 + $0xd8] sm:$0xff]
      %v3999 = vld [vmem:[%s3970 + $0xe0] sm:$0xff]
      %v4000 = vld [vmem:[%s3970 + $0xe8] sm:$0xff]
      %v4001 = vld [vmem:[%s3970 + $0xf0] sm:$0xff]
      %v4002 = vld [vmem:[%s3970 + $0xf8] sm:$0xff]
      %s4003 = scalar_lea.vmem %s5, 14
      %v4004 = vld [vmem:[%s4003] sm:$0x3]
      %v4006 = vlaneseq
      %v4007 = vshrl.u32 %v4006, 7
      %v4008 = vsub.s32 0, %v4007
      %v4009 = vrot.slane %v4004, %v4008
      %v4010 = vlaneseq
      %v4011 = vshrl.u32 %v4010, 7
      %v4012 = vsub.s32 1, %v4011
      %v4013 = vrot.slane %v4004, %v4012
      %v4048 = vunpack.c.l.b16 %v3971
      %v4049 = vunpack.c.h.b16 %v3971
      %v4050 = vunpack.c.l.b16 %v3972
      %v4051 = vunpack.c.h.b16 %v3972
      %v4052 = vunpack.c.l.b16 %v3973
      %v4053 = vunpack.c.h.b16 %v3973
      %v4054 = vunpack.c.l.b16 %v3974
      %v4055 = vunpack.c.h.b16 %v3974
      %v4056 = vunpack.c.l.b16 %v3975
      %v4057 = vunpack.c.h.b16 %v3975
      %v4058 = vunpack.c.l.b16 %v3976
      %v4059 = vunpack.c.h.b16 %v3976
      %v4060 = vunpack.c.l.b16 %v3977
      %v4061 = vunpack.c.h.b16 %v3977
      %v4062 = vunpack.c.l.b16 %v3978
      %v4063 = vunpack.c.h.b16 %v3978
      %v4064 = vunpack.c.l.b16 %v3979
      %v4065 = vunpack.c.h.b16 %v3979
      %v4066 = vunpack.c.l.b16 %v3980
      %v4067 = vunpack.c.h.b16 %v3980
      %v4068 = vunpack.c.l.b16 %v3981
      %v4069 = vunpack.c.h.b16 %v3981
      %v4070 = vunpack.c.l.b16 %v3982
      %v4071 = vunpack.c.h.b16 %v3982
      %v4072 = vunpack.c.l.b16 %v3983
      %v4073 = vunpack.c.h.b16 %v3983
      %v4074 = vunpack.c.l.b16 %v3984
      %v4075 = vunpack.c.h.b16 %v3984
      %v4076 = vunpack.c.l.b16 %v3985
      %v4077 = vunpack.c.h.b16 %v3985
      %v4078 = vunpack.c.l.b16 %v3986
      %v4079 = vunpack.c.h.b16 %v3986
      %v4080 = vunpack.c.l.b16 %v3987
      %v4081 = vunpack.c.h.b16 %v3987
      %v4082 = vunpack.c.l.b16 %v3988
      %v4083 = vunpack.c.h.b16 %v3988
      %v4084 = vunpack.c.l.b16 %v3989
      %v4085 = vunpack.c.h.b16 %v3989
      %v4086 = vunpack.c.l.b16 %v3990
      %v4087 = vunpack.c.h.b16 %v3990
      %v4088 = vunpack.c.l.b16 %v3991
      %v4089 = vunpack.c.h.b16 %v3991
      %v4090 = vunpack.c.l.b16 %v3992
      %v4091 = vunpack.c.h.b16 %v3992
      %v4092 = vunpack.c.l.b16 %v3993
      %v4093 = vunpack.c.h.b16 %v3993
      %v4094 = vunpack.c.l.b16 %v3994
      %v4095 = vunpack.c.h.b16 %v3994
      %v4096 = vunpack.c.l.b16 %v3995
      %v4097 = vunpack.c.h.b16 %v3995
      %v4098 = vunpack.c.l.b16 %v3996
      %v4099 = vunpack.c.h.b16 %v3996
      %v4100 = vunpack.c.l.b16 %v3997
      %v4101 = vunpack.c.h.b16 %v3997
      %v4102 = vunpack.c.l.b16 %v3998
      %v4103 = vunpack.c.h.b16 %v3998
      %v4104 = vunpack.c.l.b16 %v3999
      %v4105 = vunpack.c.h.b16 %v3999
      %v4106 = vunpack.c.l.b16 %v4000
      %v4107 = vunpack.c.h.b16 %v4000
      %v4108 = vunpack.c.l.b16 %v4001
      %v4109 = vunpack.c.h.b16 %v4001
      %v4110 = vunpack.c.l.b16 %v4002
      %v4111 = vunpack.c.h.b16 %v4002
      %v4112 = vpack.c.b16 %v4050, %v4048
      %v4113 = vpack.c.b16 %v4051, %v4049
      %v4114 = vpack.c.b16 %v4054, %v4052
      %v4115 = vpack.c.b16 %v4055, %v4053
      %v4116 = vpack.c.b16 %v4058, %v4056
      %v4117 = vpack.c.b16 %v4059, %v4057
      %v4118 = vpack.c.b16 %v4062, %v4060
      %v4119 = vpack.c.b16 %v4063, %v4061
      %v4120 = vpack.c.b16 %v4066, %v4064
      %v4121 = vpack.c.b16 %v4067, %v4065
      %v4122 = vpack.c.b16 %v4070, %v4068
      %v4123 = vpack.c.b16 %v4071, %v4069
      %v4124 = vpack.c.b16 %v4074, %v4072
      %v4125 = vpack.c.b16 %v4075, %v4073
      %v4126 = vpack.c.b16 %v4078, %v4076
      %v4127 = vpack.c.b16 %v4079, %v4077
      %v4128 = vpack.c.b16 %v4082, %v4080
      %v4129 = vpack.c.b16 %v4083, %v4081
      %v4130 = vpack.c.b16 %v4086, %v4084
      %v4131 = vpack.c.b16 %v4087, %v4085
      %v4132 = vpack.c.b16 %v4090, %v4088
      %v4133 = vpack.c.b16 %v4091, %v4089
      %v4134 = vpack.c.b16 %v4094, %v4092
      %v4135 = vpack.c.b16 %v4095, %v4093
      %v4136 = vpack.c.b16 %v4098, %v4096
      %v4137 = vpack.c.b16 %v4099, %v4097
      %v4138 = vpack.c.b16 %v4102, %v4100
      %v4139 = vpack.c.b16 %v4103, %v4101
      %v4140 = vpack.c.b16 %v4106, %v4104
      %v4141 = vpack.c.b16 %v4107, %v4105
      %v4142 = vpack.c.b16 %v4110, %v4108
      %v4143 = vpack.c.b16 %v4111, %v4109
      %4176 = vmatprep.subr.bf16.mxu0 %v4113
      %4177 = vmatpush1.bf16.msra.mxu0 %v4112
      %4178 = vmatprep.subr.bf16.mxu0 %v4115
      %4179 = vmatpush1.bf16.msra.mxu0 %v4114
      %4180 = vmatprep.subr.bf16.mxu0 %v4117
      %4181 = vmatpush1.bf16.msra.mxu0 %v4116
      %4182 = vmatprep.subr.bf16.mxu0 %v4119
      %4183 = vmatpush1.bf16.msra.mxu0 %v4118
      %4184 = vmatprep.subr.bf16.mxu0 %v4121
      %4185 = vmatpush1.bf16.msra.mxu0 %v4120
      %4186 = vmatprep.subr.bf16.mxu0 %v4123
      %4187 = vmatpush1.bf16.msra.mxu0 %v4122
      %4188 = vmatprep.subr.bf16.mxu0 %v4125
      %4189 = vmatpush1.bf16.msra.mxu0 %v4124
      %4190 = vmatprep.subr.bf16.mxu0 %v4127
      %4191 = vmatpush1.bf16.msra.mxu0 %v4126
      %4192 = vmatprep.subr.bf16.mxu0 %v4129
      %4193 = vmatpush1.bf16.msra.mxu0 %v4128
      %4194 = vmatprep.subr.bf16.mxu0 %v4131
      %4195 = vmatpush1.bf16.msra.mxu0 %v4130
      %4196 = vmatprep.subr.bf16.mxu0 %v4133
      %4197 = vmatpush1.bf16.msra.mxu0 %v4132
      %4198 = vmatprep.subr.bf16.mxu0 %v4135
      %4199 = vmatpush1.bf16.msra.mxu0 %v4134
      %4200 = vmatprep.subr.bf16.mxu0 %v4137
      %4201 = vmatpush1.bf16.msra.mxu0 %v4136
      %4202 = vmatprep.subr.bf16.mxu0 %v4139
      %4203 = vmatpush1.bf16.msra.mxu0 %v4138
      %4204 = vmatprep.subr.bf16.mxu0 %v4141
      %4205 = vmatpush1.bf16.msra.mxu0 %v4140
      %4206 = vmatprep.subr.bf16.mxu0 %v4143
      %4207 = vmatpush1.bf16.msra.mxu0 %v4142
      %4208 = vmatprep.mubr.bf16.mxu0 %v3471
      %4209 = vmatmul.mubr.bf16.gmra.mrb[0].mxu0 %v3470
      %v4210 = vpop.f32.mrb[0].mxu0
      %v4211 = vadd.f32 %v4009, %v4210
      %v4212 = vpop.f32.mrb[0].mxu0
      %v4213 = vadd.f32 %v4013, %v4212
      %v4214 = vpop.f32.mrb[0].mxu0
      %v4215 = vpop.f32.mrb[0].mxu0
      %4216 = vdwg.mxu0
      %v4217 = vadd.f32 %v3964, %v4211
      %v4218 = vadd.f32 %v3966, %v4213
      %v4219 = vmax.f32 %v4217, 0.0
      %v4220 = vmax.f32 %v4218, 0.0
      %v4221 = vpack.c.bf16 %v4219, %v4219
      %v4222 = vpack.c.bf16 %v4220, %v4220
      %s4223 = scalar_lea.vmem %s4, 2048
      %v4224 = vld [vmem:[%s4223] sm:$0xff]
      %v4225 = vld [vmem:[%s4223 + $0x8] sm:$0xff]
      %v4226 = vld [vmem:[%s4223 + $0x10] sm:$0xff]
      %v4227 = vld [vmem:[%s4223 + $0x18] sm:$0xff]
      %v4228 = vld [vmem:[%s4223 + $0x20] sm:$0xff]
      %v4229 = vld [vmem:[%s4223 + $0x28] sm:$0xff]
      %v4230 = vld [vmem:[%s4223 + $0x30] sm:$0xff]
      %v4231 = vld [vmem:[%s4223 + $0x38] sm:$0xff]
      %v4232 = vld [vmem:[%s4223 + $0x40] sm:$0xff]
      %v4233 = vld [vmem:[%s4223 + $0x48] sm:$0xff]
      %v4234 = vld [vmem:[%s4223 + $0x50] sm:$0xff]
      %v4235 = vld [vmem:[%s4223 + $0x58] sm:$0xff]
      %v4236 = vld [vmem:[%s4223 + $0x60] sm:$0xff]
      %v4237 = vld [vmem:[%s4223 + $0x68] sm:$0xff]
      %v4238 = vld [vmem:[%s4223 + $0x70] sm:$0xff]
      %v4239 = vld [vmem:[%s4223 + $0x78] sm:$0xff]
      %v4240 = vld [vmem:[%s4223 + $0x80] sm:$0xff]
      %v4241 = vld [vmem:[%s4223 + $0x88] sm:$0xff]
      %v4242 = vld [vmem:[%s4223 + $0x90] sm:$0xff]
      %v4243 = vld [vmem:[%s4223 + $0x98] sm:$0xff]
      %v4244 = vld [vmem:[%s4223 + $0xa0] sm:$0xff]
      %v4245 = vld [vmem:[%s4223 + $0xa8] sm:$0xff]
      %v4246 = vld [vmem:[%s4223 + $0xb0] sm:$0xff]
      %v4247 = vld [vmem:[%s4223 + $0xb8] sm:$0xff]
      %v4248 = vld [vmem:[%s4223 + $0xc0] sm:$0xff]
      %v4249 = vld [vmem:[%s4223 + $0xc8] sm:$0xff]
      %v4250 = vld [vmem:[%s4223 + $0xd0] sm:$0xff]
      %v4251 = vld [vmem:[%s4223 + $0xd8] sm:$0xff]
      %v4252 = vld [vmem:[%s4223 + $0xe0] sm:$0xff]
      %v4253 = vld [vmem:[%s4223 + $0xe8] sm:$0xff]
      %v4254 = vld [vmem:[%s4223 + $0xf0] sm:$0xff]
      %v4255 = vld [vmem:[%s4223 + $0xf8] sm:$0xff]
      %s4256 = scalar_lea.vmem %s5, 16
      %v4257 = vld [vmem:[%s4256] sm:$0x3]
      %v4259 = vlaneseq
      %v4260 = vshrl.u32 %v4259, 7
      %v4261 = vsub.s32 0, %v4260
      %v4262 = vrot.slane %v4257, %v4261
      %v4263 = vlaneseq
      %v4264 = vshrl.u32 %v4263, 7
      %v4265 = vsub.s32 1, %v4264
      %v4266 = vrot.slane %v4257, %v4265
      %v4301 = vunpack.c.l.b16 %v4224
      %v4302 = vunpack.c.h.b16 %v4224
      %v4303 = vunpack.c.l.b16 %v4225
      %v4304 = vunpack.c.h.b16 %v4225
      %v4305 = vunpack.c.l.b16 %v4226
      %v4306 = vunpack.c.h.b16 %v4226
      %v4307 = vunpack.c.l.b16 %v4227
      %v4308 = vunpack.c.h.b16 %v4227
      %v4309 = vunpack.c.l.b16 %v4228
      %v4310 = vunpack.c.h.b16 %v4228
      %v4311 = vunpack.c.l.b16 %v4229
      %v4312 = vunpack.c.h.b16 %v4229
      %v4313 = vunpack.c.l.b16 %v4230
      %v4314 = vunpack.c.h.b16 %v4230
      %v4315 = vunpack.c.l.b16 %v4231
      %v4316 = vunpack.c.h.b16 %v4231
      %v4317 = vunpack.c.l.b16 %v4232
      %v4318 = vunpack.c.h.b16 %v4232
      %v4319 = vunpack.c.l.b16 %v4233
      %v4320 = vunpack.c.h.b16 %v4233
      %v4321 = vunpack.c.l.b16 %v4234
      %v4322 = vunpack.c.h.b16 %v4234
      %v4323 = vunpack.c.l.b16 %v4235
      %v4324 = vunpack.c.h.b16 %v4235
      %v4325 = vunpack.c.l.b16 %v4236
      %v4326 = vunpack.c.h.b16 %v4236
      %v4327 = vunpack.c.l.b16 %v4237
      %v4328 = vunpack.c.h.b16 %v4237
      %v4329 = vunpack.c.l.b16 %v4238
      %v4330 = vunpack.c.h.b16 %v4238
      %v4331 = vunpack.c.l.b16 %v4239
      %v4332 = vunpack.c.h.b16 %v4239
      %v4333 = vunpack.c.l.b16 %v4240
      %v4334 = vunpack.c.h.b16 %v4240
      %v4335 = vunpack.c.l.b16 %v4241
      %v4336 = vunpack.c.h.b16 %v4241
      %v4337 = vunpack.c.l.b16 %v4242
      %v4338 = vunpack.c.h.b16 %v4242
      %v4339 = vunpack.c.l.b16 %v4243
      %v4340 = vunpack.c.h.b16 %v4243
      %v4341 = vunpack.c.l.b16 %v4244
      %v4342 = vunpack.c.h.b16 %v4244
      %v4343 = vunpack.c.l.b16 %v4245
      %v4344 = vunpack.c.h.b16 %v4245
      %v4345 = vunpack.c.l.b16 %v4246
      %v4346 = vunpack.c.h.b16 %v4246
      %v4347 = vunpack.c.l.b16 %v4247
      %v4348 = vunpack.c.h.b16 %v4247
      %v4349 = vunpack.c.l.b16 %v4248
      %v4350 = vunpack.c.h.b16 %v4248
      %v4351 = vunpack.c.l.b16 %v4249
      %v4352 = vunpack.c.h.b16 %v4249
      %v4353 = vunpack.c.l.b16 %v4250
      %v4354 = vunpack.c.h.b16 %v4250
      %v4355 = vunpack.c.l.b16 %v4251
      %v4356 = vunpack.c.h.b16 %v4251
      %v4357 = vunpack.c.l.b16 %v4252
      %v4358 = vunpack.c.h.b16 %v4252
      %v4359 = vunpack.c.l.b16 %v4253
      %v4360 = vunpack.c.h.b16 %v4253
      %v4361 = vunpack.c.l.b16 %v4254
      %v4362 = vunpack.c.h.b16 %v4254
      %v4363 = vunpack.c.l.b16 %v4255
      %v4364 = vunpack.c.h.b16 %v4255
      %v4365 = vpack.c.b16 %v4303, %v4301
      %v4366 = vpack.c.b16 %v4304, %v4302
      %v4367 = vpack.c.b16 %v4307, %v4305
      %v4368 = vpack.c.b16 %v4308, %v4306
      %v4369 = vpack.c.b16 %v4311, %v4309
      %v4370 = vpack.c.b16 %v4312, %v4310
      %v4371 = vpack.c.b16 %v4315, %v4313
      %v4372 = vpack.c.b16 %v4316, %v4314
      %v4373 = vpack.c.b16 %v4319, %v4317
      %v4374 = vpack.c.b16 %v4320, %v4318
      %v4375 = vpack.c.b16 %v4323, %v4321
      %v4376 = vpack.c.b16 %v4324, %v4322
      %v4377 = vpack.c.b16 %v4327, %v4325
      %v4378 = vpack.c.b16 %v4328, %v4326
      %v4379 = vpack.c.b16 %v4331, %v4329
      %v4380 = vpack.c.b16 %v4332, %v4330
      %v4381 = vpack.c.b16 %v4335, %v4333
      %v4382 = vpack.c.b16 %v4336, %v4334
      %v4383 = vpack.c.b16 %v4339, %v4337
      %v4384 = vpack.c.b16 %v4340, %v4338
      %v4385 = vpack.c.b16 %v4343, %v4341
      %v4386 = vpack.c.b16 %v4344, %v4342
      %v4387 = vpack.c.b16 %v4347, %v4345
      %v4388 = vpack.c.b16 %v4348, %v4346
      %v4389 = vpack.c.b16 %v4351, %v4349
      %v4390 = vpack.c.b16 %v4352, %v4350
      %v4391 = vpack.c.b16 %v4355, %v4353
      %v4392 = vpack.c.b16 %v4356, %v4354
      %v4393 = vpack.c.b16 %v4359, %v4357
      %v4394 = vpack.c.b16 %v4360, %v4358
      %v4395 = vpack.c.b16 %v4363, %v4361
      %v4396 = vpack.c.b16 %v4364, %v4362
      %4429 = vmatprep.subr.bf16.mxu0 %v4366
      %4430 = vmatpush1.bf16.msra.mxu0 %v4365
      %4431 = vmatprep.subr.bf16.mxu0 %v4368
      %4432 = vmatpush1.bf16.msra.mxu0 %v4367
      %4433 = vmatprep.subr.bf16.mxu0 %v4370
      %4434 = vmatpush1.bf16.msra.mxu0 %v4369
      %4435 = vmatprep.subr.bf16.mxu0 %v4372
      %4436 = vmatpush1.bf16.msra.mxu0 %v4371
      %4437 = vmatprep.subr.bf16.mxu0 %v4374
      %4438 = vmatpush1.bf16.msra.mxu0 %v4373
      %4439 = vmatprep.subr.bf16.mxu0 %v4376
      %4440 = vmatpush1.bf16.msra.mxu0 %v4375
      %4441 = vmatprep.subr.bf16.mxu0 %v4378
      %4442 = vmatpush1.bf16.msra.mxu0 %v4377
      %4443 = vmatprep.subr.bf16.mxu0 %v4380
      %4444 = vmatpush1.bf16.msra.mxu0 %v4379
      %4445 = vmatprep.subr.bf16.mxu0 %v4382
      %4446 = vmatpush1.bf16.msra.mxu0 %v4381
      %4447 = vmatprep.subr.bf16.mxu0 %v4384
      %4448 = vmatpush1.bf16.msra.mxu0 %v4383
      %4449 = vmatprep.subr.bf16.mxu0 %v4386
      %4450 = vmatpush1.bf16.msra.mxu0 %v4385
      %4451 = vmatprep.subr.bf16.mxu0 %v4388
      %4452 = vmatpush1.bf16.msra.mxu0 %v4387
      %4453 = vmatprep.subr.bf16.mxu0 %v4390
      %4454 = vmatpush1.bf16.msra.mxu0 %v4389
      %4455 = vmatprep.subr.bf16.mxu0 %v4392
      %4456 = vmatpush1.bf16.msra.mxu0 %v4391
      %4457 = vmatprep.subr.bf16.mxu0 %v4394
      %4458 = vmatpush1.bf16.msra.mxu0 %v4393
      %4459 = vmatprep.subr.bf16.mxu0 %v4396
      %4460 = vmatpush1.bf16.msra.mxu0 %v4395
      %4461 = vmatprep.mubr.bf16.mxu0 %v4222
      %4462 = vmatmul.mubr.bf16.gmra.mrb[0].mxu0 %v4221
      %v4463 = vpop.f32.mrb[0].mxu0
      %v4464 = vadd.f32 %v4262, %v4463
      %v4465 = vpop.f32.mrb[0].mxu0
      %v4466 = vadd.f32 %v4266, %v4465
      %v4467 = vpop.f32.mrb[0].mxu0
      %v4468 = vpop.f32.mrb[0].mxu0
      %4469 = vdwg.mxu0
      %v4470 = vmax.f32 %v4464, 0.0
      %v4471 = vmax.f32 %v4466, 0.0
      %v4472 = vpack.c.bf16 %v4470, %v4470
      %v4473 = vpack.c.bf16 %v4471, %v4471
      %s4474 = scalar_lea.vmem %s4, 2304
      %v4475 = vld [vmem:[%s4474] sm:$0xff]
      %v4476 = vld [vmem:[%s4474 + $0x8] sm:$0xff]
      %v4477 = vld [vmem:[%s4474 + $0x10] sm:$0xff]
      %v4478 = vld [vmem:[%s4474 + $0x18] sm:$0xff]
      %v4479 = vld [vmem:[%s4474 + $0x20] sm:$0xff]
      %v4480 = vld [vmem:[%s4474 + $0x28] sm:$0xff]
      %v4481 = vld [vmem:[%s4474 + $0x30] sm:$0xff]
      %v4482 = vld [vmem:[%s4474 + $0x38] sm:$0xff]
      %v4483 = vld [vmem:[%s4474 + $0x40] sm:$0xff]
      %v4484 = vld [vmem:[%s4474 + $0x48] sm:$0xff]
      %v4485 = vld [vmem:[%s4474 + $0x50] sm:$0xff]
      %v4486 = vld [vmem:[%s4474 + $0x58] sm:$0xff]
      %v4487 = vld [vmem:[%s4474 + $0x60] sm:$0xff]
      %v4488 = vld [vmem:[%s4474 + $0x68] sm:$0xff]
      %v4489 = vld [vmem:[%s4474 + $0x70] sm:$0xff]
      %v4490 = vld [vmem:[%s4474 + $0x78] sm:$0xff]
      %v4491 = vld [vmem:[%s4474 + $0x80] sm:$0xff]
      %v4492 = vld [vmem:[%s4474 + $0x88] sm:$0xff]
      %v4493 = vld [vmem:[%s4474 + $0x90] sm:$0xff]
      %v4494 = vld [vmem:[%s4474 + $0x98] sm:$0xff]
      %v4495 = vld [vmem:[%s4474 + $0xa0] sm:$0xff]
      %v4496 = vld [vmem:[%s4474 + $0xa8] sm:$0xff]
      %v4497 = vld [vmem:[%s4474 + $0xb0] sm:$0xff]
      %v4498 = vld [vmem:[%s4474 + $0xb8] sm:$0xff]
      %v4499 = vld [vmem:[%s4474 + $0xc0] sm:$0xff]
      %v4500 = vld [vmem:[%s4474 + $0xc8] sm:$0xff]
      %v4501 = vld [vmem:[%s4474 + $0xd0] sm:$0xff]
      %v4502 = vld [vmem:[%s4474 + $0xd8] sm:$0xff]
      %v4503 = vld [vmem:[%s4474 + $0xe0] sm:$0xff]
      %v4504 = vld [vmem:[%s4474 + $0xe8] sm:$0xff]
      %v4505 = vld [vmem:[%s4474 + $0xf0] sm:$0xff]
      %v4506 = vld [vmem:[%s4474 + $0xf8] sm:$0xff]
      %s4507 = scalar_lea.vmem %s5, 18
      %v4508 = vld [vmem:[%s4507] sm:$0x3]
      %v4510 = vlaneseq
      %v4511 = vshrl.u32 %v4510, 7
      %v4512 = vsub.s32 0, %v4511
      %v4513 = vrot.slane %v4508, %v4512
      %v4514 = vlaneseq
      %v4515 = vshrl.u32 %v4514, 7
      %v4516 = vsub.s32 1, %v4515
      %v4517 = vrot.slane %v4508, %v4516
      %v4552 = vunpack.c.l.b16 %v4475
      %v4553 = vunpack.c.h.b16 %v4475
      %v4554 = vunpack.c.l.b16 %v4476
      %v4555 = vunpack.c.h.b16 %v4476
      %v4556 = vunpack.c.l.b16 %v4477
      %v4557 = vunpack.c.h.b16 %v4477
      %v4558 = vunpack.c.l.b16 %v4478
      %v4559 = vunpack.c.h.b16 %v4478
      %v4560 = vunpack.c.l.b16 %v4479
      %v4561 = vunpack.c.h.b16 %v4479
      %v4562 = vunpack.c.l.b16 %v4480
      %v4563 = vunpack.c.h.b16 %v4480
      %v4564 = vunpack.c.l.b16 %v4481
      %v4565 = vunpack.c.h.b16 %v4481
      %v4566 = vunpack.c.l.b16 %v4482
      %v4567 = vunpack.c.h.b16 %v4482
      %v4568 = vunpack.c.l.b16 %v4483
      %v4569 = vunpack.c.h.b16 %v4483
      %v4570 = vunpack.c.l.b16 %v4484
      %v4571 = vunpack.c.h.b16 %v4484
      %v4572 = vunpack.c.l.b16 %v4485
      %v4573 = vunpack.c.h.b16 %v4485
      %v4574 = vunpack.c.l.b16 %v4486
      %v4575 = vunpack.c.h.b16 %v4486
      %v4576 = vunpack.c.l.b16 %v4487
      %v4577 = vunpack.c.h.b16 %v4487
      %v4578 = vunpack.c.l.b16 %v4488
      %v4579 = vunpack.c.h.b16 %v4488
      %v4580 = vunpack.c.l.b16 %v4489
      %v4581 = vunpack.c.h.b16 %v4489
      %v4582 = vunpack.c.l.b16 %v4490
      %v4583 = vunpack.c.h.b16 %v4490
      %v4584 = vunpack.c.l.b16 %v4491
      %v4585 = vunpack.c.h.b16 %v4491
      %v4586 = vunpack.c.l.b16 %v4492
      %v4587 = vunpack.c.h.b16 %v4492
      %v4588 = vunpack.c.l.b16 %v4493
      %v4589 = vunpack.c.h.b16 %v4493
      %v4590 = vunpack.c.l.b16 %v4494
      %v4591 = vunpack.c.h.b16 %v4494
      %v4592 = vunpack.c.l.b16 %v4495
      %v4593 = vunpack.c.h.b16 %v4495
      %v4594 = vunpack.c.l.b16 %v4496
      %v4595 = vunpack.c.h.b16 %v4496
      %v4596 = vunpack.c.l.b16 %v4497
      %v4597 = vunpack.c.h.b16 %v4497
      %v4598 = vunpack.c.l.b16 %v4498
      %v4599 = vunpack.c.h.b16 %v4498
      %v4600 = vunpack.c.l.b16 %v4499
      %v4601 = vunpack.c.h.b16 %v4499
      %v4602 = vunpack.c.l.b16 %v4500
      %v4603 = vunpack.c.h.b16 %v4500
      %v4604 = vunpack.c.l.b16 %v4501
      %v4605 = vunpack.c.h.b16 %v4501
      %v4606 = vunpack.c.l.b16 %v4502
      %v4607 = vunpack.c.h.b16 %v4502
      %v4608 = vunpack.c.l.b16 %v4503
      %v4609 = vunpack.c.h.b16 %v4503
      %v4610 = vunpack.c.l.b16 %v4504
      %v4611 = vunpack.c.h.b16 %v4504
      %v4612 = vunpack.c.l.b16 %v4505
      %v4613 = vunpack.c.h.b16 %v4505
      %v4614 = vunpack.c.l.b16 %v4506
      %v4615 = vunpack.c.h.b16 %v4506
      %v4616 = vpack.c.b16 %v4554, %v4552
      %v4617 = vpack.c.b16 %v4555, %v4553
      %v4618 = vpack.c.b16 %v4558, %v4556
      %v4619 = vpack.c.b16 %v4559, %v4557
      %v4620 = vpack.c.b16 %v4562, %v4560
      %v4621 = vpack.c.b16 %v4563, %v4561
      %v4622 = vpack.c.b16 %v4566, %v4564
      %v4623 = vpack.c.b16 %v4567, %v4565
      %v4624 = vpack.c.b16 %v4570, %v4568
      %v4625 = vpack.c.b16 %v4571, %v4569
      %v4626 = vpack.c.b16 %v4574, %v4572
      %v4627 = vpack.c.b16 %v4575, %v4573
      %v4628 = vpack.c.b16 %v4578, %v4576
      %v4629 = vpack.c.b16 %v4579, %v4577
      %v4630 = vpack.c.b16 %v4582, %v4580
      %v4631 = vpack.c.b16 %v4583, %v4581
      %v4632 = vpack.c.b16 %v4586, %v4584
      %v4633 = vpack.c.b16 %v4587, %v4585
      %v4634 = vpack.c.b16 %v4590, %v4588
      %v4635 = vpack.c.b16 %v4591, %v4589
      %v4636 = vpack.c.b16 %v4594, %v4592
      %v4637 = vpack.c.b16 %v4595, %v4593
      %v4638 = vpack.c.b16 %v4598, %v4596
      %v4639 = vpack.c.b16 %v4599, %v4597
      %v4640 = vpack.c.b16 %v4602, %v4600
      %v4641 = vpack.c.b16 %v4603, %v4601
      %v4642 = vpack.c.b16 %v4606, %v4604
      %v4643 = vpack.c.b16 %v4607, %v4605
      %v4644 = vpack.c.b16 %v4610, %v4608
      %v4645 = vpack.c.b16 %v4611, %v4609
      %v4646 = vpack.c.b16 %v4614, %v4612
      %v4647 = vpack.c.b16 %v4615, %v4613
      %4680 = vmatprep.subr.bf16.mxu0 %v4617
      %4681 = vmatpush1.bf16.msra.mxu0 %v4616
      %4682 = vmatprep.subr.bf16.mxu0 %v4619
      %4683 = vmatpush1.bf16.msra.mxu0 %v4618
      %4684 = vmatprep.subr.bf16.mxu0 %v4621
      %4685 = vmatpush1.bf16.msra.mxu0 %v4620
      %4686 = vmatprep.subr.bf16.mxu0 %v4623
      %4687 = vmatpush1.bf16.msra.mxu0 %v4622
      %4688 = vmatprep.subr.bf16.mxu0 %v4625
      %4689 = vmatpush1.bf16.msra.mxu0 %v4624
      %4690 = vmatprep.subr.bf16.mxu0 %v4627
      %4691 = vmatpush1.bf16.msra.mxu0 %v4626
      %4692 = vmatprep.subr.bf16.mxu0 %v4629
      %4693 = vmatpush1.bf16.msra.mxu0 %v4628
      %4694 = vmatprep.subr.bf16.mxu0 %v4631
      %4695 = vmatpush1.bf16.msra.mxu0 %v4630
      %4696 = vmatprep.subr.bf16.mxu0 %v4633
      %4697 = vmatpush1.bf16.msra.mxu0 %v4632
      %4698 = vmatprep.subr.bf16.mxu0 %v4635
      %4699 = vmatpush1.bf16.msra.mxu0 %v4634
      %4700 = vmatprep.subr.bf16.mxu0 %v4637
      %4701 = vmatpush1.bf16.msra.mxu0 %v4636
      %4702 = vmatprep.subr.bf16.mxu0 %v4639
      %4703 = vmatpush1.bf16.msra.mxu0 %v4638
      %4704 = vmatprep.subr.bf16.mxu0 %v4641
      %4705 = vmatpush1.bf16.msra.mxu0 %v4640
      %4706 = vmatprep.subr.bf16.mxu0 %v4643
      %4707 = vmatpush1.bf16.msra.mxu0 %v4642
      %4708 = vmatprep.subr.bf16.mxu0 %v4645
      %4709 = vmatpush1.bf16.msra.mxu0 %v4644
      %4710 = vmatprep.subr.bf16.mxu0 %v4647
      %4711 = vmatpush1.bf16.msra.mxu0 %v4646
      %4712 = vmatprep.mubr.bf16.mxu0 %v4473
      %4713 = vmatmul.mubr.bf16.gmra.mrb[0].mxu0 %v4472
      %v4714 = vpop.f32.mrb[0].mxu0
      %v4715 = vadd.f32 %v4513, %v4714
      %v4716 = vpop.f32.mrb[0].mxu0
      %v4717 = vadd.f32 %v4517, %v4716
      %v4718 = vpop.f32.mrb[0].mxu0
      %v4719 = vpop.f32.mrb[0].mxu0
      %4720 = vdwg.mxu0
      %s4721 = scalar_lea.vmem %s4, 2560
      %v4722 = vld [vmem:[%s4721] sm:$0xff]
      %v4723 = vld [vmem:[%s4721 + $0x8] sm:$0xff]
      %v4724 = vld [vmem:[%s4721 + $0x10] sm:$0xff]
      %v4725 = vld [vmem:[%s4721 + $0x18] sm:$0xff]
      %v4726 = vld [vmem:[%s4721 + $0x20] sm:$0xff]
      %v4727 = vld [vmem:[%s4721 + $0x28] sm:$0xff]
      %v4728 = vld [vmem:[%s4721 + $0x30] sm:$0xff]
      %v4729 = vld [vmem:[%s4721 + $0x38] sm:$0xff]
      %v4730 = vld [vmem:[%s4721 + $0x40] sm:$0xff]
      %v4731 = vld [vmem:[%s4721 + $0x48] sm:$0xff]
      %v4732 = vld [vmem:[%s4721 + $0x50] sm:$0xff]
      %v4733 = vld [vmem:[%s4721 + $0x58] sm:$0xff]
      %v4734 = vld [vmem:[%s4721 + $0x60] sm:$0xff]
      %v4735 = vld [vmem:[%s4721 + $0x68] sm:$0xff]
      %v4736 = vld [vmem:[%s4721 + $0x70] sm:$0xff]
      %v4737 = vld [vmem:[%s4721 + $0x78] sm:$0xff]
      %v4738 = vld [vmem:[%s4721 + $0x80] sm:$0xff]
      %v4739 = vld [vmem:[%s4721 + $0x88] sm:$0xff]
      %v4740 = vld [vmem:[%s4721 + $0x90] sm:$0xff]
      %v4741 = vld [vmem:[%s4721 + $0x98] sm:$0xff]
      %v4742 = vld [vmem:[%s4721 + $0xa0] sm:$0xff]
      %v4743 = vld [vmem:[%s4721 + $0xa8] sm:$0xff]
      %v4744 = vld [vmem:[%s4721 + $0xb0] sm:$0xff]
      %v4745 = vld [vmem:[%s4721 + $0xb8] sm:$0xff]
      %v4746 = vld [vmem:[%s4721 + $0xc0] sm:$0xff]
      %v4747 = vld [vmem:[%s4721 + $0xc8] sm:$0xff]
      %v4748 = vld [vmem:[%s4721 + $0xd0] sm:$0xff]
      %v4749 = vld [vmem:[%s4721 + $0xd8] sm:$0xff]
      %v4750 = vld [vmem:[%s4721 + $0xe0] sm:$0xff]
      %v4751 = vld [vmem:[%s4721 + $0xe8] sm:$0xff]
      %v4752 = vld [vmem:[%s4721 + $0xf0] sm:$0xff]
      %v4753 = vld [vmem:[%s4721 + $0xf8] sm:$0xff]
      %s4754 = scalar_lea.vmem %s5, 20
      %v4755 = vld [vmem:[%s4754] sm:$0x3]
      %v4757 = vlaneseq
      %v4758 = vshrl.u32 %v4757, 7
      %v4759 = vsub.s32 0, %v4758
      %v4760 = vrot.slane %v4755, %v4759
      %v4761 = vlaneseq
      %v4762 = vshrl.u32 %v4761, 7
      %v4763 = vsub.s32 1, %v4762
      %v4764 = vrot.slane %v4755, %v4763
      %v4799 = vunpack.c.l.b16 %v4722
      %v4800 = vunpack.c.h.b16 %v4722
      %v4801 = vunpack.c.l.b16 %v4723
      %v4802 = vunpack.c.h.b16 %v4723
      %v4803 = vunpack.c.l.b16 %v4724
      %v4804 = vunpack.c.h.b16 %v4724
      %v4805 = vunpack.c.l.b16 %v4725
      %v4806 = vunpack.c.h.b16 %v4725
      %v4807 = vunpack.c.l.b16 %v4726
      %v4808 = vunpack.c.h.b16 %v4726
      %v4809 = vunpack.c.l.b16 %v4727
      %v4810 = vunpack.c.h.b16 %v4727
      %v4811 = vunpack.c.l.b16 %v4728
      %v4812 = vunpack.c.h.b16 %v4728
      %v4813 = vunpack.c.l.b16 %v4729
      %v4814 = vunpack.c.h.b16 %v4729
      %v4815 = vunpack.c.l.b16 %v4730
      %v4816 = vunpack.c.h.b16 %v4730
      %v4817 = vunpack.c.l.b16 %v4731
      %v4818 = vunpack.c.h.b16 %v4731
      %v4819 = vunpack.c.l.b16 %v4732
      %v4820 = vunpack.c.h.b16 %v4732
      %v4821 = vunpack.c.l.b16 %v4733
      %v4822 = vunpack.c.h.b16 %v4733
      %v4823 = vunpack.c.l.b16 %v4734
      %v4824 = vunpack.c.h.b16 %v4734
      %v4825 = vunpack.c.l.b16 %v4735
      %v4826 = vunpack.c.h.b16 %v4735
      %v4827 = vunpack.c.l.b16 %v4736
      %v4828 = vunpack.c.h.b16 %v4736
      %v4829 = vunpack.c.l.b16 %v4737
      %v4830 = vunpack.c.h.b16 %v4737
      %v4831 = vunpack.c.l.b16 %v4738
      %v4832 = vunpack.c.h.b16 %v4738
      %v4833 = vunpack.c.l.b16 %v4739
      %v4834 = vunpack.c.h.b16 %v4739
      %v4835 = vunpack.c.l.b16 %v4740
      %v4836 = vunpack.c.h.b16 %v4740
      %v4837 = vunpack.c.l.b16 %v4741
      %v4838 = vunpack.c.h.b16 %v4741
      %v4839 = vunpack.c.l.b16 %v4742
      %v4840 = vunpack.c.h.b16 %v4742
      %v4841 = vunpack.c.l.b16 %v4743
      %v4842 = vunpack.c.h.b16 %v4743
      %v4843 = vunpack.c.l.b16 %v4744
      %v4844 = vunpack.c.h.b16 %v4744
      %v4845 = vunpack.c.l.b16 %v4745
      %v4846 = vunpack.c.h.b16 %v4745
      %v4847 = vunpack.c.l.b16 %v4746
      %v4848 = vunpack.c.h.b16 %v4746
      %v4849 = vunpack.c.l.b16 %v4747
      %v4850 = vunpack.c.h.b16 %v4747
      %v4851 = vunpack.c.l.b16 %v4748
      %v4852 = vunpack.c.h.b16 %v4748
      %v4853 = vunpack.c.l.b16 %v4749
      %v4854 = vunpack.c.h.b16 %v4749
      %v4855 = vunpack.c.l.b16 %v4750
      %v4856 = vunpack.c.h.b16 %v4750
      %v4857 = vunpack.c.l.b16 %v4751
      %v4858 = vunpack.c.h.b16 %v4751
      %v4859 = vunpack.c.l.b16 %v4752
      %v4860 = vunpack.c.h.b16 %v4752
      %v4861 = vunpack.c.l.b16 %v4753
      %v4862 = vunpack.c.h.b16 %v4753
      %v4863 = vpack.c.b16 %v4801, %v4799
      %v4864 = vpack.c.b16 %v4802, %v4800
      %v4865 = vpack.c.b16 %v4805, %v4803
      %v4866 = vpack.c.b16 %v4806, %v4804
      %v4867 = vpack.c.b16 %v4809, %v4807
      %v4868 = vpack.c.b16 %v4810, %v4808
      %v4869 = vpack.c.b16 %v4813, %v4811
      %v4870 = vpack.c.b16 %v4814, %v4812
      %v4871 = vpack.c.b16 %v4817, %v4815
      %v4872 = vpack.c.b16 %v4818, %v4816
      %v4873 = vpack.c.b16 %v4821, %v4819
      %v4874 = vpack.c.b16 %v4822, %v4820
      %v4875 = vpack.c.b16 %v4825, %v4823
      %v4876 = vpack.c.b16 %v4826, %v4824
      %v4877 = vpack.c.b16 %v4829, %v4827
      %v4878 = vpack.c.b16 %v4830, %v4828
      %v4879 = vpack.c.b16 %v4833, %v4831
      %v4880 = vpack.c.b16 %v4834, %v4832
      %v4881 = vpack.c.b16 %v4837, %v4835
      %v4882 = vpack.c.b16 %v4838, %v4836
      %v4883 = vpack.c.b16 %v4841, %v4839
      %v4884 = vpack.c.b16 %v4842, %v4840
      %v4885 = vpack.c.b16 %v4845, %v4843
      %v4886 = vpack.c.b16 %v4846, %v4844
      %v4887 = vpack.c.b16 %v4849, %v4847
      %v4888 = vpack.c.b16 %v4850, %v4848
      %v4889 = vpack.c.b16 %v4853, %v4851
      %v4890 = vpack.c.b16 %v4854, %v4852
      %v4891 = vpack.c.b16 %v4857, %v4855
      %v4892 = vpack.c.b16 %v4858, %v4856
      %v4893 = vpack.c.b16 %v4861, %v4859
      %v4894 = vpack.c.b16 %v4862, %v4860
      %4927 = vmatprep.subr.bf16.mxu0 %v4864
      %4928 = vmatpush1.bf16.msra.mxu0 %v4863
      %4929 = vmatprep.subr.bf16.mxu0 %v4866
      %4930 = vmatpush1.bf16.msra.mxu0 %v4865
      %4931 = vmatprep.subr.bf16.mxu0 %v4868
      %4932 = vmatpush1.bf16.msra.mxu0 %v4867
      %4933 = vmatprep.subr.bf16.mxu0 %v4870
      %4934 = vmatpush1.bf16.msra.mxu0 %v4869
      %4935 = vmatprep.subr.bf16.mxu0 %v4872
      %4936 = vmatpush1.bf16.msra.mxu0 %v4871
      %4937 = vmatprep.subr.bf16.mxu0 %v4874
      %4938 = vmatpush1.bf16.msra.mxu0 %v4873
      %4939 = vmatprep.subr.bf16.mxu0 %v4876
      %4940 = vmatpush1.bf16.msra.mxu0 %v4875
      %4941 = vmatprep.subr.bf16.mxu0 %v4878
      %4942 = vmatpush1.bf16.msra.mxu0 %v4877
      %4943 = vmatprep.subr.bf16.mxu0 %v4880
      %4944 = vmatpush1.bf16.msra.mxu0 %v4879
      %4945 = vmatprep.subr.bf16.mxu0 %v4882
      %4946 = vmatpush1.bf16.msra.mxu0 %v4881
      %4947 = vmatprep.subr.bf16.mxu0 %v4884
      %4948 = vmatpush1.bf16.msra.mxu0 %v4883
      %4949 = vmatprep.subr.bf16.mxu0 %v4886
      %4950 = vmatpush1.bf16.msra.mxu0 %v4885
      %4951 = vmatprep.subr.bf16.mxu0 %v4888
      %4952 = vmatpush1.bf16.msra.mxu0 %v4887
      %4953 = vmatprep.subr.bf16.mxu0 %v4890
      %4954 = vmatpush1.bf16.msra.mxu0 %v4889
      %4955 = vmatprep.subr.bf16.mxu0 %v4892
      %4956 = vmatpush1.bf16.msra.mxu0 %v4891
      %4957 = vmatprep.subr.bf16.mxu0 %v4894
      %4958 = vmatpush1.bf16.msra.mxu0 %v4893
      %4959 = vmatprep.mubr.bf16.mxu0 %v4222
      %4960 = vmatmul.mubr.bf16.gmra.mrb[0].mxu0 %v4221
      %v4961 = vpop.f32.mrb[0].mxu0
      %v4962 = vadd.f32 %v4760, %v4961
      %v4963 = vpop.f32.mrb[0].mxu0
      %v4964 = vadd.f32 %v4764, %v4963
      %v4965 = vpop.f32.mrb[0].mxu0
      %v4966 = vpop.f32.mrb[0].mxu0
      %4967 = vdwg.mxu0
      %v4968 = vadd.f32 %v4715, %v4962
      %v4969 = vadd.f32 %v4717, %v4964
      %v4970 = vmax.f32 %v4968, 0.0
      %v4971 = vmax.f32 %v4969, 0.0
      %v4972 = vmax.f32 %v4970, %v4971
      %v4973 = vpack.c.bf16 %v4972, %v4972
      %v4974 = vld [vmem:[%s6] sm:$0xf]
      %v4975 = vld [vmem:[%s6 + $0x4] sm:$0xf]
      %v4976 = vld [vmem:[%s6 + $0x8] sm:$0xf]
      %v4977 = vld [vmem:[%s6 + $0xc] sm:$0xf]
      %v4978 = vld [vmem:[%s6 + $0x10] sm:$0xf]
      %v4979 = vld [vmem:[%s6 + $0x14] sm:$0xf]
      %v4980 = vld [vmem:[%s6 + $0x18] sm:$0xf]
      %v4981 = vld [vmem:[%s6 + $0x1c] sm:$0xf]
      %v4982 = vld [vmem:[%s6 + $0x20] sm:$0xf]
      %v4983 = vld [vmem:[%s6 + $0x24] sm:$0xf]
      %v4984 = vld [vmem:[%s6 + $0x28] sm:$0xf]
      %v4985 = vld [vmem:[%s6 + $0x2c] sm:$0xf]
      %v4986 = vld [vmem:[%s6 + $0x30] sm:$0xf]
      %v4987 = vld [vmem:[%s6 + $0x34] sm:$0xf]
      %v4988 = vld [vmem:[%s6 + $0x38] sm:$0xf]
      %v4989 = vld [vmem:[%s6 + $0x3c] sm:$0xf]
      %v4990 = vld [vmem:[%s7] sm:$0x1]
      %v4992 = vlaneseq
      %v4993 = vshrl.u32 %v4992, 7
      %v4994 = vsub.s32 0, %v4993
      %v4995 = vrot.slane %v4990, %v4994
      %v5013 = vunpack.c.l.b16 %v4974
      %v5014 = vunpack.c.l.b16 %v4975
      %v5015 = vunpack.c.l.b16 %v4976
      %v5016 = vunpack.c.l.b16 %v4977
      %v5017 = vunpack.c.l.b16 %v4978
      %v5018 = vunpack.c.l.b16 %v4979
      %v5019 = vunpack.c.l.b16 %v4980
      %v5020 = vunpack.c.l.b16 %v4981
      %v5021 = vunpack.c.l.b16 %v4982
      %v5022 = vunpack.c.l.b16 %v4983
      %v5023 = vunpack.c.l.b16 %v4984
      %v5024 = vunpack.c.l.b16 %v4985
      %v5025 = vunpack.c.l.b16 %v4986
      %v5026 = vunpack.c.l.b16 %v4987
      %v5027 = vunpack.c.l.b16 %v4988
      %v5028 = vunpack.c.l.b16 %v4989
      %v5029 = vpack.c.b16 %v5014, %v5013
      %v5030 = vpack.c.b16 %v5016, %v5015
      %v5031 = vpack.c.b16 %v5018, %v5017
      %v5032 = vpack.c.b16 %v5020, %v5019
      %v5033 = vpack.c.b16 %v5022, %v5021
      %v5034 = vpack.c.b16 %v5024, %v5023
      %v5035 = vpack.c.b16 %v5026, %v5025
      %v5036 = vpack.c.b16 %v5028, %v5027
      %5045 = vmatprep.subr.bf16.mxu0 0
      %5046 = vmatpush1.bf16.msra.mxu0 %v5029
      %5047 = vmatprep.subr.bf16.mxu0 0
      %5048 = vmatpush1.bf16.msra.mxu0 %v5030
      %5049 = vmatprep.subr.bf16.mxu0 0
      %5050 = vmatpush1.bf16.msra.mxu0 %v5031
      %5051 = vmatprep.subr.bf16.mxu0 0
      %5052 = vmatpush1.bf16.msra.mxu0 %v5032
      %5053 = vmatprep.subr.bf16.mxu0 0
      %5054 = vmatpush1.bf16.msra.mxu0 %v5033
      %5055 = vmatprep.subr.bf16.mxu0 0
      %5056 = vmatpush1.bf16.msra.mxu0 %v5034
      %5057 = vmatprep.subr.bf16.mxu0 0
      %5058 = vmatpush1.bf16.msra.mxu0 %v5035
      %5059 = vmatprep.subr.bf16.mxu0 0
      %5060 = vmatpush1.bf16.msra.mxu0 %v5036
      %5061 = vmatprep.subr.bf16.mxu0 0
      %5062 = vmatpush1.bf16.msra.mxu0 0
      %5063 = vmatprep.subr.bf16.mxu0 0
      %5064 = vmatpush1.bf16.msra.mxu0 0
      %5065 = vmatprep.subr.bf16.mxu0 0
      %5066 = vmatpush1.bf16.msra.mxu0 0
      %5067 = vmatprep.subr.bf16.mxu0 0
      %5068 = vmatpush1.bf16.msra.mxu0 0
      %5069 = vmatprep.subr.bf16.mxu0 0
      %5070 = vmatpush1.bf16.msra.mxu0 0
      %5071 = vmatprep.subr.bf16.mxu0 0
      %5072 = vmatpush1.bf16.msra.mxu0 0
      %5073 = vmatprep.subr.bf16.mxu0 0
      %5074 = vmatpush1.bf16.msra.mxu0 0
      %5075 = vmatprep.subr.bf16.mxu0 0
      %5076 = vmatpush1.bf16.msra.mxu0 0
      %5077 = vmatprep.mubr.bf16.mxu0 0
      %5078 = vmatmul.mubr.bf16.gmra.mrb[0].mxu0 %v4973
      %v5079 = vpop.f32.mrb[0].mxu0
      %v5080 = vadd.f32 %v4995, %v5079
      %v5081 = vpop.f32.mrb[0].mxu0
      %v5082 = vpop.f32.mrb[0].mxu0
      %v5083 = vpop.f32.mrb[0].mxu0
      %5084 = vdwg.mxu0
      %5085 = vst [vmem:[%s303] sm:$0xf] %v5080
      %p5086 = scmp.lt.s32.totalorder %s19, 1
      %s5087 = scalar_select %p5086, %s19, 1
      %s5088 = smul.addr %s5087, 4
      %s5089 = scalar_lea.vmem %s8, %s5088
      // Predicated region
      $region53: #{forward.1} parent=51 // pred_check
        %p5090 = pneg %p210
      $region54: #{forward.1} parent=51 // pred_check_branch
        %5092 = sbr.rel (%p5090) target = $region56
      $region55: #{forward.1} parent=51 // pred_region
        _
      $region56: #{forward.1} parent=51 // pred_fallthru
        _
    $region52: #{forward.1} parent=5 // pred_fallthru
      _
    %p5093 = scmp.le.s32.totalorder 2, %s14
    // Predicated region
    $region57: #{forward.1} parent=5 // pred_check
      %p5094 = pneg %p5093
    $region58: #{forward.1} parent=5 // pred_check_branch
      %5096 = sbr.rel (%p5094) target = $region60
    $region59: #{forward.1} parent=5 // pred_region
      %s5097 = ssub.s32 %s14, 2
      // Predicated region
      $region61: #{forward.1} parent=59 // pred_check
        %p5098 = pneg %p216
      $region62: #{forward.1} parent=59 // pred_check_branch
        %5100 = sbr.rel (%p5098) target = $region64
      $region63: #{forward.1} parent=59 // pred_region
        %p5101 = scmp.lt.s32.totalorder %s20, 1
        %s5102 = scalar_select %p5101, %s20, 1
        %s5103 = smul.addr %s5102, 4
        %s5104 = scalar_lea.vmem %s8, %s5103
      $region64: #{forward.1} parent=59 // pred_fallthru
        _
    $region60: #{forward.1} parent=5 // pred_fallthru
      _
  $region6: #{forward.1} parent=0 // loop_footer
    %s18 = sadd.s32 1, %s14
  $region7: #{forward.1} parent=0 // loop_footer_branch
    %13 = sbr.rel target = $region3
  $region8: #{forward.1} parent=0 // loop_exit
    _

</llo_original>
